<compile_context>
chip_gen: v7x
topology: tpu7x:2x2x1
jax: 0.10.0
libtpu: 0.0.40
codegen_flags: <defaults>
</compile_context>

<pallas_src>
import functools
import math

import jax
import jax.numpy as jnp
from jax.experimental import pallas as pl
from jax.experimental.pallas import tpu as pltpu


# ----------------------------------------------------------------------------
# Fused forward kernel
# ----------------------------------------------------------------------------
def fused_forward_kernel(*refs, n_gin, n_gt, heads, out_ch):
    o_ref = refs[-1]
    it = iter(refs[:-1])
    src_ref = next(it)        # [E, 1] int32 : edge source j
    dst_ref = next(it)        # [E, 1] int32 : edge target i
    dst_row_ref = next(it)    # [1, E] int32 : edge target i (row layout)
    batch_ref = next(it)      # [1, N] int32 : node -> graph id
    x_ref = next(it)          # [N, F]
    ea_ref = next(it)         # [E, ED]
    gin_p = [tuple(next(it) for _ in range(4)) for _ in range(n_gin)]
    gt_p = [tuple(next(it) for _ in range(11)) for _ in range(n_gt)]
    r_w1, r_b1, r_w2, r_b2 = (next(it) for _ in range(4))

    N = x_ref.shape[0]
    E = src_ref.shape[0]
    G = o_ref.shape[0]
    f32 = jnp.float32

    # Gather/scatter one-hot matrices built in-kernel from int32 indices (no HBM
    # traffic for [E,N] matrices; only the tiny index vectors are DMA'd).
    # TODO(synk): for large graphs replace these dense one-hot matmuls with true
    # index-based gather + tiled scatter-accumulate; Mosaic has no clean dynamic
    # scatter-add primitive, so the dense path is kept for small N/E.
    col_ids = jax.lax.broadcasted_iota(jnp.int32, (E, N), 1)
    S = jnp.where(col_ids == src_ref[...], f32(1), f32(0))        # [E, N] gather x_j
    T = jnp.where(col_ids == dst_ref[...], f32(1), f32(0))        # [E, N] gather x_i
    row_ids = jax.lax.broadcasted_iota(jnp.int32, (N, E), 0)
    Tt = jnp.where(row_ids == dst_row_ref[...], f32(1), f32(0))   # [N, E] scatter->i
    adj = jnp.dot(Tt, S, preferred_element_type=f32)              # adj[i,j]=#edges j->i

    h = x_ref[...]

    # ---- GIN stack: MLP(x + sum_{j->i} x_j), eps = 0 ----
    for (w1, b1, w2, b2) in gin_p:
        agg = h + jnp.dot(adj, h, preferred_element_type=f32)
        z = jnp.dot(agg, w1[...], preferred_element_type=f32) + b1[...]
        z = jnp.maximum(z, 0.0)
        h = jnp.dot(z, w2[...], preferred_element_type=f32) + b2[...]

    # ---- TransformerConv stack (edge_dim, beta=True, concat=True), eval mode ----
    scale = 1.0 / math.sqrt(out_ch)
    BIG = f32(1e30)
    for (wq, bq, wk, bk, wv, bv, we, wskip, bskip, wb_out, wb_xr) in gt_p:
        # head-fused projections; 1/sqrt(C) folded into q at node granularity
        q = (jnp.dot(h, wq[...], preferred_element_type=f32) + bq[...]) * scale
        k = jnp.dot(h, wk[...], preferred_element_type=f32) + bk[...]
        v = jnp.dot(h, wv[...], preferred_element_type=f32) + bv[...]
        e = jnp.dot(ea_ref[...], we[...], preferred_element_type=f32)

        # head-fused per-edge gathers at full [E, H*C] lane width
        q_e = jnp.dot(T, q, preferred_element_type=f32)               # q_i per edge
        k_e = jnp.dot(S, k, preferred_element_type=f32) + e           # k_j + W_e e
        v_e = jnp.dot(S, v, preferred_element_type=f32) + e           # v_j + W_e e

        qk = q_e * k_e
        ex_cols = []
        for hh in range(heads):                                       # static head loop
            sl = slice(hh * out_ch, (hh + 1) * out_ch)
            sc = jnp.sum(qk[:, sl], axis=1, keepdims=True)            # [E, 1]
            # per-target max for stable softmax (PyG semantics)
            masked = sc * T + (T - 1.0) * BIG                         # [E, N]
            m_tgt = jnp.max(masked, axis=0, keepdims=True)            # [1, N]
            m_e = jnp.sum(T * m_tgt, axis=1, keepdims=True)           # [E, 1] gather-back
            ex_cols.append(jnp.exp(sc - m_e))
        ex = jnp.concatenate(ex_cols, axis=1)                         # [E, H]
        denom = jnp.dot(Tt, ex, preferred_element_type=f32)           # [N, H]
        denom_e = jnp.dot(T, denom, preferred_element_type=f32)       # [E, H]
        alpha = ex / denom_e                                          # softmax per target
        # TODO(synk): attention dropout on alpha skipped (eval-mode semantics).

        msg = jnp.concatenate(
            [v_e[:, hh * out_ch:(hh + 1) * out_ch] * alpha[:, hh:hh + 1]
             for hh in range(heads)], axis=1)                         # [E, H*C]
        out = jnp.dot(Tt, msg, preferred_element_type=f32)            # [N, H*C]

        x_r = jnp.dot(h, wskip[...], preferred_element_type=f32) + bskip[...]
        # beta = sigmoid([out, x_r, out - x_r] @ w_beta) without the 3x concat:
        #      = sigmoid(out @ (W0 + W2) + x_r @ (W1 - W2)); weights pre-combined rows.
        g = jnp.sum(out * wb_out[...] + x_r * wb_xr[...], axis=1, keepdims=True)
        beta = jax.nn.sigmoid(g)                                      # [N, 1]
        h = beta * x_r + (1.0 - beta) * out

    # ---- global_mean_pool + MLP readout ----
    gids = jax.lax.broadcasted_iota(jnp.int32, (G, N), 0)
    P = jnp.where(gids == batch_ref[...], f32(1), f32(0))             # [G, N]
    counts = jnp.maximum(jnp.sum(P, axis=1, keepdims=True), 1.0)
    pooled = jnp.dot(P / counts, h, preferred_element_type=f32)       # [G, H*C]
    z = jnp.dot(pooled, r_w1[...], preferred_element_type=f32) + r_b1[...]
    z = jnp.maximum(z, 0.0)
    o_ref[...] = jnp.dot(z, r_w2[...], preferred_element_type=f32) + r_b2[...]


# ----------------------------------------------------------------------------
# Wrapper: single fused pallas_call for the whole forward
# ----------------------------------------------------------------------------
def forward(params, x, edge_attr, edge_index, batch, num_graphs, *, hidden, heads):
    N = x.shape[0]
    E = edge_index.shape[1]
    src = edge_index[0].astype(jnp.int32)
    dst = edge_index[1].astype(jnp.int32)

    args = [src.reshape(E, 1), dst.reshape(E, 1), dst.reshape(1, E),
            batch.astype(jnp.int32).reshape(1, N), x, edge_attr]
    for p in params["gin"]:
        args += [p["w1"], p["b1"], p["w2"], p["b2"]]
    for p in params["gt"]:
        hc = p["wq"].shape[1]
        wb = p["wbeta"]                                                # [3*hc, 1]
        wb_out = (wb[0:hc, 0] + wb[2 * hc:3 * hc, 0]).reshape(1, hc)   # (W0 + W2)^T
        wb_xr = (wb[hc:2 * hc, 0] - wb[2 * hc:3 * hc, 0]).reshape(1, hc)  # (W1 - W2)^T
        args += [p["wq"], p["bq"], p["wk"], p["bk"], p["wv"], p["bv"],
                 p["we"], p["wskip"], p["bskip"], wb_out, wb_xr]
    r = params["readout"]
    args += [r["w1"], r["b1"], r["w2"], r["b2"]]

    num_targets = r["w2"].shape[1]
    kernel = functools.partial(fused_forward_kernel,
                               n_gin=len(params["gin"]), n_gt=len(params["gt"]),
                               heads=heads, out_ch=hidden)
    return pl.pallas_call(
        kernel,
        out_shape=jax.ShapeDtypeStruct((num_graphs, num_targets), jnp.float32),
        in_specs=[pl.BlockSpec(memory_space=pltpu.MemorySpace.VMEM)] * len(args),
        out_specs=pl.BlockSpec(memory_space=pltpu.MemorySpace.VMEM),
        compiler_params=pltpu.CompilerParams(vmem_limit_bytes=32 * 1024 * 1024),
    )(*args)


# ----------------------------------------------------------------------------
# Deterministic parameter init (PyTorch Linear default: U(-1/sqrt(fan_in), +))
# Weights stored as [fan_in, fan_out] (transposed vs torch) for direct matmul.
# ----------------------------------------------------------------------------
def linear_params(key, fan_in, fan_out, bias=True):
    kw, kb = jax.random.split(key)
    bound = 1.0 / math.sqrt(fan_in)
    w = jax.random.uniform(kw, (fan_in, fan_out), jnp.float32, -bound, bound)
    if not bias:
        return w
    b = jax.random.uniform(kb, (1, fan_out), jnp.float32, -bound, bound)
    return w, b


def init_model_params(key, hidden, n_gin, n_gt, num_features, num_targets,
                      edge_dim, heads):
    keys = iter(jax.random.split(key, 64))
    params = {"gin": [], "gt": []}
    for layer in range(n_gin):
        fin = num_features if layer == 0 else hidden
        w1, b1 = linear_params(next(keys), fin, hidden)
        w2, b2 = linear_params(next(keys), hidden, hidden)
        params["gin"].append(dict(w1=w1, b1=b1, w2=w2, b2=b2))
    for layer in range(n_gt):
        fin = hidden if layer == 0 else hidden * heads
        hc = hidden * heads
        wq, bq = linear_params(next(keys), fin, hc)
        wk, bk = linear_params(next(keys), fin, hc)
        wv, bv = linear_params(next(keys), fin, hc)
        we = linear_params(next(keys), edge_dim, hc, bias=False)
        wskip, bskip = linear_params(next(keys), fin, hc)
        wbeta = linear_params(next(keys), 3 * hc, 1, bias=False)
        params["gt"].append(dict(wq=wq, bq=bq, wk=wk, bk=bk, wv=wv, bv=bv,
                                 we=we, wskip=wskip, bskip=bskip, wbeta=wbeta))
    rw1, rb1 = linear_params(next(keys), hidden * heads, hidden)
    rw2, rb2 = linear_params(next(keys), hidden, num_targets)
    params["readout"] = dict(w1=rw1, b1=rb1, w2=rw2, b2=rb2)
    return params


# ----------------------------------------------------------------------------
# Example run
# ----------------------------------------------------------------------------
if __name__ == "__main__":
    # model hyperparams
    hidden_size, num_layers_GIN, num_layers_GT = 32, 2, 2
    dropout, num_features, num_targets = 0.0, 8, 4
    edge_dim, heads = 8, 2

    # graph: 2 graphs of 8 nodes each, 2 outgoing edges per node -> N=16, E=32
    N, G = 16, 2
    nodes_per_graph = N // G
    base = (jnp.arange(N) // nodes_per_graph) * nodes_per_graph
    local = jnp.arange(N) % nodes_per_graph
    src = jnp.concatenate([jnp.arange(N), jnp.arange(N)])
    dst = jnp.concatenate([base + (local + 1) % nodes_per_graph,
                           base + (local + 3) % nodes_per_graph])
    edge_index = jnp.stack([src, dst]).astype(jnp.int32)              # [2, E]
    E = edge_index.shape[1]
    batch = (jnp.arange(N) // nodes_per_graph).astype(jnp.int32)      # [N]

    key = jax.random.PRNGKey(0)
    k_x, k_e, k_p = jax.random.split(key, 3)
    x = jax.random.normal(k_x, (N, num_features), jnp.float32)
    edge_attr = jax.random.normal(k_e, (E, edge_dim), jnp.float32)

    params = init_model_params(k_p, hidden_size, num_layers_GIN, num_layers_GT,
                               num_features, num_targets, edge_dim, heads)

    out = forward(params, x, edge_attr, edge_index, batch, G,
                  hidden=hidden_size, heads=heads)
    out = jax.block_until_ready(out)
    assert out.shape == (G, num_targets)
    assert bool(jnp.all(jnp.isfinite(out)))
    print("KERNEL_OK")
</pallas_src>

<mosaic_0001>
module attributes {stable_mosaic.version = 11 : i64} {
  func.func @fused_forward_kernel(%arg0: memref<32x1xi32, #tpu.memory_space<vmem>>, %arg1: memref<32x1xi32, #tpu.memory_space<vmem>>, %arg2: memref<1x32xi32, #tpu.memory_space<vmem>>, %arg3: memref<1x16xi32, #tpu.memory_space<vmem>>, %arg4: memref<16x8xf32, #tpu.memory_space<vmem>>, %arg5: memref<32x8xf32, #tpu.memory_space<vmem>>, %arg6: memref<8x32xf32, #tpu.memory_space<vmem>>, %arg7: memref<1x32xf32, #tpu.memory_space<vmem>>, %arg8: memref<32x32xf32, #tpu.memory_space<vmem>>, %arg9: memref<1x32xf32, #tpu.memory_space<vmem>>, %arg10: memref<32x32xf32, #tpu.memory_space<vmem>>, %arg11: memref<1x32xf32, #tpu.memory_space<vmem>>, %arg12: memref<32x32xf32, #tpu.memory_space<vmem>>, %arg13: memref<1x32xf32, #tpu.memory_space<vmem>>, %arg14: memref<32x64xf32, #tpu.memory_space<vmem>>, %arg15: memref<1x64xf32, #tpu.memory_space<vmem>>, %arg16: memref<32x64xf32, #tpu.memory_space<vmem>>, %arg17: memref<1x64xf32, #tpu.memory_space<vmem>>, %arg18: memref<32x64xf32, #tpu.memory_space<vmem>>, %arg19: memref<1x64xf32, #tpu.memory_space<vmem>>, %arg20: memref<8x64xf32, #tpu.memory_space<vmem>>, %arg21: memref<32x64xf32, #tpu.memory_space<vmem>>, %arg22: memref<1x64xf32, #tpu.memory_space<vmem>>, %arg23: memref<1x64xf32, #tpu.memory_space<vmem>>, %arg24: memref<1x64xf32, #tpu.memory_space<vmem>>, %arg25: memref<64x64xf32, #tpu.memory_space<vmem>>, %arg26: memref<1x64xf32, #tpu.memory_space<vmem>>, %arg27: memref<64x64xf32, #tpu.memory_space<vmem>>, %arg28: memref<1x64xf32, #tpu.memory_space<vmem>>, %arg29: memref<64x64xf32, #tpu.memory_space<vmem>>, %arg30: memref<1x64xf32, #tpu.memory_space<vmem>>, %arg31: memref<8x64xf32, #tpu.memory_space<vmem>>, %arg32: memref<64x64xf32, #tpu.memory_space<vmem>>, %arg33: memref<1x64xf32, #tpu.memory_space<vmem>>, %arg34: memref<1x64xf32, #tpu.memory_space<vmem>>, %arg35: memref<1x64xf32, #tpu.memory_space<vmem>>, %arg36: memref<64x32xf32, #tpu.memory_space<vmem>>, %arg37: memref<1x32xf32, #tpu.memory_space<vmem>>, %arg38: memref<32x4xf32, #tpu.memory_space<vmem>>, %arg39: memref<1x4xf32, #tpu.memory_space<vmem>>, %arg40: memref<2x4xf32, #tpu.memory_space<vmem>>) attributes {dimension_semantics = [], scalar_prefetch = 0 : i64, scratch_operands = 0 : i64, tpu.core_type = #tpu.core_type<tc>} {
    %0 = tpu.iota {dimensions = array<i32: 1>} : vector<32x16xi32>
    %c0 = arith.constant 0 : index
    %c0_0 = arith.constant 0 : index
    %1 = vector.load %arg0[%c0, %c0_0] : memref<32x1xi32, #tpu.memory_space<vmem>>, vector<32x1xi32>
    %2 = vector.broadcast %1 : vector<32x1xi32> to vector<32x16xi32>
    %3 = arith.cmpi eq, %0, %2 : vector<32x16xi32>
    %cst = arith.constant 1.000000e+00 : f32
    %cst_1 = arith.constant 0.000000e+00 : f32
    %4 = vector.broadcast %cst : f32 to vector<32x16xf32>
    %5 = vector.broadcast %cst_1 : f32 to vector<32x16xf32>
    %6 = arith.select %3, %4, %5 : vector<32x16xi1>, vector<32x16xf32>
    %c0_2 = arith.constant 0 : index
    %c0_3 = arith.constant 0 : index
    %7 = vector.load %arg1[%c0_2, %c0_3] : memref<32x1xi32, #tpu.memory_space<vmem>>, vector<32x1xi32>
    %8 = vector.broadcast %7 : vector<32x1xi32> to vector<32x16xi32>
    %9 = arith.cmpi eq, %0, %8 : vector<32x16xi32>
    %cst_4 = arith.constant 1.000000e+00 : f32
    %cst_5 = arith.constant 0.000000e+00 : f32
    %10 = vector.broadcast %cst_4 : f32 to vector<32x16xf32>
    %11 = vector.broadcast %cst_5 : f32 to vector<32x16xf32>
    %12 = arith.select %9, %10, %11 : vector<32x16xi1>, vector<32x16xf32>
    %13 = tpu.iota {dimensions = array<i32: 0>} : vector<16x32xi32>
    %c0_6 = arith.constant 0 : index
    %c0_7 = arith.constant 0 : index
    %14 = vector.load %arg2[%c0_6, %c0_7] : memref<1x32xi32, #tpu.memory_space<vmem>>, vector<1x32xi32>
    %15 = vector.broadcast %14 : vector<1x32xi32> to vector<16x32xi32>
    %16 = arith.cmpi eq, %13, %15 : vector<16x32xi32>
    %cst_8 = arith.constant 1.000000e+00 : f32
    %cst_9 = arith.constant 0.000000e+00 : f32
    %17 = vector.broadcast %cst_8 : f32 to vector<16x32xf32>
    %18 = vector.broadcast %cst_9 : f32 to vector<16x32xf32>
    %19 = arith.select %16, %17, %18 : vector<16x32xi1>, vector<16x32xf32>
    %cst_10 = arith.constant dense<0.000000e+00> : vector<16x16xf32>
    %20 = tpu.matmul %19, %6, %cst_10 {dimension_numbers = #tpu.dot_dimension_numbers<[1], [0], [0], [1], [0, 0, 1, 1], [], []>} : vector<16x32xf32>, vector<32x16xf32>, vector<16x16xf32> -> vector<16x16xf32>
    %c0_11 = arith.constant 0 : index
    %c0_12 = arith.constant 0 : index
    %21 = vector.load %arg4[%c0_11, %c0_12] : memref<16x8xf32, #tpu.memory_space<vmem>>, vector<16x8xf32>
    %cst_13 = arith.constant dense<0.000000e+00> : vector<16x8xf32>
    %22 = tpu.matmul %20, %21, %cst_13 {dimension_numbers = #tpu.dot_dimension_numbers<[1], [0], [0], [1], [0, 0, 1, 1], [], []>} : vector<16x16xf32>, vector<16x8xf32>, vector<16x8xf32> -> vector<16x8xf32>
    %23 = arith.addf %21, %22 : vector<16x8xf32>
    %c0_14 = arith.constant 0 : index
    %c0_15 = arith.constant 0 : index
    %24 = vector.load %arg6[%c0_14, %c0_15] : memref<8x32xf32, #tpu.memory_space<vmem>>, vector<8x32xf32>
    %cst_16 = arith.constant dense<0.000000e+00> : vector<16x32xf32>
    %25 = tpu.matmul %23, %24, %cst_16 {dimension_numbers = #tpu.dot_dimension_numbers<[1], [0], [0], [1], [0, 0, 1, 1], [], []>} : vector<16x8xf32>, vector<8x32xf32>, vector<16x32xf32> -> vector<16x32xf32>
    %c0_17 = arith.constant 0 : index
    %c0_18 = arith.constant 0 : index
    %26 = vector.load %arg7[%c0_17, %c0_18] : memref<1x32xf32, #tpu.memory_space<vmem>>, vector<1x32xf32>
    %27 = vector.broadcast %26 : vector<1x32xf32> to vector<16x32xf32>
    %28 = arith.addf %25, %27 : vector<16x32xf32>
    %cst_19 = arith.constant 0.000000e+00 : f32
    %29 = vector.broadcast %cst_19 : f32 to vector<16x32xf32>
    %30 = arith.maximumf %28, %29 : vector<16x32xf32>
    %c0_20 = arith.constant 0 : index
    %c0_21 = arith.constant 0 : index
    %31 = vector.load %arg8[%c0_20, %c0_21] : memref<32x32xf32, #tpu.memory_space<vmem>>, vector<32x32xf32>
    %cst_22 = arith.constant dense<0.000000e+00> : vector<16x32xf32>
    %32 = tpu.matmul %30, %31, %cst_22 {dimension_numbers = #tpu.dot_dimension_numbers<[1], [0], [0], [1], [0, 0, 1, 1], [], []>} : vector<16x32xf32>, vector<32x32xf32>, vector<16x32xf32> -> vector<16x32xf32>
    %c0_23 = arith.constant 0 : index
    %c0_24 = arith.constant 0 : index
    %33 = vector.load %arg9[%c0_23, %c0_24] : memref<1x32xf32, #tpu.memory_space<vmem>>, vector<1x32xf32>
    %34 = vector.broadcast %33 : vector<1x32xf32> to vector<16x32xf32>
    %35 = arith.addf %32, %34 : vector<16x32xf32>
    %cst_25 = arith.constant dense<0.000000e+00> : vector<16x32xf32>
    %36 = tpu.matmul %20, %35, %cst_25 {dimension_numbers = #tpu.dot_dimension_numbers<[1], [0], [0], [1], [0, 0, 1, 1], [], []>} : vector<16x16xf32>, vector<16x32xf32>, vector<16x32xf32> -> vector<16x32xf32>
    %37 = arith.addf %35, %36 : vector<16x32xf32>
    %c0_26 = arith.constant 0 : index
    %c0_27 = arith.constant 0 : index
    %38 = vector.load %arg10[%c0_26, %c0_27] : memref<32x32xf32, #tpu.memory_space<vmem>>, vector<32x32xf32>
    %cst_28 = arith.constant dense<0.000000e+00> : vector<16x32xf32>
    %39 = tpu.matmul %37, %38, %cst_28 {dimension_numbers = #tpu.dot_dimension_numbers<[1], [0], [0], [1], [0, 0, 1, 1], [], []>} : vector<16x32xf32>, vector<32x32xf32>, vector<16x32xf32> -> vector<16x32xf32>
    %c0_29 = arith.constant 0 : index
    %c0_30 = arith.constant 0 : index
    %40 = vector.load %arg11[%c0_29, %c0_30] : memref<1x32xf32, #tpu.memory_space<vmem>>, vector<1x32xf32>
    %41 = vector.broadcast %40 : vector<1x32xf32> to vector<16x32xf32>
    %42 = arith.addf %39, %41 : vector<16x32xf32>
    %cst_31 = arith.constant 0.000000e+00 : f32
    %43 = vector.broadcast %cst_31 : f32 to vector<16x32xf32>
    %44 = arith.maximumf %42, %43 : vector<16x32xf32>
    %c0_32 = arith.constant 0 : index
    %c0_33 = arith.constant 0 : index
    %45 = vector.load %arg12[%c0_32, %c0_33] : memref<32x32xf32, #tpu.memory_space<vmem>>, vector<32x32xf32>
    %cst_34 = arith.constant dense<0.000000e+00> : vector<16x32xf32>
    %46 = tpu.matmul %44, %45, %cst_34 {dimension_numbers = #tpu.dot_dimension_numbers<[1], [0], [0], [1], [0, 0, 1, 1], [], []>} : vector<16x32xf32>, vector<32x32xf32>, vector<16x32xf32> -> vector<16x32xf32>
    %c0_35 = arith.constant 0 : index
    %c0_36 = arith.constant 0 : index
    %47 = vector.load %arg13[%c0_35, %c0_36] : memref<1x32xf32, #tpu.memory_space<vmem>>, vector<1x32xf32>
    %48 = vector.broadcast %47 : vector<1x32xf32> to vector<16x32xf32>
    %49 = arith.addf %46, %48 : vector<16x32xf32>
    %c0_37 = arith.constant 0 : index
    %c0_38 = arith.constant 0 : index
    %50 = vector.load %arg14[%c0_37, %c0_38] : memref<32x64xf32, #tpu.memory_space<vmem>>, vector<32x64xf32>
    %cst_39 = arith.constant dense<0.000000e+00> : vector<16x64xf32>
    %51 = tpu.matmul %49, %50, %cst_39 {dimension_numbers = #tpu.dot_dimension_numbers<[1], [0], [0], [1], [0, 0, 1, 1], [], []>} : vector<16x32xf32>, vector<32x64xf32>, vector<16x64xf32> -> vector<16x64xf32>
    %c0_40 = arith.constant 0 : index
    %c0_41 = arith.constant 0 : index
    %52 = vector.load %arg15[%c0_40, %c0_41] : memref<1x64xf32, #tpu.memory_space<vmem>>, vector<1x64xf32>
    %53 = vector.broadcast %52 : vector<1x64xf32> to vector<16x64xf32>
    %54 = arith.addf %51, %53 : vector<16x64xf32>
    %cst_42 = arith.constant 0.176776692 : f32
    %55 = vector.broadcast %cst_42 : f32 to vector<16x64xf32>
    %56 = arith.mulf %54, %55 : vector<16x64xf32>
    %c0_43 = arith.constant 0 : index
    %c0_44 = arith.constant 0 : index
    %57 = vector.load %arg16[%c0_43, %c0_44] : memref<32x64xf32, #tpu.memory_space<vmem>>, vector<32x64xf32>
    %cst_45 = arith.constant dense<0.000000e+00> : vector<16x64xf32>
    %58 = tpu.matmul %49, %57, %cst_45 {dimension_numbers = #tpu.dot_dimension_numbers<[1], [0], [0], [1], [0, 0, 1, 1], [], []>} : vector<16x32xf32>, vector<32x64xf32>, vector<16x64xf32> -> vector<16x64xf32>
    %c0_46 = arith.constant 0 : index
    %c0_47 = arith.constant 0 : index
    %59 = vector.load %arg17[%c0_46, %c0_47] : memref<1x64xf32, #tpu.memory_space<vmem>>, vector<1x64xf32>
    %60 = vector.broadcast %59 : vector<1x64xf32> to vector<16x64xf32>
    %61 = arith.addf %58, %60 : vector<16x64xf32>
    %c0_48 = arith.constant 0 : index
    %c0_49 = arith.constant 0 : index
    %62 = vector.load %arg18[%c0_48, %c0_49] : memref<32x64xf32, #tpu.memory_space<vmem>>, vector<32x64xf32>
    %cst_50 = arith.constant dense<0.000000e+00> : vector<16x64xf32>
    %63 = tpu.matmul %49, %62, %cst_50 {dimension_numbers = #tpu.dot_dimension_numbers<[1], [0], [0], [1], [0, 0, 1, 1], [], []>} : vector<16x32xf32>, vector<32x64xf32>, vector<16x64xf32> -> vector<16x64xf32>
    %c0_51 = arith.constant 0 : index
    %c0_52 = arith.constant 0 : index
    %64 = vector.load %arg19[%c0_51, %c0_52] : memref<1x64xf32, #tpu.memory_space<vmem>>, vector<1x64xf32>
    %65 = vector.broadcast %64 : vector<1x64xf32> to vector<16x64xf32>
    %66 = arith.addf %63, %65 : vector<16x64xf32>
    %c0_53 = arith.constant 0 : index
    %c0_54 = arith.constant 0 : index
    %67 = vector.load %arg5[%c0_53, %c0_54] : memref<32x8xf32, #tpu.memory_space<vmem>>, vector<32x8xf32>
    %c0_55 = arith.constant 0 : index
    %c0_56 = arith.constant 0 : index
    %68 = vector.load %arg20[%c0_55, %c0_56] : memref<8x64xf32, #tpu.memory_space<vmem>>, vector<8x64xf32>
    %cst_57 = arith.constant dense<0.000000e+00> : vector<32x64xf32>
    %69 = tpu.matmul %67, %68, %cst_57 {dimension_numbers = #tpu.dot_dimension_numbers<[1], [0], [0], [1], [0, 0, 1, 1], [], []>} : vector<32x8xf32>, vector<8x64xf32>, vector<32x64xf32> -> vector<32x64xf32>
    %cst_58 = arith.constant dense<0.000000e+00> : vector<32x64xf32>
    %70 = tpu.matmul %12, %56, %cst_58 {dimension_numbers = #tpu.dot_dimension_numbers<[1], [0], [0], [1], [0, 0, 1, 1], [], []>} : vector<32x16xf32>, vector<16x64xf32>, vector<32x64xf32> -> vector<32x64xf32>
    %cst_59 = arith.constant dense<0.000000e+00> : vector<32x64xf32>
    %71 = tpu.matmul %6, %61, %cst_59 {dimension_numbers = #tpu.dot_dimension_numbers<[1], [0], [0], [1], [0, 0, 1, 1], [], []>} : vector<32x16xf32>, vector<16x64xf32>, vector<32x64xf32> -> vector<32x64xf32>
    %72 = arith.addf %71, %69 : vector<32x64xf32>
    %cst_60 = arith.constant dense<0.000000e+00> : vector<32x64xf32>
    %73 = tpu.matmul %6, %66, %cst_60 {dimension_numbers = #tpu.dot_dimension_numbers<[1], [0], [0], [1], [0, 0, 1, 1], [], []>} : vector<32x16xf32>, vector<16x64xf32>, vector<32x64xf32> -> vector<32x64xf32>
    %74 = arith.addf %73, %69 : vector<32x64xf32>
    %75 = arith.mulf %70, %72 : vector<32x64xf32>
    %76 = vector.extract_strided_slice %75 {offsets = [0, 0], sizes = [32, 32], strides = [1, 1]} : vector<32x64xf32> to vector<32x32xf32>
    %cst_61 = arith.constant dense<0.000000e+00> : vector<32xf32>
    %77 = vector.multi_reduction <add>, %76, %cst_61 [1] : vector<32x32xf32> to vector<32xf32>
    %78 = vector.shape_cast %77 : vector<32xf32> to vector<32x1xf32>
    %79 = vector.broadcast %78 : vector<32x1xf32> to vector<32x16xf32>
    %80 = arith.mulf %79, %12 : vector<32x16xf32>
    %cst_62 = arith.constant 1.000000e+00 : f32
    %81 = vector.broadcast %cst_62 : f32 to vector<32x16xf32>
    %82 = arith.subf %12, %81 : vector<32x16xf32>
    %cst_63 = arith.constant 1.000000e+30 : f32
    %83 = vector.broadcast %cst_63 : f32 to vector<32x16xf32>
    %84 = arith.mulf %82, %83 : vector<32x16xf32>
    %85 = arith.addf %80, %84 : vector<32x16xf32>
    %cst_64 = arith.constant dense<0xFF800000> : vector<16xf32>
    %86 = vector.multi_reduction <maximumf>, %85, %cst_64 [0] : vector<32x16xf32> to vector<16xf32>
    %87 = vector.shape_cast %86 : vector<16xf32> to vector<1x16xf32>
    %88 = vector.broadcast %87 : vector<1x16xf32> to vector<32x16xf32>
    %89 = arith.mulf %12, %88 : vector<32x16xf32>
    %cst_65 = arith.constant dense<0.000000e+00> : vector<32xf32>
    %90 = vector.multi_reduction <add>, %89, %cst_65 [1] : vector<32x16xf32> to vector<32xf32>
    %91 = vector.shape_cast %90 : vector<32xf32> to vector<32x1xf32>
    %92 = arith.subf %78, %91 : vector<32x1xf32>
    %93 = math.exp %92 : vector<32x1xf32>
    %94 = vector.extract_strided_slice %75 {offsets = [0, 32], sizes = [32, 32], strides = [1, 1]} : vector<32x64xf32> to vector<32x32xf32>
    %cst_66 = arith.constant dense<0.000000e+00> : vector<32xf32>
    %95 = vector.multi_reduction <add>, %94, %cst_66 [1] : vector<32x32xf32> to vector<32xf32>
    %96 = vector.shape_cast %95 : vector<32xf32> to vector<32x1xf32>
    %97 = vector.broadcast %96 : vector<32x1xf32> to vector<32x16xf32>
    %98 = arith.mulf %97, %12 : vector<32x16xf32>
    %cst_67 = arith.constant 1.000000e+00 : f32
    %99 = vector.broadcast %cst_67 : f32 to vector<32x16xf32>
    %100 = arith.subf %12, %99 : vector<32x16xf32>
    %cst_68 = arith.constant 1.000000e+30 : f32
    %101 = vector.broadcast %cst_68 : f32 to vector<32x16xf32>
    %102 = arith.mulf %100, %101 : vector<32x16xf32>
    %103 = arith.addf %98, %102 : vector<32x16xf32>
    %cst_69 = arith.constant dense<0xFF800000> : vector<16xf32>
    %104 = vector.multi_reduction <maximumf>, %103, %cst_69 [0] : vector<32x16xf32> to vector<16xf32>
    %105 = vector.shape_cast %104 : vector<16xf32> to vector<1x16xf32>
    %106 = vector.broadcast %105 : vector<1x16xf32> to vector<32x16xf32>
    %107 = arith.mulf %12, %106 : vector<32x16xf32>
    %cst_70 = arith.constant dense<0.000000e+00> : vector<32xf32>
    %108 = vector.multi_reduction <add>, %107, %cst_70 [1] : vector<32x16xf32> to vector<32xf32>
    %109 = vector.shape_cast %108 : vector<32xf32> to vector<32x1xf32>
    %110 = arith.subf %96, %109 : vector<32x1xf32>
    %111 = math.exp %110 : vector<32x1xf32>
    %112 = tpu.concatenate %93, %111 in 1 : vector<32x1xf32>, vector<32x1xf32> -> vector<32x2xf32>
    %cst_71 = arith.constant dense<0.000000e+00> : vector<16x2xf32>
    %113 = tpu.matmul %19, %112, %cst_71 {dimension_numbers = #tpu.dot_dimension_numbers<[1], [0], [0], [1], [0, 0, 1, 1], [], []>} : vector<16x32xf32>, vector<32x2xf32>, vector<16x2xf32> -> vector<16x2xf32>
    %cst_72 = arith.constant dense<0.000000e+00> : vector<32x2xf32>
    %114 = tpu.matmul %12, %113, %cst_72 {dimension_numbers = #tpu.dot_dimension_numbers<[1], [0], [0], [1], [0, 0, 1, 1], [], []>} : vector<32x16xf32>, vector<16x2xf32>, vector<32x2xf32> -> vector<32x2xf32>
    %115 = arith.divf %112, %114 : vector<32x2xf32>
    %116 = vector.extract_strided_slice %74 {offsets = [0, 0], sizes = [32, 32], strides = [1, 1]} : vector<32x64xf32> to vector<32x32xf32>
    %117 = vector.extract_strided_slice %115 {offsets = [0, 0], sizes = [32, 1], strides = [1, 1]} : vector<32x2xf32> to vector<32x1xf32>
    %118 = vector.broadcast %117 : vector<32x1xf32> to vector<32x32xf32>
    %119 = arith.mulf %116, %118 : vector<32x32xf32>
    %120 = vector.extract_strided_slice %74 {offsets = [0, 32], sizes = [32, 32], strides = [1, 1]} : vector<32x64xf32> to vector<32x32xf32>
    %121 = vector.extract_strided_slice %115 {offsets = [0, 1], sizes = [32, 1], strides = [1, 1]} : vector<32x2xf32> to vector<32x1xf32>
    %122 = vector.broadcast %121 : vector<32x1xf32> to vector<32x32xf32>
    %123 = arith.mulf %120, %122 : vector<32x32xf32>
    %124 = tpu.concatenate %119, %123 in 1 : vector<32x32xf32>, vector<32x32xf32> -> vector<32x64xf32>
    %cst_73 = arith.constant dense<0.000000e+00> : vector<16x64xf32>
    %125 = tpu.matmul %19, %124, %cst_73 {dimension_numbers = #tpu.dot_dimension_numbers<[1], [0], [0], [1], [0, 0, 1, 1], [], []>} : vector<16x32xf32>, vector<32x64xf32>, vector<16x64xf32> -> vector<16x64xf32>
    %c0_74 = arith.constant 0 : index
    %c0_75 = arith.constant 0 : index
    %126 = vector.load %arg21[%c0_74, %c0_75] : memref<32x64xf32, #tpu.memory_space<vmem>>, vector<32x64xf32>
    %cst_76 = arith.constant dense<0.000000e+00> : vector<16x64xf32>
    %127 = tpu.matmul %49, %126, %cst_76 {dimension_numbers = #tpu.dot_dimension_numbers<[1], [0], [0], [1], [0, 0, 1, 1], [], []>} : vector<16x32xf32>, vector<32x64xf32>, vector<16x64xf32> -> vector<16x64xf32>
    %c0_77 = arith.constant 0 : index
    %c0_78 = arith.constant 0 : index
    %128 = vector.load %arg22[%c0_77, %c0_78] : memref<1x64xf32, #tpu.memory_space<vmem>>, vector<1x64xf32>
    %129 = vector.broadcast %128 : vector<1x64xf32> to vector<16x64xf32>
    %130 = arith.addf %127, %129 : vector<16x64xf32>
    %c0_79 = arith.constant 0 : index
    %c0_80 = arith.constant 0 : index
    %131 = vector.load %arg23[%c0_79, %c0_80] : memref<1x64xf32, #tpu.memory_space<vmem>>, vector<1x64xf32>
    %132 = vector.broadcast %131 : vector<1x64xf32> to vector<16x64xf32>
    %133 = arith.mulf %125, %132 : vector<16x64xf32>
    %c0_81 = arith.constant 0 : index
    %c0_82 = arith.constant 0 : index
    %134 = vector.load %arg24[%c0_81, %c0_82] : memref<1x64xf32, #tpu.memory_space<vmem>>, vector<1x64xf32>
    %135 = vector.broadcast %134 : vector<1x64xf32> to vector<16x64xf32>
    %136 = arith.mulf %130, %135 : vector<16x64xf32>
    %137 = arith.addf %133, %136 : vector<16x64xf32>
    %cst_83 = arith.constant dense<0.000000e+00> : vector<16xf32>
    %138 = vector.multi_reduction <add>, %137, %cst_83 [1] : vector<16x64xf32> to vector<16xf32>
    %139 = vector.shape_cast %138 : vector<16xf32> to vector<16x1xf32>
    %140 = arith.negf %139 : vector<16x1xf32>
    %141 = math.exp %140 : vector<16x1xf32>
    %cst_84 = arith.constant 1.000000e+00 : f32
    %142 = vector.broadcast %cst_84 : f32 to vector<16x1xf32>
    %143 = arith.addf %142, %141 : vector<16x1xf32>
    %144 = arith.divf %142, %143 : vector<16x1xf32>
    %145 = vector.broadcast %144 : vector<16x1xf32> to vector<16x64xf32>
    %146 = arith.mulf %145, %130 : vector<16x64xf32>
    %cst_85 = arith.constant 1.000000e+00 : f32
    %147 = vector.broadcast %cst_85 : f32 to vector<16x1xf32>
    %148 = arith.subf %147, %144 : vector<16x1xf32>
    %149 = vector.broadcast %148 : vector<16x1xf32> to vector<16x64xf32>
    %150 = arith.mulf %149, %125 : vector<16x64xf32>
    %151 = arith.addf %146, %150 : vector<16x64xf32>
    %c0_86 = arith.constant 0 : index
    %c0_87 = arith.constant 0 : index
    %152 = vector.load %arg25[%c0_86, %c0_87] : memref<64x64xf32, #tpu.memory_space<vmem>>, vector<64x64xf32>
    %cst_88 = arith.constant dense<0.000000e+00> : vector<16x64xf32>
    %153 = tpu.matmul %151, %152, %cst_88 {dimension_numbers = #tpu.dot_dimension_numbers<[1], [0], [0], [1], [0, 0, 1, 1], [], []>} : vector<16x64xf32>, vector<64x64xf32>, vector<16x64xf32> -> vector<16x64xf32>
    %c0_89 = arith.constant 0 : index
    %c0_90 = arith.constant 0 : index
    %154 = vector.load %arg26[%c0_89, %c0_90] : memref<1x64xf32, #tpu.memory_space<vmem>>, vector<1x64xf32>
    %155 = vector.broadcast %154 : vector<1x64xf32> to vector<16x64xf32>
    %156 = arith.addf %153, %155 : vector<16x64xf32>
    %cst_91 = arith.constant 0.176776692 : f32
    %157 = vector.broadcast %cst_91 : f32 to vector<16x64xf32>
    %158 = arith.mulf %156, %157 : vector<16x64xf32>
    %c0_92 = arith.constant 0 : index
    %c0_93 = arith.constant 0 : index
    %159 = vector.load %arg27[%c0_92, %c0_93] : memref<64x64xf32, #tpu.memory_space<vmem>>, vector<64x64xf32>
    %cst_94 = arith.constant dense<0.000000e+00> : vector<16x64xf32>
    %160 = tpu.matmul %151, %159, %cst_94 {dimension_numbers = #tpu.dot_dimension_numbers<[1], [0], [0], [1], [0, 0, 1, 1], [], []>} : vector<16x64xf32>, vector<64x64xf32>, vector<16x64xf32> -> vector<16x64xf32>
    %c0_95 = arith.constant 0 : index
    %c0_96 = arith.constant 0 : index
    %161 = vector.load %arg28[%c0_95, %c0_96] : memref<1x64xf32, #tpu.memory_space<vmem>>, vector<1x64xf32>
    %162 = vector.broadcast %161 : vector<1x64xf32> to vector<16x64xf32>
    %163 = arith.addf %160, %162 : vector<16x64xf32>
    %c0_97 = arith.constant 0 : index
    %c0_98 = arith.constant 0 : index
    %164 = vector.load %arg29[%c0_97, %c0_98] : memref<64x64xf32, #tpu.memory_space<vmem>>, vector<64x64xf32>
    %cst_99 = arith.constant dense<0.000000e+00> : vector<16x64xf32>
    %165 = tpu.matmul %151, %164, %cst_99 {dimension_numbers = #tpu.dot_dimension_numbers<[1], [0], [0], [1], [0, 0, 1, 1], [], []>} : vector<16x64xf32>, vector<64x64xf32>, vector<16x64xf32> -> vector<16x64xf32>
    %c0_100 = arith.constant 0 : index
    %c0_101 = arith.constant 0 : index
    %166 = vector.load %arg30[%c0_100, %c0_101] : memref<1x64xf32, #tpu.memory_space<vmem>>, vector<1x64xf32>
    %167 = vector.broadcast %166 : vector<1x64xf32> to vector<16x64xf32>
    %168 = arith.addf %165, %167 : vector<16x64xf32>
    %c0_102 = arith.constant 0 : index
    %c0_103 = arith.constant 0 : index
    %169 = vector.load %arg5[%c0_102, %c0_103] : memref<32x8xf32, #tpu.memory_space<vmem>>, vector<32x8xf32>
    %c0_104 = arith.constant 0 : index
    %c0_105 = arith.constant 0 : index
    %170 = vector.load %arg31[%c0_104, %c0_105] : memref<8x64xf32, #tpu.memory_space<vmem>>, vector<8x64xf32>
    %cst_106 = arith.constant dense<0.000000e+00> : vector<32x64xf32>
    %171 = tpu.matmul %169, %170, %cst_106 {dimension_numbers = #tpu.dot_dimension_numbers<[1], [0], [0], [1], [0, 0, 1, 1], [], []>} : vector<32x8xf32>, vector<8x64xf32>, vector<32x64xf32> -> vector<32x64xf32>
    %cst_107 = arith.constant dense<0.000000e+00> : vector<32x64xf32>
    %172 = tpu.matmul %12, %158, %cst_107 {dimension_numbers = #tpu.dot_dimension_numbers<[1], [0], [0], [1], [0, 0, 1, 1], [], []>} : vector<32x16xf32>, vector<16x64xf32>, vector<32x64xf32> -> vector<32x64xf32>
    %cst_108 = arith.constant dense<0.000000e+00> : vector<32x64xf32>
    %173 = tpu.matmul %6, %163, %cst_108 {dimension_numbers = #tpu.dot_dimension_numbers<[1], [0], [0], [1], [0, 0, 1, 1], [], []>} : vector<32x16xf32>, vector<16x64xf32>, vector<32x64xf32> -> vector<32x64xf32>
    %174 = arith.addf %173, %171 : vector<32x64xf32>
    %cst_109 = arith.constant dense<0.000000e+00> : vector<32x64xf32>
    %175 = tpu.matmul %6, %168, %cst_109 {dimension_numbers = #tpu.dot_dimension_numbers<[1], [0], [0], [1], [0, 0, 1, 1], [], []>} : vector<32x16xf32>, vector<16x64xf32>, vector<32x64xf32> -> vector<32x64xf32>
    %176 = arith.addf %175, %171 : vector<32x64xf32>
    %177 = arith.mulf %172, %174 : vector<32x64xf32>
    %178 = vector.extract_strided_slice %177 {offsets = [0, 0], sizes = [32, 32], strides = [1, 1]} : vector<32x64xf32> to vector<32x32xf32>
    %cst_110 = arith.constant dense<0.000000e+00> : vector<32xf32>
    %179 = vector.multi_reduction <add>, %178, %cst_110 [1] : vector<32x32xf32> to vector<32xf32>
    %180 = vector.shape_cast %179 : vector<32xf32> to vector<32x1xf32>
    %181 = vector.broadcast %180 : vector<32x1xf32> to vector<32x16xf32>
    %182 = arith.mulf %181, %12 : vector<32x16xf32>
    %cst_111 = arith.constant 1.000000e+00 : f32
    %183 = vector.broadcast %cst_111 : f32 to vector<32x16xf32>
    %184 = arith.subf %12, %183 : vector<32x16xf32>
    %cst_112 = arith.constant 1.000000e+30 : f32
    %185 = vector.broadcast %cst_112 : f32 to vector<32x16xf32>
    %186 = arith.mulf %184, %185 : vector<32x16xf32>
    %187 = arith.addf %182, %186 : vector<32x16xf32>
    %cst_113 = arith.constant dense<0xFF800000> : vector<16xf32>
    %188 = vector.multi_reduction <maximumf>, %187, %cst_113 [0] : vector<32x16xf32> to vector<16xf32>
    %189 = vector.shape_cast %188 : vector<16xf32> to vector<1x16xf32>
    %190 = vector.broadcast %189 : vector<1x16xf32> to vector<32x16xf32>
    %191 = arith.mulf %12, %190 : vector<32x16xf32>
    %cst_114 = arith.constant dense<0.000000e+00> : vector<32xf32>
    %192 = vector.multi_reduction <add>, %191, %cst_114 [1] : vector<32x16xf32> to vector<32xf32>
    %193 = vector.shape_cast %192 : vector<32xf32> to vector<32x1xf32>
    %194 = arith.subf %180, %193 : vector<32x1xf32>
    %195 = math.exp %194 : vector<32x1xf32>
    %196 = vector.extract_strided_slice %177 {offsets = [0, 32], sizes = [32, 32], strides = [1, 1]} : vector<32x64xf32> to vector<32x32xf32>
    %cst_115 = arith.constant dense<0.000000e+00> : vector<32xf32>
    %197 = vector.multi_reduction <add>, %196, %cst_115 [1] : vector<32x32xf32> to vector<32xf32>
    %198 = vector.shape_cast %197 : vector<32xf32> to vector<32x1xf32>
    %199 = vector.broadcast %198 : vector<32x1xf32> to vector<32x16xf32>
    %200 = arith.mulf %199, %12 : vector<32x16xf32>
    %cst_116 = arith.constant 1.000000e+00 : f32
    %201 = vector.broadcast %cst_116 : f32 to vector<32x16xf32>
    %202 = arith.subf %12, %201 : vector<32x16xf32>
    %cst_117 = arith.constant 1.000000e+30 : f32
    %203 = vector.broadcast %cst_117 : f32 to vector<32x16xf32>
    %204 = arith.mulf %202, %203 : vector<32x16xf32>
    %205 = arith.addf %200, %204 : vector<32x16xf32>
    %cst_118 = arith.constant dense<0xFF800000> : vector<16xf32>
    %206 = vector.multi_reduction <maximumf>, %205, %cst_118 [0] : vector<32x16xf32> to vector<16xf32>
    %207 = vector.shape_cast %206 : vector<16xf32> to vector<1x16xf32>
    %208 = vector.broadcast %207 : vector<1x16xf32> to vector<32x16xf32>
    %209 = arith.mulf %12, %208 : vector<32x16xf32>
    %cst_119 = arith.constant dense<0.000000e+00> : vector<32xf32>
    %210 = vector.multi_reduction <add>, %209, %cst_119 [1] : vector<32x16xf32> to vector<32xf32>
    %211 = vector.shape_cast %210 : vector<32xf32> to vector<32x1xf32>
    %212 = arith.subf %198, %211 : vector<32x1xf32>
    %213 = math.exp %212 : vector<32x1xf32>
    %214 = tpu.concatenate %195, %213 in 1 : vector<32x1xf32>, vector<32x1xf32> -> vector<32x2xf32>
    %cst_120 = arith.constant dense<0.000000e+00> : vector<16x2xf32>
    %215 = tpu.matmul %19, %214, %cst_120 {dimension_numbers = #tpu.dot_dimension_numbers<[1], [0], [0], [1], [0, 0, 1, 1], [], []>} : vector<16x32xf32>, vector<32x2xf32>, vector<16x2xf32> -> vector<16x2xf32>
    %cst_121 = arith.constant dense<0.000000e+00> : vector<32x2xf32>
    %216 = tpu.matmul %12, %215, %cst_121 {dimension_numbers = #tpu.dot_dimension_numbers<[1], [0], [0], [1], [0, 0, 1, 1], [], []>} : vector<32x16xf32>, vector<16x2xf32>, vector<32x2xf32> -> vector<32x2xf32>
    %217 = arith.divf %214, %216 : vector<32x2xf32>
    %218 = vector.extract_strided_slice %176 {offsets = [0, 0], sizes = [32, 32], strides = [1, 1]} : vector<32x64xf32> to vector<32x32xf32>
    %219 = vector.extract_strided_slice %217 {offsets = [0, 0], sizes = [32, 1], strides = [1, 1]} : vector<32x2xf32> to vector<32x1xf32>
    %220 = vector.broadcast %219 : vector<32x1xf32> to vector<32x32xf32>
    %221 = arith.mulf %218, %220 : vector<32x32xf32>
    %222 = vector.extract_strided_slice %176 {offsets = [0, 32], sizes = [32, 32], strides = [1, 1]} : vector<32x64xf32> to vector<32x32xf32>
    %223 = vector.extract_strided_slice %217 {offsets = [0, 1], sizes = [32, 1], strides = [1, 1]} : vector<32x2xf32> to vector<32x1xf32>
    %224 = vector.broadcast %223 : vector<32x1xf32> to vector<32x32xf32>
    %225 = arith.mulf %222, %224 : vector<32x32xf32>
    %226 = tpu.concatenate %221, %225 in 1 : vector<32x32xf32>, vector<32x32xf32> -> vector<32x64xf32>
    %cst_122 = arith.constant dense<0.000000e+00> : vector<16x64xf32>
    %227 = tpu.matmul %19, %226, %cst_122 {dimension_numbers = #tpu.dot_dimension_numbers<[1], [0], [0], [1], [0, 0, 1, 1], [], []>} : vector<16x32xf32>, vector<32x64xf32>, vector<16x64xf32> -> vector<16x64xf32>
    %c0_123 = arith.constant 0 : index
    %c0_124 = arith.constant 0 : index
    %228 = vector.load %arg32[%c0_123, %c0_124] : memref<64x64xf32, #tpu.memory_space<vmem>>, vector<64x64xf32>
    %cst_125 = arith.constant dense<0.000000e+00> : vector<16x64xf32>
    %229 = tpu.matmul %151, %228, %cst_125 {dimension_numbers = #tpu.dot_dimension_numbers<[1], [0], [0], [1], [0, 0, 1, 1], [], []>} : vector<16x64xf32>, vector<64x64xf32>, vector<16x64xf32> -> vector<16x64xf32>
    %c0_126 = arith.constant 0 : index
    %c0_127 = arith.constant 0 : index
    %230 = vector.load %arg33[%c0_126, %c0_127] : memref<1x64xf32, #tpu.memory_space<vmem>>, vector<1x64xf32>
    %231 = vector.broadcast %230 : vector<1x64xf32> to vector<16x64xf32>
    %232 = arith.addf %229, %231 : vector<16x64xf32>
    %c0_128 = arith.constant 0 : index
    %c0_129 = arith.constant 0 : index
    %233 = vector.load %arg34[%c0_128, %c0_129] : memref<1x64xf32, #tpu.memory_space<vmem>>, vector<1x64xf32>
    %234 = vector.broadcast %233 : vector<1x64xf32> to vector<16x64xf32>
    %235 = arith.mulf %227, %234 : vector<16x64xf32>
    %c0_130 = arith.constant 0 : index
    %c0_131 = arith.constant 0 : index
    %236 = vector.load %arg35[%c0_130, %c0_131] : memref<1x64xf32, #tpu.memory_space<vmem>>, vector<1x64xf32>
    %237 = vector.broadcast %236 : vector<1x64xf32> to vector<16x64xf32>
    %238 = arith.mulf %232, %237 : vector<16x64xf32>
    %239 = arith.addf %235, %238 : vector<16x64xf32>
    %cst_132 = arith.constant dense<0.000000e+00> : vector<16xf32>
    %240 = vector.multi_reduction <add>, %239, %cst_132 [1] : vector<16x64xf32> to vector<16xf32>
    %241 = vector.shape_cast %240 : vector<16xf32> to vector<16x1xf32>
    %242 = arith.negf %241 : vector<16x1xf32>
    %243 = math.exp %242 : vector<16x1xf32>
    %cst_133 = arith.constant 1.000000e+00 : f32
    %244 = vector.broadcast %cst_133 : f32 to vector<16x1xf32>
    %245 = arith.addf %244, %243 : vector<16x1xf32>
    %246 = arith.divf %244, %245 : vector<16x1xf32>
    %247 = vector.broadcast %246 : vector<16x1xf32> to vector<16x64xf32>
    %248 = arith.mulf %247, %232 : vector<16x64xf32>
    %cst_134 = arith.constant 1.000000e+00 : f32
    %249 = vector.broadcast %cst_134 : f32 to vector<16x1xf32>
    %250 = arith.subf %249, %246 : vector<16x1xf32>
    %251 = vector.broadcast %250 : vector<16x1xf32> to vector<16x64xf32>
    %252 = arith.mulf %251, %227 : vector<16x64xf32>
    %253 = arith.addf %248, %252 : vector<16x64xf32>
    %254 = tpu.iota {dimensions = array<i32: 0>} : vector<2x16xi32>
    %c0_135 = arith.constant 0 : index
    %c0_136 = arith.constant 0 : index
    %255 = vector.load %arg3[%c0_135, %c0_136] : memref<1x16xi32, #tpu.memory_space<vmem>>, vector<1x16xi32>
    %256 = vector.broadcast %255 : vector<1x16xi32> to vector<2x16xi32>
    %257 = arith.cmpi eq, %254, %256 : vector<2x16xi32>
    %cst_137 = arith.constant 1.000000e+00 : f32
    %cst_138 = arith.constant 0.000000e+00 : f32
    %258 = vector.broadcast %cst_137 : f32 to vector<2x16xf32>
    %259 = vector.broadcast %cst_138 : f32 to vector<2x16xf32>
    %260 = arith.select %257, %258, %259 : vector<2x16xi1>, vector<2x16xf32>
    %cst_139 = arith.constant dense<0.000000e+00> : vector<2xf32>
    %261 = vector.multi_reduction <add>, %260, %cst_139 [1] : vector<2x16xf32> to vector<2xf32>
    %262 = vector.shape_cast %261 : vector<2xf32> to vector<2x1xf32>
    %cst_140 = arith.constant 1.000000e+00 : f32
    %263 = vector.broadcast %cst_140 : f32 to vector<2x1xf32>
    %264 = arith.maximumf %262, %263 : vector<2x1xf32>
    %265 = vector.broadcast %264 : vector<2x1xf32> to vector<2x16xf32>
    %266 = arith.divf %260, %265 : vector<2x16xf32>
    %cst_141 = arith.constant dense<0.000000e+00> : vector<2x64xf32>
    %267 = tpu.matmul %266, %253, %cst_141 {dimension_numbers = #tpu.dot_dimension_numbers<[1], [0], [0], [1], [0, 0, 1, 1], [], []>} : vector<2x16xf32>, vector<16x64xf32>, vector<2x64xf32> -> vector<2x64xf32>
    %c0_142 = arith.constant 0 : index
    %c0_143 = arith.constant 0 : index
    %268 = vector.load %arg36[%c0_142, %c0_143] : memref<64x32xf32, #tpu.memory_space<vmem>>, vector<64x32xf32>
    %cst_144 = arith.constant dense<0.000000e+00> : vector<2x32xf32>
    %269 = tpu.matmul %267, %268, %cst_144 {dimension_numbers = #tpu.dot_dimension_numbers<[1], [0], [0], [1], [0, 0, 1, 1], [], []>} : vector<2x64xf32>, vector<64x32xf32>, vector<2x32xf32> -> vector<2x32xf32>
    %c0_145 = arith.constant 0 : index
    %c0_146 = arith.constant 0 : index
    %270 = vector.load %arg37[%c0_145, %c0_146] : memref<1x32xf32, #tpu.memory_space<vmem>>, vector<1x32xf32>
    %271 = vector.broadcast %270 : vector<1x32xf32> to vector<2x32xf32>
    %272 = arith.addf %269, %271 : vector<2x32xf32>
    %cst_147 = arith.constant 0.000000e+00 : f32
    %273 = vector.broadcast %cst_147 : f32 to vector<2x32xf32>
    %274 = arith.maximumf %272, %273 : vector<2x32xf32>
    %c0_148 = arith.constant 0 : index
    %c0_149 = arith.constant 0 : index
    %275 = vector.load %arg38[%c0_148, %c0_149] : memref<32x4xf32, #tpu.memory_space<vmem>>, vector<32x4xf32>
    %cst_150 = arith.constant dense<0.000000e+00> : vector<2x4xf32>
    %276 = tpu.matmul %274, %275, %cst_150 {dimension_numbers = #tpu.dot_dimension_numbers<[1], [0], [0], [1], [0, 0, 1, 1], [], []>} : vector<2x32xf32>, vector<32x4xf32>, vector<2x4xf32> -> vector<2x4xf32>
    %c0_151 = arith.constant 0 : index
    %c0_152 = arith.constant 0 : index
    %277 = vector.load %arg39[%c0_151, %c0_152] : memref<1x4xf32, #tpu.memory_space<vmem>>, vector<1x4xf32>
    %278 = vector.broadcast %277 : vector<1x4xf32> to vector<2x4xf32>
    %279 = arith.addf %276, %278 : vector<2x4xf32>
    %c0_153 = arith.constant 0 : index
    %c0_154 = arith.constant 0 : index
    %280 = vector.load %arg40[%c0_153, %c0_154] : memref<2x4xf32, #tpu.memory_space<vmem>>, vector<2x4xf32>
    tpu.vector_store %arg40[%c0_153, %c0_154], %279 {strides = array<i32>} : memref<2x4xf32, #tpu.memory_space<vmem>>, vector<2x4xf32>,
    return
  }
}

</mosaic_0001>

<llo_original>
// kernel: tpu_custom_call.1
$region0: #{tpu_custom_call.1}
  #allocation0 [shape = 'u32[]', space=smem, size = 0x4, offset = 0x4, fixed_abs, tag = 'smem constant byte address 0x4 - core index']
  #allocation1 [shape = 'u32[144,128]{1,0:T(1,128)}', space=vmem, size = 0x12000, scoped, tag = 'internal scratch']
  %s0 = inlined_call_operand.smem [shape: u32[41], index: -1, kind: input, shape index: {}]
  %s1 = sld [smem:[%s0]]
  %s2 = scalar_lea.smem %s0, 1
  %s3 = sld [smem:[%s2]]
  %s4 = scalar_lea.smem %s0, 2
  %s5 = sld [smem:[%s4]]
  %s6 = scalar_lea.smem %s0, 3
  %s7 = sld [smem:[%s6]]
  %s8 = scalar_lea.smem %s0, 4
  %s9 = sld [smem:[%s8]]
  %s10 = scalar_lea.smem %s0, 5
  %s11 = sld [smem:[%s10]]
  %s12 = scalar_lea.smem %s0, 6
  %s13 = sld [smem:[%s12]]
  %s14 = scalar_lea.smem %s0, 7
  %s15 = sld [smem:[%s14]]
  %s16 = scalar_lea.smem %s0, 8
  %s17 = sld [smem:[%s16]]
  %s18 = scalar_lea.smem %s0, 9
  %s19 = sld [smem:[%s18]]
  %s20 = scalar_lea.smem %s0, 10
  %s21 = sld [smem:[%s20]]
  %s22 = scalar_lea.smem %s0, 11
  %s23 = sld [smem:[%s22]]
  %s24 = scalar_lea.smem %s0, 12
  %s25 = sld [smem:[%s24]]
  %s26 = scalar_lea.smem %s0, 13
  %s27 = sld [smem:[%s26]]
  %s28 = scalar_lea.smem %s0, 14
  %s29 = sld [smem:[%s28]]
  %s30 = scalar_lea.smem %s0, 15
  %s31 = sld [smem:[%s30]]
  %s32 = scalar_lea.smem %s0, 16
  %s33 = sld [smem:[%s32]]
  %s34 = scalar_lea.smem %s0, 17
  %s35 = sld [smem:[%s34]]
  %s36 = scalar_lea.smem %s0, 18
  %s37 = sld [smem:[%s36]]
  %s38 = scalar_lea.smem %s0, 19
  %s39 = sld [smem:[%s38]]
  %s40 = scalar_lea.smem %s0, 20
  %s41 = sld [smem:[%s40]]
  %s42 = scalar_lea.smem %s0, 21
  %s43 = sld [smem:[%s42]]
  %s44 = scalar_lea.smem %s0, 22
  %s45 = sld [smem:[%s44]]
  %s46 = scalar_lea.smem %s0, 23
  %s47 = sld [smem:[%s46]]
  %s48 = scalar_lea.smem %s0, 24
  %s49 = sld [smem:[%s48]]
  %s50 = scalar_lea.smem %s0, 25
  %s51 = sld [smem:[%s50]]
  %s52 = scalar_lea.smem %s0, 26
  %s53 = sld [smem:[%s52]]
  %s54 = scalar_lea.smem %s0, 27
  %s55 = sld [smem:[%s54]]
  %s56 = scalar_lea.smem %s0, 28
  %s57 = sld [smem:[%s56]]
  %s58 = scalar_lea.smem %s0, 29
  %s59 = sld [smem:[%s58]]
  %s60 = scalar_lea.smem %s0, 30
  %s61 = sld [smem:[%s60]]
  %s62 = scalar_lea.smem %s0, 31
  %s63 = sld [smem:[%s62]]
  %s64 = scalar_lea.smem %s0, 32
  %s65 = sld [smem:[%s64]]
  %s66 = scalar_lea.smem %s0, 33
  %s67 = sld [smem:[%s66]]
  %s68 = scalar_lea.smem %s0, 34
  %s69 = sld [smem:[%s68]]
  %s70 = scalar_lea.smem %s0, 35
  %s71 = sld [smem:[%s70]]
  %s72 = scalar_lea.smem %s0, 36
  %s73 = sld [smem:[%s72]]
  %s74 = scalar_lea.smem %s0, 37
  %s75 = sld [smem:[%s74]]
  %s76 = scalar_lea.smem %s0, 38
  %s77 = sld [smem:[%s76]]
  %s78 = scalar_lea.smem %s0, 39
  %s79 = sld [smem:[%s78]]
  %s80 = scalar_lea.smem %s0, 40
  %s81 = sld [smem:[%s80]]
  %s82 = sld [smem:[#allocation0]]
  $region230: #{tpu_custom_call.1} parent=0
    _
  %s84 = ssub.s32 1, %s82
  %s85 = scalar_select 0, %s84, %s82
  $region1: #{tpu_custom_call.1} parent=0
    #allocation2 [shape = 'u8[512]{0}', space=vmem, size = 0x400, scoped, tag = 'input window, operand 2, single buffered']
    #allocation3 [shape = 's32[1]{0}', space=sflag, size = 0x4, scoped, tag = 'scoped memory for tpu_custom_call.1']
    #allocation4 [shape = 's32[1]{0}', space=sflag, size = 0x4, scoped, tag = 'scoped memory for tpu_custom_call.1']
    #allocation5 [shape = 'u8[512]{0}', space=vmem, size = 0x400, scoped, tag = 'input window, operand 3, single buffered']
    #allocation6 [shape = 's32[1]{0}', space=sflag, size = 0x4, scoped, tag = 'scoped memory for tpu_custom_call.1']
    #allocation7 [shape = 'u8[4096]{0}', space=vmem, size = 0x1000, scoped, tag = 'input window, operand 6, single buffered']
    #allocation8 [shape = 'u8[512]{0}', space=vmem, size = 0x400, scoped, tag = 'input window, operand 7, single buffered']
    #allocation9 [shape = 's32[1]{0}', space=sflag, size = 0x4, scoped, tag = 'scoped memory for tpu_custom_call.1']
    #allocation10 [shape = 'u8[16384]{0}', space=vmem, size = 0x4000, scoped, tag = 'input window, operand 8, single buffered']
    #allocation11 [shape = 'u8[16384]{0}', space=vmem, size = 0x4000, scoped, tag = 'input window, operand 10, single buffered']
    #allocation12 [shape = 's32[1]{0}', space=sflag, size = 0x4, scoped, tag = 'scoped memory for tpu_custom_call.1']
    #allocation13 [shape = 'u8[512]{0}', space=vmem, size = 0x400, scoped, tag = 'input window, operand 11, single buffered']
    #allocation14 [shape = 'u8[16384]{0}', space=vmem, size = 0x4000, scoped, tag = 'input window, operand 12, single buffered']
    #allocation15 [shape = 's32[1]{0}', space=sflag, size = 0x4, scoped, tag = 'scoped memory for tpu_custom_call.1']
    #allocation16 [shape = 'u8[512]{0}', space=vmem, size = 0x400, scoped, tag = 'input window, operand 13, single buffered']
    #allocation17 [shape = 'u8[16384]{0}', space=vmem, size = 0x4000, scoped, tag = 'input window, operand 14, single buffered']
    #allocation18 [shape = 's32[1]{0}', space=sflag, size = 0x4, scoped, tag = 'scoped memory for tpu_custom_call.1']
    #allocation19 [shape = 'u8[512]{0}', space=vmem, size = 0x400, scoped, tag = 'input window, operand 15, single buffered']
    #allocation20 [shape = 'u8[512]{0}', space=vmem, size = 0x400, scoped, tag = 'input window, operand 17, single buffered']
    #allocation21 [shape = 's32[1]{0}', space=sflag, size = 0x4, scoped, tag = 'scoped memory for tpu_custom_call.1']
    #allocation22 [shape = 'u8[16384]{0}', space=vmem, size = 0x4000, scoped, tag = 'input window, operand 18, single buffered']
    #allocation23 [shape = 'u8[512]{0}', space=vmem, size = 0x400, scoped, tag = 'input window, operand 19, single buffered']
    #allocation24 [shape = 's32[1]{0}', space=sflag, size = 0x4, scoped, tag = 'scoped memory for tpu_custom_call.1']
    #allocation25 [shape = 'u8[16384]{0}', space=vmem, size = 0x4000, scoped, tag = 'input window, operand 21, single buffered']
    #allocation26 [shape = 'u8[1024]{0}', space=vmem, size = 0x400, scoped, tag = 'output window, operand 0, single buffered']
    %86 = vsyncpa [#allocation3], 0
    %87 = vsyncpa [#allocation6], 0
    %88 = vsyncpa [#allocation9], 0
    %89 = vsyncpa [#allocation12], 0
    %90 = vsyncpa [#allocation15], 0
    %91 = vsyncpa [#allocation18], 0
    %92 = vsyncpa [#allocation21], 0
    %93 = vsyncpa [#allocation24], 0
    %94 = vsyncpa [#allocation4], 0
    // Predicated region
    $region2: #{tpu_custom_call.1} parent=1 // pred_check
      _
    $region3: #{tpu_custom_call.1} parent=1 // pred_check_branch
      %96 = sbr.rel (0) target = $region5
    $region4: #{tpu_custom_call.1} parent=1 // pred_region
      _
    $region5: #{tpu_custom_call.1} parent=1 // pred_fallthru
      _
    // Predicated region
    $region6: #{tpu_custom_call.1} parent=1 // pred_check
      _
    $region7: #{tpu_custom_call.1} parent=1 // pred_check_branch
      %98 = sbr.rel (0) target = $region9
    $region8: #{tpu_custom_call.1} parent=1 // pred_region
      _
    $region9: #{tpu_custom_call.1} parent=1 // pred_fallthru
      _
    // Predicated region
    $region10: #{tpu_custom_call.1} parent=1 // pred_check
      _
    $region11: #{tpu_custom_call.1} parent=1 // pred_check_branch
      %100 = sbr.rel (0) target = $region13
    $region12: #{tpu_custom_call.1} parent=1 // pred_region
      %s102 = ssub.s32 16, 16
      %103 = vsyncadd [#allocation3], %s102
      %s105 = sshll.u32 [#allocation2], 4
      %s106 = int_to_ptr.vmem [resolvable:$true] %s105
      %108 = dma.hbm_to_vmem [thread:$0]  %s5, 16, %s106, [#allocation3]
    $region13: #{tpu_custom_call.1} parent=1 // pred_fallthru
      _
    // Predicated region
    $region14: #{tpu_custom_call.1} parent=1 // pred_check
      _
    $region15: #{tpu_custom_call.1} parent=1 // pred_check_branch
      %110 = sbr.rel (0) target = $region17
    $region16: #{tpu_custom_call.1} parent=1 // pred_region
      %s112 = ssub.s32 16, 16
      %113 = vsyncadd [#allocation6], %s112
      %s115 = sshll.u32 [#allocation5], 4
      %s116 = int_to_ptr.vmem [resolvable:$true] %s115
      %118 = dma.hbm_to_vmem [thread:$0]  %s7, 16, %s116, [#allocation6]
    $region17: #{tpu_custom_call.1} parent=1 // pred_fallthru
      _
    // Predicated region
    $region18: #{tpu_custom_call.1} parent=1 // pred_check
      _
    $region19: #{tpu_custom_call.1} parent=1 // pred_check_branch
      %120 = sbr.rel (0) target = $region21
    $region20: #{tpu_custom_call.1} parent=1 // pred_region
      _
    $region21: #{tpu_custom_call.1} parent=1 // pred_fallthru
      _
    // Predicated region
    $region22: #{tpu_custom_call.1} parent=1 // pred_check
      _
    $region23: #{tpu_custom_call.1} parent=1 // pred_check_branch
      %122 = sbr.rel (0) target = $region25
    $region24: #{tpu_custom_call.1} parent=1 // pred_region
      _
    $region25: #{tpu_custom_call.1} parent=1 // pred_fallthru
      _
    // Predicated region
    $region26: #{tpu_custom_call.1} parent=1 // pred_check
      _
    $region27: #{tpu_custom_call.1} parent=1 // pred_check_branch
      %124 = sbr.rel (0) target = $region29
    $region28: #{tpu_custom_call.1} parent=1 // pred_region
      %s126 = ssub.s32 128, 128
      %127 = vsyncadd [#allocation6], %s126
      %s129 = sshll.u32 [#allocation7], 4
      %s130 = int_to_ptr.vmem [resolvable:$true] %s129
      %132 = dma.hbm_to_vmem [thread:$0]  %s13, 128, %s130, [#allocation6]
    $region29: #{tpu_custom_call.1} parent=1 // pred_fallthru
      _
    // Predicated region
    $region30: #{tpu_custom_call.1} parent=1 // pred_check
      _
    $region31: #{tpu_custom_call.1} parent=1 // pred_check_branch
      %134 = sbr.rel (0) target = $region33
    $region32: #{tpu_custom_call.1} parent=1 // pred_region
      %s136 = ssub.s32 16, 16
      %137 = vsyncadd [#allocation9], %s136
      %s139 = sshll.u32 [#allocation8], 4
      %s140 = int_to_ptr.vmem [resolvable:$true] %s139
      %142 = dma.hbm_to_vmem [thread:$0]  %s15, 16, %s140, [#allocation9]
    $region33: #{tpu_custom_call.1} parent=1 // pred_fallthru
      _
    // Predicated region
    $region34: #{tpu_custom_call.1} parent=1 // pred_check
      _
    $region35: #{tpu_custom_call.1} parent=1 // pred_check_branch
      %144 = sbr.rel (0) target = $region37
    $region36: #{tpu_custom_call.1} parent=1 // pred_region
      %s146 = ssub.s32 512, 512
      %147 = vsyncadd [#allocation9], %s146
      %s148 = sshll.u32 [#allocation10], 4
      %s149 = int_to_ptr.vmem [resolvable:$true] %s148
      %154 = dma.hbm_to_vmem [thread:$0]  %s17, 512, %s149, [#allocation9], 128, 128, 8
    $region37: #{tpu_custom_call.1} parent=1 // pred_fallthru
      _
    // Predicated region
    $region38: #{tpu_custom_call.1} parent=1 // pred_check
      _
    $region39: #{tpu_custom_call.1} parent=1 // pred_check_branch
      %156 = sbr.rel (0) target = $region41
    $region40: #{tpu_custom_call.1} parent=1 // pred_region
      _
    $region41: #{tpu_custom_call.1} parent=1 // pred_fallthru
      _
    // Predicated region
    $region42: #{tpu_custom_call.1} parent=1 // pred_check
      _
    $region43: #{tpu_custom_call.1} parent=1 // pred_check_branch
      %158 = sbr.rel (0) target = $region45
    $region44: #{tpu_custom_call.1} parent=1 // pred_region
      %s160 = ssub.s32 512, 512
      %161 = vsyncadd [#allocation12], %s160
      %s162 = sshll.u32 [#allocation11], 4
      %s163 = int_to_ptr.vmem [resolvable:$true] %s162
      %168 = dma.hbm_to_vmem [thread:$0]  %s21, 512, %s163, [#allocation12], 128, 128, 8
    $region45: #{tpu_custom_call.1} parent=1 // pred_fallthru
      _
    // Predicated region
    $region46: #{tpu_custom_call.1} parent=1 // pred_check
      _
    $region47: #{tpu_custom_call.1} parent=1 // pred_check_branch
      %170 = sbr.rel (0) target = $region49
    $region48: #{tpu_custom_call.1} parent=1 // pred_region
      %s172 = ssub.s32 16, 16
      %173 = vsyncadd [#allocation12], %s172
      %s175 = sshll.u32 [#allocation13], 4
      %s176 = int_to_ptr.vmem [resolvable:$true] %s175
      %178 = dma.hbm_to_vmem [thread:$0]  %s23, 16, %s176, [#allocation12]
    $region49: #{tpu_custom_call.1} parent=1 // pred_fallthru
      _
    // Predicated region
    $region50: #{tpu_custom_call.1} parent=1 // pred_check
      _
    $region51: #{tpu_custom_call.1} parent=1 // pred_check_branch
      %180 = sbr.rel (0) target = $region53
    $region52: #{tpu_custom_call.1} parent=1 // pred_region
      %s182 = ssub.s32 512, 512
      %183 = vsyncadd [#allocation15], %s182
      %s184 = sshll.u32 [#allocation14], 4
      %s185 = int_to_ptr.vmem [resolvable:$true] %s184
      %190 = dma.hbm_to_vmem [thread:$0]  %s25, 512, %s185, [#allocation15], 128, 128, 8
    $region53: #{tpu_custom_call.1} parent=1 // pred_fallthru
      _
    // Predicated region
    $region54: #{tpu_custom_call.1} parent=1 // pred_check
      _
    $region55: #{tpu_custom_call.1} parent=1 // pred_check_branch
      %192 = sbr.rel (0) target = $region57
    $region56: #{tpu_custom_call.1} parent=1 // pred_region
      %s194 = ssub.s32 16, 16
      %195 = vsyncadd [#allocation15], %s194
      %s197 = sshll.u32 [#allocation16], 4
      %s198 = int_to_ptr.vmem [resolvable:$true] %s197
      %200 = dma.hbm_to_vmem [thread:$0]  %s27, 16, %s198, [#allocation15]
    $region57: #{tpu_custom_call.1} parent=1 // pred_fallthru
      _
    // Predicated region
    $region58: #{tpu_custom_call.1} parent=1 // pred_check
      _
    $region59: #{tpu_custom_call.1} parent=1 // pred_check_branch
      %202 = sbr.rel (0) target = $region61
    $region60: #{tpu_custom_call.1} parent=1 // pred_region
      %s204 = ssub.s32 512, 512
      %205 = vsyncadd [#allocation18], %s204
      %s206 = sshll.u32 [#allocation17], 4
      %s207 = int_to_ptr.vmem [resolvable:$true] %s206
      %212 = dma.hbm_to_vmem [thread:$0]  %s29, 512, %s207, [#allocation18], 128, 128, 8
    $region61: #{tpu_custom_call.1} parent=1 // pred_fallthru
      _
    // Predicated region
    $region62: #{tpu_custom_call.1} parent=1 // pred_check
      _
    $region63: #{tpu_custom_call.1} parent=1 // pred_check_branch
      %214 = sbr.rel (0) target = $region65
    $region64: #{tpu_custom_call.1} parent=1 // pred_region
      %s216 = ssub.s32 16, 16
      %217 = vsyncadd [#allocation18], %s216
      %s219 = sshll.u32 [#allocation19], 4
      %s220 = int_to_ptr.vmem [resolvable:$true] %s219
      %222 = dma.hbm_to_vmem [thread:$0]  %s31, 16, %s220, [#allocation18]
    $region65: #{tpu_custom_call.1} parent=1 // pred_fallthru
      _
    // Predicated region
    $region66: #{tpu_custom_call.1} parent=1 // pred_check
      _
    $region67: #{tpu_custom_call.1} parent=1 // pred_check_branch
      %224 = sbr.rel (0) target = $region69
    $region68: #{tpu_custom_call.1} parent=1 // pred_region
      _
    $region69: #{tpu_custom_call.1} parent=1 // pred_fallthru
      _
    // Predicated region
    $region70: #{tpu_custom_call.1} parent=1 // pred_check
      _
    $region71: #{tpu_custom_call.1} parent=1 // pred_check_branch
      %226 = sbr.rel (0) target = $region73
    $region72: #{tpu_custom_call.1} parent=1 // pred_region
      %s228 = ssub.s32 16, 16
      %229 = vsyncadd [#allocation21], %s228
      %s231 = sshll.u32 [#allocation20], 4
      %s232 = int_to_ptr.vmem [resolvable:$true] %s231
      %234 = dma.hbm_to_vmem [thread:$0]  %s35, 16, %s232, [#allocation21]
    $region73: #{tpu_custom_call.1} parent=1 // pred_fallthru
      _
    // Predicated region
    $region74: #{tpu_custom_call.1} parent=1 // pred_check
      _
    $region75: #{tpu_custom_call.1} parent=1 // pred_check_branch
      %236 = sbr.rel (0) target = $region77
    $region76: #{tpu_custom_call.1} parent=1 // pred_region
      %s238 = ssub.s32 512, 512
      %239 = vsyncadd [#allocation21], %s238
      %s240 = sshll.u32 [#allocation22], 4
      %s241 = int_to_ptr.vmem [resolvable:$true] %s240
      %246 = dma.hbm_to_vmem [thread:$0]  %s37, 512, %s241, [#allocation21], 128, 128, 8
    $region77: #{tpu_custom_call.1} parent=1 // pred_fallthru
      _
    // Predicated region
    $region78: #{tpu_custom_call.1} parent=1 // pred_check
      _
    $region79: #{tpu_custom_call.1} parent=1 // pred_check_branch
      %248 = sbr.rel (0) target = $region81
    $region80: #{tpu_custom_call.1} parent=1 // pred_region
      %s250 = ssub.s32 16, 16
      %251 = vsyncadd [#allocation24], %s250
      %s253 = sshll.u32 [#allocation23], 4
      %s254 = int_to_ptr.vmem [resolvable:$true] %s253
      %256 = dma.hbm_to_vmem [thread:$0]  %s39, 16, %s254, [#allocation24]
    $region81: #{tpu_custom_call.1} parent=1 // pred_fallthru
      _
    // Predicated region
    $region82: #{tpu_custom_call.1} parent=1 // pred_check
      _
    $region83: #{tpu_custom_call.1} parent=1 // pred_check_branch
      %258 = sbr.rel (0) target = $region85
    $region84: #{tpu_custom_call.1} parent=1 // pred_region
      _
    $region85: #{tpu_custom_call.1} parent=1 // pred_fallthru
      _
    // Predicated region
    $region86: #{tpu_custom_call.1} parent=1 // pred_check
      _
    $region87: #{tpu_custom_call.1} parent=1 // pred_check_branch
      %260 = sbr.rel (0) target = $region89
    $region88: #{tpu_custom_call.1} parent=1 // pred_region
      %s262 = ssub.s32 512, 512
      %263 = vsyncadd [#allocation24], %s262
      %s264 = sshll.u32 [#allocation25], 4
      %s265 = int_to_ptr.vmem [resolvable:$true] %s264
      %270 = dma.hbm_to_vmem [thread:$0]  %s43, 512, %s265, [#allocation24], 128, 128, 8
    $region89: #{tpu_custom_call.1} parent=1 // pred_fallthru
      _
    // Predicated region
    $region90: #{tpu_custom_call.1} parent=1 // pred_check
      _
    $region91: #{tpu_custom_call.1} parent=1 // pred_check_branch
      %272 = sbr.rel (0) target = $region93
    $region92: #{tpu_custom_call.1} parent=1 // pred_region
      _
    $region93: #{tpu_custom_call.1} parent=1 // pred_fallthru
      _
    // Predicated region
    $region94: #{tpu_custom_call.1} parent=1 // pred_check
      _
    $region95: #{tpu_custom_call.1} parent=1 // pred_check_branch
      %274 = sbr.rel (0) target = $region97
    $region96: #{tpu_custom_call.1} parent=1 // pred_region
      _
    $region97: #{tpu_custom_call.1} parent=1 // pred_fallthru
      _
    // Predicated region
    $region98: #{tpu_custom_call.1} parent=1 // pred_check
      _
    $region99: #{tpu_custom_call.1} parent=1 // pred_check_branch
      %276 = sbr.rel (0) target = $region101
    $region100: #{tpu_custom_call.1} parent=1 // pred_region
      _
    $region101: #{tpu_custom_call.1} parent=1 // pred_fallthru
      _
    // Predicated region
    $region102: #{tpu_custom_call.1} parent=1 // pred_check
      _
    $region103: #{tpu_custom_call.1} parent=1 // pred_check_branch
      %278 = sbr.rel (0) target = $region105
    $region104: #{tpu_custom_call.1} parent=1 // pred_region
      _
    $region105: #{tpu_custom_call.1} parent=1 // pred_fallthru
      _
    // Predicated region
    $region106: #{tpu_custom_call.1} parent=1 // pred_check
      _
    $region107: #{tpu_custom_call.1} parent=1 // pred_check_branch
      %280 = sbr.rel (0) target = $region109
    $region108: #{tpu_custom_call.1} parent=1 // pred_region
      _
    $region109: #{tpu_custom_call.1} parent=1 // pred_fallthru
      _
    // Predicated region
    $region110: #{tpu_custom_call.1} parent=1 // pred_check
      _
    $region111: #{tpu_custom_call.1} parent=1 // pred_check_branch
      %282 = sbr.rel (0) target = $region113
    $region112: #{tpu_custom_call.1} parent=1 // pred_region
      _
    $region113: #{tpu_custom_call.1} parent=1 // pred_fallthru
      _
    // Predicated region
    $region114: #{tpu_custom_call.1} parent=1 // pred_check
      _
    $region115: #{tpu_custom_call.1} parent=1 // pred_check_branch
      %284 = sbr.rel (0) target = $region117
    $region116: #{tpu_custom_call.1} parent=1 // pred_region
      _
    $region117: #{tpu_custom_call.1} parent=1 // pred_fallthru
      _
    // Predicated region
    $region118: #{tpu_custom_call.1} parent=1 // pred_check
      _
    $region119: #{tpu_custom_call.1} parent=1 // pred_check_branch
      %286 = sbr.rel (0) target = $region121
    $region120: #{tpu_custom_call.1} parent=1 // pred_region
      _
    $region121: #{tpu_custom_call.1} parent=1 // pred_fallthru
      _
    // Predicated region
    $region122: #{tpu_custom_call.1} parent=1 // pred_check
      _
    $region123: #{tpu_custom_call.1} parent=1 // pred_check_branch
      %288 = sbr.rel (0) target = $region125
    $region124: #{tpu_custom_call.1} parent=1 // pred_region
      _
    $region125: #{tpu_custom_call.1} parent=1 // pred_fallthru
      _
    // Predicated region
    $region126: #{tpu_custom_call.1} parent=1 // pred_check
      _
    $region127: #{tpu_custom_call.1} parent=1 // pred_check_branch
      %290 = sbr.rel (0) target = $region129
    $region128: #{tpu_custom_call.1} parent=1 // pred_region
      _
    $region129: #{tpu_custom_call.1} parent=1 // pred_fallthru
      _
    // Predicated region
    $region130: #{tpu_custom_call.1} parent=1 // pred_check
      _
    $region131: #{tpu_custom_call.1} parent=1 // pred_check_branch
      %292 = sbr.rel (0) target = $region133
    $region132: #{tpu_custom_call.1} parent=1 // pred_region
      _
    $region133: #{tpu_custom_call.1} parent=1 // pred_fallthru
      _
    // Predicated region
    $region134: #{tpu_custom_call.1} parent=1 // pred_check
      _
    $region135: #{tpu_custom_call.1} parent=1 // pred_check_branch
      %294 = sbr.rel (0) target = $region137
    $region136: #{tpu_custom_call.1} parent=1 // pred_region
      _
    $region137: #{tpu_custom_call.1} parent=1 // pred_fallthru
      _
    // Predicated region
    $region138: #{tpu_custom_call.1} parent=1 // pred_check
      _
    $region139: #{tpu_custom_call.1} parent=1 // pred_check_branch
      %296 = sbr.rel (0) target = $region141
    $region140: #{tpu_custom_call.1} parent=1 // pred_region
      _
    $region141: #{tpu_custom_call.1} parent=1 // pred_fallthru
      _
    // Predicated region
    $region142: #{tpu_custom_call.1} parent=1 // pred_check
      _
    $region143: #{tpu_custom_call.1} parent=1 // pred_check_branch
      %298 = sbr.rel (0) target = $region145
    $region144: #{tpu_custom_call.1} parent=1 // pred_region
      _
    $region145: #{tpu_custom_call.1} parent=1 // pred_fallthru
      _
    // Predicated region
    $region146: #{tpu_custom_call.1} parent=1 // pred_check
      _
    $region147: #{tpu_custom_call.1} parent=1 // pred_check_branch
      %300 = sbr.rel (0) target = $region149
    $region148: #{tpu_custom_call.1} parent=1 // pred_region
      _
    $region149: #{tpu_custom_call.1} parent=1 // pred_fallthru
      _
    // Predicated region
    $region150: #{tpu_custom_call.1} parent=1 // pred_check
      _
    $region151: #{tpu_custom_call.1} parent=1 // pred_check_branch
      %302 = sbr.rel (0) target = $region153
    $region152: #{tpu_custom_call.1} parent=1 // pred_region
      _
    $region153: #{tpu_custom_call.1} parent=1 // pred_fallthru
      _
    // Predicated region
    $region154: #{tpu_custom_call.1} parent=1 // pred_check
      _
    $region155: #{tpu_custom_call.1} parent=1 // pred_check_branch
      %304 = sbr.rel (0) target = $region157
    $region156: #{tpu_custom_call.1} parent=1 // pred_region
      _
    $region157: #{tpu_custom_call.1} parent=1 // pred_fallthru
      _
    // Predicated region
    $region158: #{tpu_custom_call.1} parent=1 // pred_check
      _
    $region159: #{tpu_custom_call.1} parent=1 // pred_check_branch
      %306 = sbr.rel (0) target = $region161
    $region160: #{tpu_custom_call.1} parent=1 // pred_region
      _
    $region161: #{tpu_custom_call.1} parent=1 // pred_fallthru
      _
    // Predicated region
    $region162: #{tpu_custom_call.1} parent=1 // pred_check
      _
    $region163: #{tpu_custom_call.1} parent=1 // pred_check_branch
      %308 = sbr.rel (0) target = $region165
    $region164: #{tpu_custom_call.1} parent=1 // pred_region
      %309 = dma.done [#allocation3], 16
    $region165: #{tpu_custom_call.1} parent=1 // pred_fallthru
      _
    // Predicated region
    $region166: #{tpu_custom_call.1} parent=1 // pred_check
      _
    $region167: #{tpu_custom_call.1} parent=1 // pred_check_branch
      %311 = sbr.rel (0) target = $region169
    $region168: #{tpu_custom_call.1} parent=1 // pred_region
      %312 = dma.done [#allocation6], 16
    $region169: #{tpu_custom_call.1} parent=1 // pred_fallthru
      _
    // Predicated region
    $region170: #{tpu_custom_call.1} parent=1 // pred_check
      _
    $region171: #{tpu_custom_call.1} parent=1 // pred_check_branch
      %314 = sbr.rel (0) target = $region173
    $region172: #{tpu_custom_call.1} parent=1 // pred_region
      %315 = dma.done [#allocation6], 128
    $region173: #{tpu_custom_call.1} parent=1 // pred_fallthru
      _
    // Predicated region
    $region174: #{tpu_custom_call.1} parent=1 // pred_check
      _
    $region175: #{tpu_custom_call.1} parent=1 // pred_check_branch
      %317 = sbr.rel (0) target = $region177
    $region176: #{tpu_custom_call.1} parent=1 // pred_region
      %318 = dma.done [#allocation9], 16
    $region177: #{tpu_custom_call.1} parent=1 // pred_fallthru
      _
    // Predicated region
    $region178: #{tpu_custom_call.1} parent=1 // pred_check
      _
    $region179: #{tpu_custom_call.1} parent=1 // pred_check_branch
      %320 = sbr.rel (0) target = $region181
    $region180: #{tpu_custom_call.1} parent=1 // pred_region
      %321 = dma.done [#allocation9], 512
    $region181: #{tpu_custom_call.1} parent=1 // pred_fallthru
      _
    // Predicated region
    $region182: #{tpu_custom_call.1} parent=1 // pred_check
      _
    $region183: #{tpu_custom_call.1} parent=1 // pred_check_branch
      %323 = sbr.rel (0) target = $region185
    $region184: #{tpu_custom_call.1} parent=1 // pred_region
      %324 = dma.done [#allocation12], 512
    $region185: #{tpu_custom_call.1} parent=1 // pred_fallthru
      _
    // Predicated region
    $region186: #{tpu_custom_call.1} parent=1 // pred_check
      _
    $region187: #{tpu_custom_call.1} parent=1 // pred_check_branch
      %326 = sbr.rel (0) target = $region189
    $region188: #{tpu_custom_call.1} parent=1 // pred_region
      %327 = dma.done [#allocation12], 16
    $region189: #{tpu_custom_call.1} parent=1 // pred_fallthru
      _
    // Predicated region
    $region190: #{tpu_custom_call.1} parent=1 // pred_check
      _
    $region191: #{tpu_custom_call.1} parent=1 // pred_check_branch
      %329 = sbr.rel (0) target = $region193
    $region192: #{tpu_custom_call.1} parent=1 // pred_region
      %330 = dma.done [#allocation15], 512
    $region193: #{tpu_custom_call.1} parent=1 // pred_fallthru
      _
    // Predicated region
    $region194: #{tpu_custom_call.1} parent=1 // pred_check
      _
    $region195: #{tpu_custom_call.1} parent=1 // pred_check_branch
      %332 = sbr.rel (0) target = $region197
    $region196: #{tpu_custom_call.1} parent=1 // pred_region
      %333 = dma.done [#allocation15], 16
    $region197: #{tpu_custom_call.1} parent=1 // pred_fallthru
      _
    // Predicated region
    $region198: #{tpu_custom_call.1} parent=1 // pred_check
      _
    $region199: #{tpu_custom_call.1} parent=1 // pred_check_branch
      %335 = sbr.rel (0) target = $region201
    $region200: #{tpu_custom_call.1} parent=1 // pred_region
      %336 = dma.done [#allocation18], 512
    $region201: #{tpu_custom_call.1} parent=1 // pred_fallthru
      _
    // Predicated region
    $region202: #{tpu_custom_call.1} parent=1 // pred_check
      _
    $region203: #{tpu_custom_call.1} parent=1 // pred_check_branch
      %338 = sbr.rel (0) target = $region205
    $region204: #{tpu_custom_call.1} parent=1 // pred_region
      %339 = dma.done [#allocation18], 16
    $region205: #{tpu_custom_call.1} parent=1 // pred_fallthru
      _
    // Predicated region
    $region206: #{tpu_custom_call.1} parent=1 // pred_check
      _
    $region207: #{tpu_custom_call.1} parent=1 // pred_check_branch
      %341 = sbr.rel (0) target = $region209
    $region208: #{tpu_custom_call.1} parent=1 // pred_region
      %342 = dma.done [#allocation21], 16
    $region209: #{tpu_custom_call.1} parent=1 // pred_fallthru
      _
    // Predicated region
    $region210: #{tpu_custom_call.1} parent=1 // pred_check
      _
    $region211: #{tpu_custom_call.1} parent=1 // pred_check_branch
      %344 = sbr.rel (0) target = $region213
    $region212: #{tpu_custom_call.1} parent=1 // pred_region
      %345 = dma.done [#allocation21], 512
    $region213: #{tpu_custom_call.1} parent=1 // pred_fallthru
      _
    // Predicated region
    $region214: #{tpu_custom_call.1} parent=1 // pred_check
      _
    $region215: #{tpu_custom_call.1} parent=1 // pred_check_branch
      %347 = sbr.rel (0) target = $region217
    $region216: #{tpu_custom_call.1} parent=1 // pred_region
      %348 = dma.done [#allocation24], 16
    $region217: #{tpu_custom_call.1} parent=1 // pred_fallthru
      _
    // Predicated region
    $region218: #{tpu_custom_call.1} parent=1 // pred_check
      _
    $region219: #{tpu_custom_call.1} parent=1 // pred_check_branch
      %350 = sbr.rel (0) target = $region221
    $region220: #{tpu_custom_call.1} parent=1 // pred_region
      %351 = dma.done [#allocation24], 512
    $region221: #{tpu_custom_call.1} parent=1 // pred_fallthru
      _
    %v352 = vlaneseq
    %v353 = vand.u32 %v352, 127
    %v354 = vld [vmem:[%s1] sm:$0xff]
    %v355 = vld [vmem:[%s1 + $0x8] sm:$0xff]
    %v356 = vld [vmem:[%s1 + $0x10] sm:$0xff]
    %v357 = vld [vmem:[%s1 + $0x18] sm:$0xff]
    %358 = vset.pattern.permute.xlu0 0
    %359 = vperm.xlu0 %358, %v354
    %v360 = vpop.permute.xlu0 %359
    %361 = vset.pattern.permute.xlu0 0
    %362 = vperm.xlu0 %361, %v355
    %v363 = vpop.permute.xlu0 %362
    %364 = vset.pattern.permute.xlu0 0
    %365 = vperm.xlu0 %364, %v356
    %v366 = vpop.permute.xlu0 %365
    %367 = vset.pattern.permute.xlu0 0
    %368 = vperm.xlu0 %367, %v357
    %v369 = vpop.permute.xlu0 %368
    %vm370 = vcmp.eq.s32.totalorder %v353, %v360
    %vm371 = vcmp.eq.s32.totalorder %v353, %v363
    %vm372 = vcmp.eq.s32.totalorder %v353, %v366
    %vm373 = vcmp.eq.s32.totalorder %v353, %v369
    %v374 = vsel %vm370, 1.0, 0.0
    %v375 = vsel %vm371, 1.0, 0.0
    %v376 = vsel %vm372, 1.0, 0.0
    %v377 = vsel %vm373, 1.0, 0.0
    %v378 = vld [vmem:[%s3] sm:$0xff]
    %v379 = vld [vmem:[%s3 + $0x8] sm:$0xff]
    %v380 = vld [vmem:[%s3 + $0x10] sm:$0xff]
    %v381 = vld [vmem:[%s3 + $0x18] sm:$0xff]
    %382 = vset.pattern.permute.xlu0 0
    %383 = vperm.xlu0 %382, %v378
    %v384 = vpop.permute.xlu0 %383
    %385 = vset.pattern.permute.xlu0 0
    %386 = vperm.xlu0 %385, %v379
    %v387 = vpop.permute.xlu0 %386
    %388 = vset.pattern.permute.xlu0 0
    %389 = vperm.xlu0 %388, %v380
    %v390 = vpop.permute.xlu0 %389
    %391 = vset.pattern.permute.xlu0 0
    %392 = vperm.xlu0 %391, %v381
    %v393 = vpop.permute.xlu0 %392
    %vm394 = vcmp.eq.s32.totalorder %v353, %v384
    %vm395 = vcmp.eq.s32.totalorder %v353, %v387
    %vm396 = vcmp.eq.s32.totalorder %v353, %v390
    %vm397 = vcmp.eq.s32.totalorder %v353, %v393
    %v398 = vsel %vm394, 1.0, 0.0
    %v399 = vsel %vm395, 1.0, 0.0
    %v400 = vsel %vm396, 1.0, 0.0
    %v401 = vsel %vm397, 1.0, 0.0
    %v402 = vlaneseq
    %v403 = vshrl.u32 %v402, 7
    %v404 = vadd.s32 %v403, 8
    %v405 = vld [vmem:[#allocation2] sm:$0x1]
    %v406 = vlaneseq
    %v407 = vshrl.u32 %v406, 7
    %v408 = vsub.s32 0, %v407
    %v409 = vrot.slane %v405, %v408
    %vm410 = vcmp.eq.s32.totalorder %v403, %v409
    %vm411 = vcmp.eq.s32.totalorder %v404, %v409
    %v412 = vsel %vm410, 1.0, 0.0
    %v413 = vsel %vm411, 1.0, 0.0
    %vm414 = vcmask 261120
    %v416 = vsel %vm414, %v412, 0
    %v419 = vsel %vm414, %v413, 0
    %421 = vmatprep.subr.mxu0 0.0
    %422 = vmatpush1.msra.mxu0 %v374
    %423 = vmatprep.subr.mxu0 0.0
    %424 = vmatpush1.msra.mxu0 %v375
    %425 = vmatprep.subr.mxu0 0.0
    %426 = vmatpush1.msra.mxu0 %v376
    %427 = vmatprep.subr.mxu0 0.0
    %428 = vmatpush1.msra.mxu0 %v377
    %429 = vmatprep.subr.mxu0 0.0
    %430 = vmatpush1.msra.mxu0 0.0
    %431 = vmatprep.subr.mxu0 0.0
    %432 = vmatpush1.msra.mxu0 0.0
    %433 = vmatprep.subr.mxu0 0.0
    %434 = vmatpush1.msra.mxu0 0.0
    %435 = vmatprep.subr.mxu0 0.0
    %436 = vmatpush1.msra.mxu0 0.0
    %437 = vmatprep.subr.mxu0 0.0
    %438 = vmatpush1.msra.mxu0 0.0
    %439 = vmatprep.subr.mxu0 0.0
    %440 = vmatpush1.msra.mxu0 0.0
    %441 = vmatprep.subr.mxu0 0.0
    %442 = vmatpush1.msra.mxu0 0.0
    %443 = vmatprep.subr.mxu0 0.0
    %444 = vmatpush1.msra.mxu0 0.0
    %445 = vmatprep.subr.mxu0 0.0
    %446 = vmatpush1.msra.mxu0 0.0
    %447 = vmatprep.subr.mxu0 0.0
    %448 = vmatpush1.msra.mxu0 0.0
    %449 = vmatprep.subr.mxu0 0.0
    %450 = vmatpush1.msra.mxu0 0.0
    %451 = vmatprep.subr.mxu0 0.0
    %452 = vmatpush1.msra.mxu0 0.0
    %453 = vmatprep.subr.mxu0 0.0
    %454 = vmatpush1.msra.mxu0 0.0
    %455 = vmatprep.subr.mxu0 0.0
    %456 = vmatpush1.msra.mxu0 0.0
    %457 = vmatprep.subr.mxu0 0.0
    %458 = vmatpush1.msra.mxu0 0.0
    %459 = vmatprep.subr.mxu0 0.0
    %460 = vmatpush1.msra.mxu0 0.0
    %461 = vmatprep.subr.mxu0 0.0
    %462 = vmatpush1.msra.mxu0 0.0
    %463 = vmatprep.subr.mxu0 0.0
    %464 = vmatpush1.msra.mxu0 0.0
    %465 = vmatprep.subr.mxu0 0.0
    %466 = vmatpush1.msra.mxu0 0.0
    %467 = vmatprep.subr.mxu0 0.0
    %468 = vmatpush1.msra.mxu0 0.0
    %469 = vmatprep.subr.mxu0 0.0
    %470 = vmatpush1.msra.mxu0 0.0
    %471 = vmatprep.subr.mxu0 0.0
    %472 = vmatpush1.msra.mxu0 0.0
    %473 = vmatprep.subr.mxu0 0.0
    %474 = vmatpush1.msra.mxu0 0.0
    %475 = vmatprep.subr.mxu0 0.0
    %476 = vmatpush1.msra.mxu0 0.0
    %477 = vmatprep.subr.mxu0 0.0
    %478 = vmatpush1.msra.mxu0 0.0
    %479 = vmatprep.subr.mxu0 0.0
    %480 = vmatpush1.msra.mxu0 0.0
    %481 = vmatprep.subr.mxu0 0.0
    %482 = vmatpush1.msra.mxu0 0.0
    %483 = vmatprep.subr.mxu0 0.0
    %484 = vmatpush1.msra.mxu0 0.0
    %485 = vmatprep.mubr.f32.mxu0 0.0
    %486 = vmatmul.mubr.f32.gmra.mrb[0].mxu0 %v416
    %v487 = vpop.f32.mrb[0].mxu0
    %v488 = vadd.f32 0.0, %v487
    %v489 = vpop.f32.mrb[0].mxu0
    %490 = vmatprep.mubr.f32.mxu0 0.0
    %491 = vmatmul.mubr.f32.gmra.mrb[0].mxu0 %v419
    %v492 = vpop.f32.mrb[0].mxu0
    %v493 = vadd.f32 0.0, %v492
    %v494 = vpop.f32.mrb[0].mxu0
    %495 = vdwg.mxu0
    %v496 = vld [vmem:[%s9] sm:$0xff]
    %v497 = vld [vmem:[%s9 + $0x8] sm:$0xff]
    %vm498 = vcmask 130048
    %v500 = vsel %vm498, %v488, 0
    %v503 = vsel %vm498, %v493, 0
    %505 = vmatprep.subr.mxu0 0.0
    %506 = vmatpush1.msra.mxu0 %v496
    %507 = vmatprep.subr.mxu0 0.0
    %508 = vmatpush1.msra.mxu0 %v497
    %509 = vmatprep.subr.mxu0 0.0
    %510 = vmatpush1.msra.mxu0 0.0
    %511 = vmatprep.subr.mxu0 0.0
    %512 = vmatpush1.msra.mxu0 0.0
    %513 = vmatprep.subr.mxu0 0.0
    %514 = vmatpush1.msra.mxu0 0.0
    %515 = vmatprep.subr.mxu0 0.0
    %516 = vmatpush1.msra.mxu0 0.0
    %517 = vmatprep.subr.mxu0 0.0
    %518 = vmatpush1.msra.mxu0 0.0
    %519 = vmatprep.subr.mxu0 0.0
    %520 = vmatpush1.msra.mxu0 0.0
    %521 = vmatprep.subr.mxu0 0.0
    %522 = vmatpush1.msra.mxu0 0.0
    %523 = vmatprep.subr.mxu0 0.0
    %524 = vmatpush1.msra.mxu0 0.0
    %525 = vmatprep.subr.mxu0 0.0
    %526 = vmatpush1.msra.mxu0 0.0
    %527 = vmatprep.subr.mxu0 0.0
    %528 = vmatpush1.msra.mxu0 0.0
    %529 = vmatprep.subr.mxu0 0.0
    %530 = vmatpush1.msra.mxu0 0.0
    %531 = vmatprep.subr.mxu0 0.0
    %532 = vmatpush1.msra.mxu0 0.0
    %533 = vmatprep.subr.mxu0 0.0
    %534 = vmatpush1.msra.mxu0 0.0
    %535 = vmatprep.subr.mxu0 0.0
    %536 = vmatpush1.msra.mxu0 0.0
    %537 = vmatprep.subr.mxu0 0.0
    %538 = vmatpush1.msra.mxu0 0.0
    %539 = vmatprep.subr.mxu0 0.0
    %540 = vmatpush1.msra.mxu0 0.0
    %541 = vmatprep.subr.mxu0 0.0
    %542 = vmatpush1.msra.mxu0 0.0
    %543 = vmatprep.subr.mxu0 0.0
    %544 = vmatpush1.msra.mxu0 0.0
    %545 = vmatprep.subr.mxu0 0.0
    %546 = vmatpush1.msra.mxu0 0.0
    %547 = vmatprep.subr.mxu0 0.0
    %548 = vmatpush1.msra.mxu0 0.0
    %549 = vmatprep.subr.mxu0 0.0
    %550 = vmatpush1.msra.mxu0 0.0
    %551 = vmatprep.subr.mxu0 0.0
    %552 = vmatpush1.msra.mxu0 0.0
    %553 = vmatprep.subr.mxu0 0.0
    %554 = vmatpush1.msra.mxu0 0.0
    %555 = vmatprep.subr.mxu0 0.0
    %556 = vmatpush1.msra.mxu0 0.0
    %557 = vmatprep.subr.mxu0 0.0
    %558 = vmatpush1.msra.mxu0 0.0
    %559 = vmatprep.subr.mxu0 0.0
    %560 = vmatpush1.msra.mxu0 0.0
    %561 = vmatprep.subr.mxu0 0.0
    %562 = vmatpush1.msra.mxu0 0.0
    %563 = vmatprep.subr.mxu0 0.0
    %564 = vmatpush1.msra.mxu0 0.0
    %565 = vmatprep.subr.mxu0 0.0
    %566 = vmatpush1.msra.mxu0 0.0
    %567 = vmatprep.subr.mxu0 0.0
    %568 = vmatpush1.msra.mxu0 0.0
    %569 = vmatprep.mubr.f32.mxu0 0.0
    %570 = vmatmul.mubr.f32.gmra.mrb[0].mxu0 %v500
    %v571 = vpop.f32.mrb[0].mxu0
    %v572 = vadd.f32 0.0, %v571
    %v573 = vpop.f32.mrb[0].mxu0
    %574 = vmatprep.mubr.f32.mxu0 0.0
    %575 = vmatmul.mubr.f32.gmra.mrb[0].mxu0 %v503
    %v576 = vpop.f32.mrb[0].mxu0
    %v577 = vadd.f32 0.0, %v576
    %v578 = vpop.f32.mrb[0].mxu0
    %579 = vdwg.mxu0
    %v580 = vadd.f32 %v496, %v572
    %v581 = vadd.f32 %v497, %v577
    %v582 = vld [vmem:[#allocation7] sm:$0xff]
    %v583 = vld [vmem:[#allocation8] sm:$0x1]
    %v585 = vlaneseq
    %v586 = vshrl.u32 %v585, 7
    %v587 = vsub.s32 0, %v586
    %v588 = vrot.slane %v583, %v587
    %vm590 = vcmask 64512
    %v592 = vsel %vm590, %v580, 0
    %v595 = vsel %vm590, %v581, 0
    %597 = vmatprep.subr.mxu0 0.0
    %598 = vmatpush1.msra.mxu0 %v582
    %599 = vmatprep.subr.mxu0 0.0
    %600 = vmatpush1.msra.mxu0 0.0
    %601 = vmatprep.subr.mxu0 0.0
    %602 = vmatpush1.msra.mxu0 0.0
    %603 = vmatprep.subr.mxu0 0.0
    %604 = vmatpush1.msra.mxu0 0.0
    %605 = vmatprep.subr.mxu0 0.0
    %606 = vmatpush1.msra.mxu0 0.0
    %607 = vmatprep.subr.mxu0 0.0
    %608 = vmatpush1.msra.mxu0 0.0
    %609 = vmatprep.subr.mxu0 0.0
    %610 = vmatpush1.msra.mxu0 0.0
    %611 = vmatprep.subr.mxu0 0.0
    %612 = vmatpush1.msra.mxu0 0.0
    %613 = vmatprep.subr.mxu0 0.0
    %614 = vmatpush1.msra.mxu0 0.0
    %615 = vmatprep.subr.mxu0 0.0
    %616 = vmatpush1.msra.mxu0 0.0
    %617 = vmatprep.subr.mxu0 0.0
    %618 = vmatpush1.msra.mxu0 0.0
    %619 = vmatprep.subr.mxu0 0.0
    %620 = vmatpush1.msra.mxu0 0.0
    %621 = vmatprep.subr.mxu0 0.0
    %622 = vmatpush1.msra.mxu0 0.0
    %623 = vmatprep.subr.mxu0 0.0
    %624 = vmatpush1.msra.mxu0 0.0
    %625 = vmatprep.subr.mxu0 0.0
    %626 = vmatpush1.msra.mxu0 0.0
    %627 = vmatprep.subr.mxu0 0.0
    %628 = vmatpush1.msra.mxu0 0.0
    %629 = vmatprep.subr.mxu0 0.0
    %630 = vmatpush1.msra.mxu0 0.0
    %631 = vmatprep.subr.mxu0 0.0
    %632 = vmatpush1.msra.mxu0 0.0
    %633 = vmatprep.subr.mxu0 0.0
    %634 = vmatpush1.msra.mxu0 0.0
    %635 = vmatprep.subr.mxu0 0.0
    %636 = vmatpush1.msra.mxu0 0.0
    %637 = vmatprep.subr.mxu0 0.0
    %638 = vmatpush1.msra.mxu0 0.0
    %639 = vmatprep.subr.mxu0 0.0
    %640 = vmatpush1.msra.mxu0 0.0
    %641 = vmatprep.subr.mxu0 0.0
    %642 = vmatpush1.msra.mxu0 0.0
    %643 = vmatprep.subr.mxu0 0.0
    %644 = vmatpush1.msra.mxu0 0.0
    %645 = vmatprep.subr.mxu0 0.0
    %646 = vmatpush1.msra.mxu0 0.0
    %647 = vmatprep.subr.mxu0 0.0
    %648 = vmatpush1.msra.mxu0 0.0
    %649 = vmatprep.subr.mxu0 0.0
    %650 = vmatpush1.msra.mxu0 0.0
    %651 = vmatprep.subr.mxu0 0.0
    %652 = vmatpush1.msra.mxu0 0.0
    %653 = vmatprep.subr.mxu0 0.0
    %654 = vmatpush1.msra.mxu0 0.0
    %655 = vmatprep.subr.mxu0 0.0
    %656 = vmatpush1.msra.mxu0 0.0
    %657 = vmatprep.subr.mxu0 0.0
    %658 = vmatpush1.msra.mxu0 0.0
    %659 = vmatprep.subr.mxu0 0.0
    %660 = vmatpush1.msra.mxu0 0.0
    %661 = vmatprep.mubr.f32.mxu0 0.0
    %662 = vmatmul.mubr.f32.gmra.mrb[0].mxu0 %v592
    %v663 = vpop.f32.mrb[0].mxu0
    %v664 = vadd.f32 %v588, %v663
    %v665 = vpop.f32.mrb[0].mxu0
    %666 = vmatprep.mubr.f32.mxu0 0.0
    %667 = vmatmul.mubr.f32.gmra.mrb[0].mxu0 %v595
    %v668 = vpop.f32.mrb[0].mxu0
    %v669 = vadd.f32 %v588, %v668
    %v670 = vpop.f32.mrb[0].mxu0
    %671 = vdwg.mxu0
    %v672 = vmax.f32 %v664, 0.0
    %v673 = vmax.f32 %v669, 0.0
    %v674 = vld [vmem:[#allocation10] sm:$0xff]
    %v675 = vld [vmem:[#allocation10 + $0x8] sm:$0xff]
    %v676 = vld [vmem:[#allocation10 + $0x10] sm:$0xff]
    %v677 = vld [vmem:[#allocation10 + $0x18] sm:$0xff]
    %v678 = vld [vmem:[%s19] sm:$0x1]
    %v680 = vlaneseq
    %v681 = vshrl.u32 %v680, 7
    %v682 = vsub.s32 0, %v681
    %v683 = vrot.slane %v678, %v682
    %v686 = vsel %vm414, %v672, 0
    %v689 = vsel %vm414, %v673, 0
    %691 = vmatprep.subr.mxu0 0.0
    %692 = vmatpush1.msra.mxu0 %v674
    %693 = vmatprep.subr.mxu0 0.0
    %694 = vmatpush1.msra.mxu0 %v675
    %695 = vmatprep.subr.mxu0 0.0
    %696 = vmatpush1.msra.mxu0 %v676
    %697 = vmatprep.subr.mxu0 0.0
    %698 = vmatpush1.msra.mxu0 %v677
    %699 = vmatprep.subr.mxu0 0.0
    %700 = vmatpush1.msra.mxu0 0.0
    %701 = vmatprep.subr.mxu0 0.0
    %702 = vmatpush1.msra.mxu0 0.0
    %703 = vmatprep.subr.mxu0 0.0
    %704 = vmatpush1.msra.mxu0 0.0
    %705 = vmatprep.subr.mxu0 0.0
    %706 = vmatpush1.msra.mxu0 0.0
    %707 = vmatprep.subr.mxu0 0.0
    %708 = vmatpush1.msra.mxu0 0.0
    %709 = vmatprep.subr.mxu0 0.0
    %710 = vmatpush1.msra.mxu0 0.0
    %711 = vmatprep.subr.mxu0 0.0
    %712 = vmatpush1.msra.mxu0 0.0
    %713 = vmatprep.subr.mxu0 0.0
    %714 = vmatpush1.msra.mxu0 0.0
    %715 = vmatprep.subr.mxu0 0.0
    %716 = vmatpush1.msra.mxu0 0.0
    %717 = vmatprep.subr.mxu0 0.0
    %718 = vmatpush1.msra.mxu0 0.0
    %719 = vmatprep.subr.mxu0 0.0
    %720 = vmatpush1.msra.mxu0 0.0
    %721 = vmatprep.subr.mxu0 0.0
    %722 = vmatpush1.msra.mxu0 0.0
    %723 = vmatprep.subr.mxu0 0.0
    %724 = vmatpush1.msra.mxu0 0.0
    %725 = vmatprep.subr.mxu0 0.0
    %726 = vmatpush1.msra.mxu0 0.0
    %727 = vmatprep.subr.mxu0 0.0
    %728 = vmatpush1.msra.mxu0 0.0
    %729 = vmatprep.subr.mxu0 0.0
    %730 = vmatpush1.msra.mxu0 0.0
    %731 = vmatprep.subr.mxu0 0.0
    %732 = vmatpush1.msra.mxu0 0.0
    %733 = vmatprep.subr.mxu0 0.0
    %734 = vmatpush1.msra.mxu0 0.0
    %735 = vmatprep.subr.mxu0 0.0
    %736 = vmatpush1.msra.mxu0 0.0
    %737 = vmatprep.subr.mxu0 0.0
    %738 = vmatpush1.msra.mxu0 0.0
    %739 = vmatprep.subr.mxu0 0.0
    %740 = vmatpush1.msra.mxu0 0.0
    %741 = vmatprep.subr.mxu0 0.0
    %742 = vmatpush1.msra.mxu0 0.0
    %743 = vmatprep.subr.mxu0 0.0
    %744 = vmatpush1.msra.mxu0 0.0
    %745 = vmatprep.subr.mxu0 0.0
    %746 = vmatpush1.msra.mxu0 0.0
    %747 = vmatprep.subr.mxu0 0.0
    %748 = vmatpush1.msra.mxu0 0.0
    %749 = vmatprep.subr.mxu0 0.0
    %750 = vmatpush1.msra.mxu0 0.0
    %751 = vmatprep.subr.mxu0 0.0
    %752 = vmatpush1.msra.mxu0 0.0
    %753 = vmatprep.subr.mxu0 0.0
    %754 = vmatpush1.msra.mxu0 0.0
    %755 = vmatprep.mubr.f32.mxu0 0.0
    %756 = vmatmul.mubr.f32.gmra.mrb[0].mxu0 %v686
    %v757 = vpop.f32.mrb[0].mxu0
    %v758 = vadd.f32 %v683, %v757
    %v759 = vpop.f32.mrb[0].mxu0
    %760 = vmatprep.mubr.f32.mxu0 0.0
    %761 = vmatmul.mubr.f32.gmra.mrb[0].mxu0 %v689
    %v762 = vpop.f32.mrb[0].mxu0
    %v763 = vadd.f32 %v683, %v762
    %v764 = vpop.f32.mrb[0].mxu0
    %765 = vdwg.mxu0
    %766 = vmatprep.subr.mxu0 0.0
    %767 = vmatpush1.msra.mxu0 %v758
    %768 = vmatprep.subr.mxu0 0.0
    %769 = vmatpush1.msra.mxu0 %v763
    %770 = vmatprep.subr.mxu0 0.0
    %771 = vmatpush1.msra.mxu0 0.0
    %772 = vmatprep.subr.mxu0 0.0
    %773 = vmatpush1.msra.mxu0 0.0
    %774 = vmatprep.subr.mxu0 0.0
    %775 = vmatpush1.msra.mxu0 0.0
    %776 = vmatprep.subr.mxu0 0.0
    %777 = vmatpush1.msra.mxu0 0.0
    %778 = vmatprep.subr.mxu0 0.0
    %779 = vmatpush1.msra.mxu0 0.0
    %780 = vmatprep.subr.mxu0 0.0
    %781 = vmatpush1.msra.mxu0 0.0
    %782 = vmatprep.subr.mxu0 0.0
    %783 = vmatpush1.msra.mxu0 0.0
    %784 = vmatprep.subr.mxu0 0.0
    %785 = vmatpush1.msra.mxu0 0.0
    %786 = vmatprep.subr.mxu0 0.0
    %787 = vmatpush1.msra.mxu0 0.0
    %788 = vmatprep.subr.mxu0 0.0
    %789 = vmatpush1.msra.mxu0 0.0
    %790 = vmatprep.subr.mxu0 0.0
    %791 = vmatpush1.msra.mxu0 0.0
    %792 = vmatprep.subr.mxu0 0.0
    %793 = vmatpush1.msra.mxu0 0.0
    %794 = vmatprep.subr.mxu0 0.0
    %795 = vmatpush1.msra.mxu0 0.0
    %796 = vmatprep.subr.mxu0 0.0
    %797 = vmatpush1.msra.mxu0 0.0
    %798 = vmatprep.subr.mxu0 0.0
    %799 = vmatpush1.msra.mxu0 0.0
    %800 = vmatprep.subr.mxu0 0.0
    %801 = vmatpush1.msra.mxu0 0.0
    %802 = vmatprep.subr.mxu0 0.0
    %803 = vmatpush1.msra.mxu0 0.0
    %804 = vmatprep.subr.mxu0 0.0
    %805 = vmatpush1.msra.mxu0 0.0
    %806 = vmatprep.subr.mxu0 0.0
    %807 = vmatpush1.msra.mxu0 0.0
    %808 = vmatprep.subr.mxu0 0.0
    %809 = vmatpush1.msra.mxu0 0.0
    %810 = vmatprep.subr.mxu0 0.0
    %811 = vmatpush1.msra.mxu0 0.0
    %812 = vmatprep.subr.mxu0 0.0
    %813 = vmatpush1.msra.mxu0 0.0
    %814 = vmatprep.subr.mxu0 0.0
    %815 = vmatpush1.msra.mxu0 0.0
    %816 = vmatprep.subr.mxu0 0.0
    %817 = vmatpush1.msra.mxu0 0.0
    %818 = vmatprep.subr.mxu0 0.0
    %819 = vmatpush1.msra.mxu0 0.0
    %820 = vmatprep.subr.mxu0 0.0
    %821 = vmatpush1.msra.mxu0 0.0
    %822 = vmatprep.subr.mxu0 0.0
    %823 = vmatpush1.msra.mxu0 0.0
    %824 = vmatprep.subr.mxu0 0.0
    %825 = vmatpush1.msra.mxu0 0.0
    %826 = vmatprep.subr.mxu0 0.0
    %827 = vmatpush1.msra.mxu0 0.0
    %828 = vmatprep.subr.mxu0 0.0
    %829 = vmatpush1.msra.mxu0 0.0
    %830 = vmatprep.mubr.f32.mxu0 0.0
    %831 = vmatmul.mubr.f32.gmra.mrb[0].mxu0 %v500
    %v832 = vpop.f32.mrb[0].mxu0
    %v833 = vadd.f32 0.0, %v832
    %v834 = vpop.f32.mrb[0].mxu0
    %835 = vmatprep.mubr.f32.mxu0 0.0
    %836 = vmatmul.mubr.f32.gmra.mrb[0].mxu0 %v503
    %v837 = vpop.f32.mrb[0].mxu0
    %v838 = vadd.f32 0.0, %v837
    %v839 = vpop.f32.mrb[0].mxu0
    %840 = vdwg.mxu0
    %v841 = vadd.f32 %v758, %v833
    %v842 = vadd.f32 %v763, %v838
    %v843 = vld [vmem:[#allocation11] sm:$0xff]
    %v844 = vld [vmem:[#allocation11 + $0x8] sm:$0xff]
    %v845 = vld [vmem:[#allocation11 + $0x10] sm:$0xff]
    %v846 = vld [vmem:[#allocation11 + $0x18] sm:$0xff]
    %v847 = vld [vmem:[#allocation13] sm:$0x1]
    %v849 = vlaneseq
    %v850 = vshrl.u32 %v849, 7
    %v851 = vsub.s32 0, %v850
    %v852 = vrot.slane %v847, %v851
    %v855 = vsel %vm414, %v841, 0
    %v858 = vsel %vm414, %v842, 0
    %860 = vmatprep.subr.mxu0 0.0
    %861 = vmatpush1.msra.mxu0 %v843
    %862 = vmatprep.subr.mxu0 0.0
    %863 = vmatpush1.msra.mxu0 %v844
    %864 = vmatprep.subr.mxu0 0.0
    %865 = vmatpush1.msra.mxu0 %v845
    %866 = vmatprep.subr.mxu0 0.0
    %867 = vmatpush1.msra.mxu0 %v846
    %868 = vmatprep.subr.mxu0 0.0
    %869 = vmatpush1.msra.mxu0 0.0
    %870 = vmatprep.subr.mxu0 0.0
    %871 = vmatpush1.msra.mxu0 0.0
    %872 = vmatprep.subr.mxu0 0.0
    %873 = vmatpush1.msra.mxu0 0.0
    %874 = vmatprep.subr.mxu0 0.0
    %875 = vmatpush1.msra.mxu0 0.0
    %876 = vmatprep.subr.mxu0 0.0
    %877 = vmatpush1.msra.mxu0 0.0
    %878 = vmatprep.subr.mxu0 0.0
    %879 = vmatpush1.msra.mxu0 0.0
    %880 = vmatprep.subr.mxu0 0.0
    %881 = vmatpush1.msra.mxu0 0.0
    %882 = vmatprep.subr.mxu0 0.0
    %883 = vmatpush1.msra.mxu0 0.0
    %884 = vmatprep.subr.mxu0 0.0
    %885 = vmatpush1.msra.mxu0 0.0
    %886 = vmatprep.subr.mxu0 0.0
    %887 = vmatpush1.msra.mxu0 0.0
    %888 = vmatprep.subr.mxu0 0.0
    %889 = vmatpush1.msra.mxu0 0.0
    %890 = vmatprep.subr.mxu0 0.0
    %891 = vmatpush1.msra.mxu0 0.0
    %892 = vmatprep.subr.mxu0 0.0
    %893 = vmatpush1.msra.mxu0 0.0
    %894 = vmatprep.subr.mxu0 0.0
    %895 = vmatpush1.msra.mxu0 0.0
    %896 = vmatprep.subr.mxu0 0.0
    %897 = vmatpush1.msra.mxu0 0.0
    %898 = vmatprep.subr.mxu0 0.0
    %899 = vmatpush1.msra.mxu0 0.0
    %900 = vmatprep.subr.mxu0 0.0
    %901 = vmatpush1.msra.mxu0 0.0
    %902 = vmatprep.subr.mxu0 0.0
    %903 = vmatpush1.msra.mxu0 0.0
    %904 = vmatprep.subr.mxu0 0.0
    %905 = vmatpush1.msra.mxu0 0.0
    %906 = vmatprep.subr.mxu0 0.0
    %907 = vmatpush1.msra.mxu0 0.0
    %908 = vmatprep.subr.mxu0 0.0
    %909 = vmatpush1.msra.mxu0 0.0
    %910 = vmatprep.subr.mxu0 0.0
    %911 = vmatpush1.msra.mxu0 0.0
    %912 = vmatprep.subr.mxu0 0.0
    %913 = vmatpush1.msra.mxu0 0.0
    %914 = vmatprep.subr.mxu0 0.0
    %915 = vmatpush1.msra.mxu0 0.0
    %916 = vmatprep.subr.mxu0 0.0
    %917 = vmatpush1.msra.mxu0 0.0
    %918 = vmatprep.subr.mxu0 0.0
    %919 = vmatpush1.msra.mxu0 0.0
    %920 = vmatprep.subr.mxu0 0.0
    %921 = vmatpush1.msra.mxu0 0.0
    %922 = vmatprep.subr.mxu0 0.0
    %923 = vmatpush1.msra.mxu0 0.0
    %924 = vmatprep.mubr.f32.mxu0 0.0
    %925 = vmatmul.mubr.f32.gmra.mrb[0].mxu0 %v855
    %v926 = vpop.f32.mrb[0].mxu0
    %v927 = vadd.f32 %v852, %v926
    %v928 = vpop.f32.mrb[0].mxu0
    %929 = vmatprep.mubr.f32.mxu0 0.0
    %930 = vmatmul.mubr.f32.gmra.mrb[0].mxu0 %v858
    %v931 = vpop.f32.mrb[0].mxu0
    %v932 = vadd.f32 %v852, %v931
    %v933 = vpop.f32.mrb[0].mxu0
    %934 = vdwg.mxu0
    %v935 = vmax.f32 %v927, 0.0
    %v936 = vmax.f32 %v932, 0.0
    %v937 = vld [vmem:[#allocation14] sm:$0xff]
    %v938 = vld [vmem:[#allocation14 + $0x8] sm:$0xff]
    %v939 = vld [vmem:[#allocation14 + $0x10] sm:$0xff]
    %v940 = vld [vmem:[#allocation14 + $0x18] sm:$0xff]
    %v941 = vld [vmem:[#allocation16] sm:$0x1]
    %v943 = vlaneseq
    %v944 = vshrl.u32 %v943, 7
    %v945 = vsub.s32 0, %v944
    %v946 = vrot.slane %v941, %v945
    %v949 = vsel %vm414, %v935, 0
    %v952 = vsel %vm414, %v936, 0
    %954 = vmatprep.subr.mxu0 0.0
    %955 = vmatpush1.msra.mxu0 %v937
    %956 = vmatprep.subr.mxu0 0.0
    %957 = vmatpush1.msra.mxu0 %v938
    %958 = vmatprep.subr.mxu0 0.0
    %959 = vmatpush1.msra.mxu0 %v939
    %960 = vmatprep.subr.mxu0 0.0
    %961 = vmatpush1.msra.mxu0 %v940
    %962 = vmatprep.subr.mxu0 0.0
    %963 = vmatpush1.msra.mxu0 0.0
    %964 = vmatprep.subr.mxu0 0.0
    %965 = vmatpush1.msra.mxu0 0.0
    %966 = vmatprep.subr.mxu0 0.0
    %967 = vmatpush1.msra.mxu0 0.0
    %968 = vmatprep.subr.mxu0 0.0
    %969 = vmatpush1.msra.mxu0 0.0
    %970 = vmatprep.subr.mxu0 0.0
    %971 = vmatpush1.msra.mxu0 0.0
    %972 = vmatprep.subr.mxu0 0.0
    %973 = vmatpush1.msra.mxu0 0.0
    %974 = vmatprep.subr.mxu0 0.0
    %975 = vmatpush1.msra.mxu0 0.0
    %976 = vmatprep.subr.mxu0 0.0
    %977 = vmatpush1.msra.mxu0 0.0
    %978 = vmatprep.subr.mxu0 0.0
    %979 = vmatpush1.msra.mxu0 0.0
    %980 = vmatprep.subr.mxu0 0.0
    %981 = vmatpush1.msra.mxu0 0.0
    %982 = vmatprep.subr.mxu0 0.0
    %983 = vmatpush1.msra.mxu0 0.0
    %984 = vmatprep.subr.mxu0 0.0
    %985 = vmatpush1.msra.mxu0 0.0
    %986 = vmatprep.subr.mxu0 0.0
    %987 = vmatpush1.msra.mxu0 0.0
    %988 = vmatprep.subr.mxu0 0.0
    %989 = vmatpush1.msra.mxu0 0.0
    %990 = vmatprep.subr.mxu0 0.0
    %991 = vmatpush1.msra.mxu0 0.0
    %992 = vmatprep.subr.mxu0 0.0
    %993 = vmatpush1.msra.mxu0 0.0
    %994 = vmatprep.subr.mxu0 0.0
    %995 = vmatpush1.msra.mxu0 0.0
    %996 = vmatprep.subr.mxu0 0.0
    %997 = vmatpush1.msra.mxu0 0.0
    %998 = vmatprep.subr.mxu0 0.0
    %999 = vmatpush1.msra.mxu0 0.0
    %1000 = vmatprep.subr.mxu0 0.0
    %1001 = vmatpush1.msra.mxu0 0.0
    %1002 = vmatprep.subr.mxu0 0.0
    %1003 = vmatpush1.msra.mxu0 0.0
    %1004 = vmatprep.subr.mxu0 0.0
    %1005 = vmatpush1.msra.mxu0 0.0
    %1006 = vmatprep.subr.mxu0 0.0
    %1007 = vmatpush1.msra.mxu0 0.0
    %1008 = vmatprep.subr.mxu0 0.0
    %1009 = vmatpush1.msra.mxu0 0.0
    %1010 = vmatprep.subr.mxu0 0.0
    %1011 = vmatpush1.msra.mxu0 0.0
    %1012 = vmatprep.subr.mxu0 0.0
    %1013 = vmatpush1.msra.mxu0 0.0
    %1014 = vmatprep.subr.mxu0 0.0
    %1015 = vmatpush1.msra.mxu0 0.0
    %1016 = vmatprep.subr.mxu0 0.0
    %1017 = vmatpush1.msra.mxu0 0.0
    %1018 = vmatprep.mubr.f32.mxu0 0.0
    %1019 = vmatmul.mubr.f32.gmra.mrb[0].mxu0 %v949
    %v1020 = vpop.f32.mrb[0].mxu0
    %v1021 = vadd.f32 %v946, %v1020
    %v1022 = vpop.f32.mrb[0].mxu0
    %1023 = vmatprep.mubr.f32.mxu0 0.0
    %1024 = vmatmul.mubr.f32.gmra.mrb[0].mxu0 %v952
    %v1025 = vpop.f32.mrb[0].mxu0
    %v1026 = vadd.f32 %v946, %v1025
    %v1027 = vpop.f32.mrb[0].mxu0
    %1028 = vdwg.mxu0
    %v1029 = vld [vmem:[#allocation17] sm:$0xff]
    %v1030 = vld [vmem:[#allocation17 + $0x8] sm:$0xff]
    %v1031 = vld [vmem:[#allocation17 + $0x10] sm:$0xff]
    %v1032 = vld [vmem:[#allocation17 + $0x18] sm:$0xff]
    %v1033 = vld [vmem:[#allocation19] sm:$0x1]
    %v1035 = vlaneseq
    %v1036 = vshrl.u32 %v1035, 7
    %v1037 = vsub.s32 0, %v1036
    %v1038 = vrot.slane %v1033, %v1037
    %v1041 = vsel %vm414, %v1021, 0
    %v1044 = vsel %vm414, %v1026, 0
    %1046 = vmatprep.subr.mxu0 0.0
    %1047 = vmatpush1.msra.mxu0 %v1029
    %1048 = vmatprep.subr.mxu0 0.0
    %1049 = vmatpush1.msra.mxu0 %v1030
    %1050 = vmatprep.subr.mxu0 0.0
    %1051 = vmatpush1.msra.mxu0 %v1031
    %1052 = vmatprep.subr.mxu0 0.0
    %1053 = vmatpush1.msra.mxu0 %v1032
    %1054 = vmatprep.subr.mxu0 0.0
    %1055 = vmatpush1.msra.mxu0 0.0
    %1056 = vmatprep.subr.mxu0 0.0
    %1057 = vmatpush1.msra.mxu0 0.0
    %1058 = vmatprep.subr.mxu0 0.0
    %1059 = vmatpush1.msra.mxu0 0.0
    %1060 = vmatprep.subr.mxu0 0.0
    %1061 = vmatpush1.msra.mxu0 0.0
    %1062 = vmatprep.subr.mxu0 0.0
    %1063 = vmatpush1.msra.mxu0 0.0
    %1064 = vmatprep.subr.mxu0 0.0
    %1065 = vmatpush1.msra.mxu0 0.0
    %1066 = vmatprep.subr.mxu0 0.0
    %1067 = vmatpush1.msra.mxu0 0.0
    %1068 = vmatprep.subr.mxu0 0.0
    %1069 = vmatpush1.msra.mxu0 0.0
    %1070 = vmatprep.subr.mxu0 0.0
    %1071 = vmatpush1.msra.mxu0 0.0
    %1072 = vmatprep.subr.mxu0 0.0
    %1073 = vmatpush1.msra.mxu0 0.0
    %1074 = vmatprep.subr.mxu0 0.0
    %1075 = vmatpush1.msra.mxu0 0.0
    %1076 = vmatprep.subr.mxu0 0.0
    %1077 = vmatpush1.msra.mxu0 0.0
    %1078 = vmatprep.subr.mxu0 0.0
    %1079 = vmatpush1.msra.mxu0 0.0
    %1080 = vmatprep.subr.mxu0 0.0
    %1081 = vmatpush1.msra.mxu0 0.0
    %1082 = vmatprep.subr.mxu0 0.0
    %1083 = vmatpush1.msra.mxu0 0.0
    %1084 = vmatprep.subr.mxu0 0.0
    %1085 = vmatpush1.msra.mxu0 0.0
    %1086 = vmatprep.subr.mxu0 0.0
    %1087 = vmatpush1.msra.mxu0 0.0
    %1088 = vmatprep.subr.mxu0 0.0
    %1089 = vmatpush1.msra.mxu0 0.0
    %1090 = vmatprep.subr.mxu0 0.0
    %1091 = vmatpush1.msra.mxu0 0.0
    %1092 = vmatprep.subr.mxu0 0.0
    %1093 = vmatpush1.msra.mxu0 0.0
    %1094 = vmatprep.subr.mxu0 0.0
    %1095 = vmatpush1.msra.mxu0 0.0
    %1096 = vmatprep.subr.mxu0 0.0
    %1097 = vmatpush1.msra.mxu0 0.0
    %1098 = vmatprep.subr.mxu0 0.0
    %1099 = vmatpush1.msra.mxu0 0.0
    %1100 = vmatprep.subr.mxu0 0.0
    %1101 = vmatpush1.msra.mxu0 0.0
    %1102 = vmatprep.subr.mxu0 0.0
    %1103 = vmatpush1.msra.mxu0 0.0
    %1104 = vmatprep.subr.mxu0 0.0
    %1105 = vmatpush1.msra.mxu0 0.0
    %1106 = vmatprep.subr.mxu0 0.0
    %1107 = vmatpush1.msra.mxu0 0.0
    %1108 = vmatprep.subr.mxu0 0.0
    %1109 = vmatpush1.msra.mxu0 0.0
    %1110 = vmatprep.mubr.f32.mxu0 0.0
    %1111 = vmatmul.mubr.f32.gmra.mrb[0].mxu0 %v1041
    %v1112 = vpop.f32.mrb[0].mxu0
    %v1113 = vadd.f32 %v1038, %v1112
    %v1114 = vpop.f32.mrb[0].mxu0
    %1115 = vmatprep.mubr.f32.mxu0 0.0
    %1116 = vmatmul.mubr.f32.gmra.mrb[0].mxu0 %v1044
    %v1117 = vpop.f32.mrb[0].mxu0
    %v1118 = vadd.f32 %v1038, %v1117
    %v1119 = vpop.f32.mrb[0].mxu0
    %1120 = vdwg.mxu0
    %v1121 = vmul.f32 %v1113, 0.17677669
    %v1122 = vmul.f32 %v1118, 0.17677669
    %v1123 = vld [vmem:[%s33] sm:$0xff]
    %v1124 = vld [vmem:[%s33 + $0x8] sm:$0xff]
    %v1125 = vld [vmem:[%s33 + $0x10] sm:$0xff]
    %v1126 = vld [vmem:[%s33 + $0x18] sm:$0xff]
    %v1127 = vld [vmem:[#allocation20] sm:$0x1]
    %v1129 = vlaneseq
    %v1130 = vshrl.u32 %v1129, 7
    %v1131 = vsub.s32 0, %v1130
    %v1132 = vrot.slane %v1127, %v1131
    %1134 = vmatprep.subr.mxu0 0.0
    %1135 = vmatpush1.msra.mxu0 %v1123
    %1136 = vmatprep.subr.mxu0 0.0
    %1137 = vmatpush1.msra.mxu0 %v1124
    %1138 = vmatprep.subr.mxu0 0.0
    %1139 = vmatpush1.msra.mxu0 %v1125
    %1140 = vmatprep.subr.mxu0 0.0
    %1141 = vmatpush1.msra.mxu0 %v1126
    %1142 = vmatprep.subr.mxu0 0.0
    %1143 = vmatpush1.msra.mxu0 0.0
    %1144 = vmatprep.subr.mxu0 0.0
    %1145 = vmatpush1.msra.mxu0 0.0
    %1146 = vmatprep.subr.mxu0 0.0
    %1147 = vmatpush1.msra.mxu0 0.0
    %1148 = vmatprep.subr.mxu0 0.0
    %1149 = vmatpush1.msra.mxu0 0.0
    %1150 = vmatprep.subr.mxu0 0.0
    %1151 = vmatpush1.msra.mxu0 0.0
    %1152 = vmatprep.subr.mxu0 0.0
    %1153 = vmatpush1.msra.mxu0 0.0
    %1154 = vmatprep.subr.mxu0 0.0
    %1155 = vmatpush1.msra.mxu0 0.0
    %1156 = vmatprep.subr.mxu0 0.0
    %1157 = vmatpush1.msra.mxu0 0.0
    %1158 = vmatprep.subr.mxu0 0.0
    %1159 = vmatpush1.msra.mxu0 0.0
    %1160 = vmatprep.subr.mxu0 0.0
    %1161 = vmatpush1.msra.mxu0 0.0
    %1162 = vmatprep.subr.mxu0 0.0
    %1163 = vmatpush1.msra.mxu0 0.0
    %1164 = vmatprep.subr.mxu0 0.0
    %1165 = vmatpush1.msra.mxu0 0.0
    %1166 = vmatprep.subr.mxu0 0.0
    %1167 = vmatpush1.msra.mxu0 0.0
    %1168 = vmatprep.subr.mxu0 0.0
    %1169 = vmatpush1.msra.mxu0 0.0
    %1170 = vmatprep.subr.mxu0 0.0
    %1171 = vmatpush1.msra.mxu0 0.0
    %1172 = vmatprep.subr.mxu0 0.0
    %1173 = vmatpush1.msra.mxu0 0.0
    %1174 = vmatprep.subr.mxu0 0.0
    %1175 = vmatpush1.msra.mxu0 0.0
    %1176 = vmatprep.subr.mxu0 0.0
    %1177 = vmatpush1.msra.mxu0 0.0
    %1178 = vmatprep.subr.mxu0 0.0
    %1179 = vmatpush1.msra.mxu0 0.0
    %1180 = vmatprep.subr.mxu0 0.0
    %1181 = vmatpush1.msra.mxu0 0.0
    %1182 = vmatprep.subr.mxu0 0.0
    %1183 = vmatpush1.msra.mxu0 0.0
    %1184 = vmatprep.subr.mxu0 0.0
    %1185 = vmatpush1.msra.mxu0 0.0
    %1186 = vmatprep.subr.mxu0 0.0
    %1187 = vmatpush1.msra.mxu0 0.0
    %1188 = vmatprep.subr.mxu0 0.0
    %1189 = vmatpush1.msra.mxu0 0.0
    %1190 = vmatprep.subr.mxu0 0.0
    %1191 = vmatpush1.msra.mxu0 0.0
    %1192 = vmatprep.subr.mxu0 0.0
    %1193 = vmatpush1.msra.mxu0 0.0
    %1194 = vmatprep.subr.mxu0 0.0
    %1195 = vmatpush1.msra.mxu0 0.0
    %1196 = vmatprep.subr.mxu0 0.0
    %1197 = vmatpush1.msra.mxu0 0.0
    %1198 = vmatprep.mubr.f32.mxu0 0.0
    %1199 = vmatmul.mubr.f32.gmra.mrb[0].mxu0 %v1041
    %v1200 = vpop.f32.mrb[0].mxu0
    %v1201 = vadd.f32 %v1132, %v1200
    %v1202 = vpop.f32.mrb[0].mxu0
    %1203 = vmatprep.mubr.f32.mxu0 0.0
    %1204 = vmatmul.mubr.f32.gmra.mrb[0].mxu0 %v1044
    %v1205 = vpop.f32.mrb[0].mxu0
    %v1206 = vadd.f32 %v1132, %v1205
    %v1207 = vpop.f32.mrb[0].mxu0
    %1208 = vdwg.mxu0
    %v1209 = vld [vmem:[#allocation22] sm:$0xff]
    %v1210 = vld [vmem:[#allocation22 + $0x8] sm:$0xff]
    %v1211 = vld [vmem:[#allocation22 + $0x10] sm:$0xff]
    %v1212 = vld [vmem:[#allocation22 + $0x18] sm:$0xff]
    %v1213 = vld [vmem:[#allocation23] sm:$0x1]
    %v1215 = vlaneseq
    %v1216 = vshrl.u32 %v1215, 7
    %v1217 = vsub.s32 0, %v1216
    %v1218 = vrot.slane %v1213, %v1217
    %1220 = vmatprep.subr.mxu0 0.0
    %1221 = vmatpush1.msra.mxu0 %v1209
    %1222 = vmatprep.subr.mxu0 0.0
    %1223 = vmatpush1.msra.mxu0 %v1210
    %1224 = vmatprep.subr.mxu0 0.0
    %1225 = vmatpush1.msra.mxu0 %v1211
    %1226 = vmatprep.subr.mxu0 0.0
    %1227 = vmatpush1.msra.mxu0 %v1212
    %1228 = vmatprep.subr.mxu0 0.0
    %1229 = vmatpush1.msra.mxu0 0.0
    %1230 = vmatprep.subr.mxu0 0.0
    %1231 = vmatpush1.msra.mxu0 0.0
    %1232 = vmatprep.subr.mxu0 0.0
    %1233 = vmatpush1.msra.mxu0 0.0
    %1234 = vmatprep.subr.mxu0 0.0
    %1235 = vmatpush1.msra.mxu0 0.0
    %1236 = vmatprep.subr.mxu0 0.0
    %1237 = vmatpush1.msra.mxu0 0.0
    %1238 = vmatprep.subr.mxu0 0.0
    %1239 = vmatpush1.msra.mxu0 0.0
    %1240 = vmatprep.subr.mxu0 0.0
    %1241 = vmatpush1.msra.mxu0 0.0
    %1242 = vmatprep.subr.mxu0 0.0
    %1243 = vmatpush1.msra.mxu0 0.0
    %1244 = vmatprep.subr.mxu0 0.0
    %1245 = vmatpush1.msra.mxu0 0.0
    %1246 = vmatprep.subr.mxu0 0.0
    %1247 = vmatpush1.msra.mxu0 0.0
    %1248 = vmatprep.subr.mxu0 0.0
    %1249 = vmatpush1.msra.mxu0 0.0
    %1250 = vmatprep.subr.mxu0 0.0
    %1251 = vmatpush1.msra.mxu0 0.0
    %1252 = vmatprep.subr.mxu0 0.0
    %1253 = vmatpush1.msra.mxu0 0.0
    %1254 = vmatprep.subr.mxu0 0.0
    %1255 = vmatpush1.msra.mxu0 0.0
    %1256 = vmatprep.subr.mxu0 0.0
    %1257 = vmatpush1.msra.mxu0 0.0
    %1258 = vmatprep.subr.mxu0 0.0
    %1259 = vmatpush1.msra.mxu0 0.0
    %1260 = vmatprep.subr.mxu0 0.0
    %1261 = vmatpush1.msra.mxu0 0.0
    %1262 = vmatprep.subr.mxu0 0.0
    %1263 = vmatpush1.msra.mxu0 0.0
    %1264 = vmatprep.subr.mxu0 0.0
    %1265 = vmatpush1.msra.mxu0 0.0
    %1266 = vmatprep.subr.mxu0 0.0
    %1267 = vmatpush1.msra.mxu0 0.0
    %1268 = vmatprep.subr.mxu0 0.0
    %1269 = vmatpush1.msra.mxu0 0.0
    %1270 = vmatprep.subr.mxu0 0.0
    %1271 = vmatpush1.msra.mxu0 0.0
    %1272 = vmatprep.subr.mxu0 0.0
    %1273 = vmatpush1.msra.mxu0 0.0
    %1274 = vmatprep.subr.mxu0 0.0
    %1275 = vmatpush1.msra.mxu0 0.0
    %1276 = vmatprep.subr.mxu0 0.0
    %1277 = vmatpush1.msra.mxu0 0.0
    %1278 = vmatprep.subr.mxu0 0.0
    %1279 = vmatpush1.msra.mxu0 0.0
    %1280 = vmatprep.subr.mxu0 0.0
    %1281 = vmatpush1.msra.mxu0 0.0
    %1282 = vmatprep.subr.mxu0 0.0
    %1283 = vmatpush1.msra.mxu0 0.0
    %1284 = vmatprep.mubr.f32.mxu0 0.0
    %1285 = vmatmul.mubr.f32.gmra.mrb[0].mxu0 %v1041
    %v1286 = vpop.f32.mrb[0].mxu0
    %v1287 = vadd.f32 %v1218, %v1286
    %v1288 = vpop.f32.mrb[0].mxu0
    %1289 = vmatprep.mubr.f32.mxu0 0.0
    %1290 = vmatmul.mubr.f32.gmra.mrb[0].mxu0 %v1044
    %v1291 = vpop.f32.mrb[0].mxu0
    %v1292 = vadd.f32 %v1218, %v1291
    %v1293 = vpop.f32.mrb[0].mxu0
    %1294 = vdwg.mxu0
    %v1295 = vld [vmem:[%s11] sm:$0xff]
    %v1296 = vld [vmem:[%s11 + $0x8] sm:$0xff]
    %v1297 = vld [vmem:[%s11 + $0x10] sm:$0xff]
    %v1298 = vld [vmem:[%s11 + $0x18] sm:$0xff]
    %v1299 = vld [vmem:[%s41] sm:$0xff]
    %v1301 = vsel %vm590, %v1295, 0
    %v1304 = vsel %vm590, %v1296, 0
    %v1307 = vsel %vm590, %v1297, 0
    %v1310 = vsel %vm590, %v1298, 0
    %1312 = vmatprep.subr.mxu0 0.0
    %1313 = vmatpush1.msra.mxu0 %v1299
    %1314 = vmatprep.subr.mxu0 0.0
    %1315 = vmatpush1.msra.mxu0 0.0
    %1316 = vmatprep.subr.mxu0 0.0
    %1317 = vmatpush1.msra.mxu0 0.0
    %1318 = vmatprep.subr.mxu0 0.0
    %1319 = vmatpush1.msra.mxu0 0.0
    %1320 = vmatprep.subr.mxu0 0.0
    %1321 = vmatpush1.msra.mxu0 0.0
    %1322 = vmatprep.subr.mxu0 0.0
    %1323 = vmatpush1.msra.mxu0 0.0
    %1324 = vmatprep.subr.mxu0 0.0
    %1325 = vmatpush1.msra.mxu0 0.0
    %1326 = vmatprep.subr.mxu0 0.0
    %1327 = vmatpush1.msra.mxu0 0.0
    %1328 = vmatprep.subr.mxu0 0.0
    %1329 = vmatpush1.msra.mxu0 0.0
    %1330 = vmatprep.subr.mxu0 0.0
    %1331 = vmatpush1.msra.mxu0 0.0
    %1332 = vmatprep.subr.mxu0 0.0
    %1333 = vmatpush1.msra.mxu0 0.0
    %1334 = vmatprep.subr.mxu0 0.0
    %1335 = vmatpush1.msra.mxu0 0.0
    %1336 = vmatprep.subr.mxu0 0.0
    %1337 = vmatpush1.msra.mxu0 0.0
    %1338 = vmatprep.subr.mxu0 0.0
    %1339 = vmatpush1.msra.mxu0 0.0
    %1340 = vmatprep.subr.mxu0 0.0
    %1341 = vmatpush1.msra.mxu0 0.0
    %1342 = vmatprep.subr.mxu0 0.0
    %1343 = vmatpush1.msra.mxu0 0.0
    %1344 = vmatprep.subr.mxu0 0.0
    %1345 = vmatpush1.msra.mxu0 0.0
    %1346 = vmatprep.subr.mxu0 0.0
    %1347 = vmatpush1.msra.mxu0 0.0
    %1348 = vmatprep.subr.mxu0 0.0
    %1349 = vmatpush1.msra.mxu0 0.0
    %1350 = vmatprep.subr.mxu0 0.0
    %1351 = vmatpush1.msra.mxu0 0.0
    %1352 = vmatprep.subr.mxu0 0.0
    %1353 = vmatpush1.msra.mxu0 0.0
    %1354 = vmatprep.subr.mxu0 0.0
    %1355 = vmatpush1.msra.mxu0 0.0
    %1356 = vmatprep.subr.mxu0 0.0
    %1357 = vmatpush1.msra.mxu0 0.0
    %1358 = vmatprep.subr.mxu0 0.0
    %1359 = vmatpush1.msra.mxu0 0.0
    %1360 = vmatprep.subr.mxu0 0.0
    %1361 = vmatpush1.msra.mxu0 0.0
    %1362 = vmatprep.subr.mxu0 0.0
    %1363 = vmatpush1.msra.mxu0 0.0
    %1364 = vmatprep.subr.mxu0 0.0
    %1365 = vmatpush1.msra.mxu0 0.0
    %1366 = vmatprep.subr.mxu0 0.0
    %1367 = vmatpush1.msra.mxu0 0.0
    %1368 = vmatprep.subr.mxu0 0.0
    %1369 = vmatpush1.msra.mxu0 0.0
    %1370 = vmatprep.subr.mxu0 0.0
    %1371 = vmatpush1.msra.mxu0 0.0
    %1372 = vmatprep.subr.mxu0 0.0
    %1373 = vmatpush1.msra.mxu0 0.0
    %1374 = vmatprep.subr.mxu0 0.0
    %1375 = vmatpush1.msra.mxu0 0.0
    %1376 = vmatprep.mubr.f32.mxu0 0.0
    %1377 = vmatmul.mubr.f32.gmra.mrb[0].mxu0 %v1301
    %v1378 = vpop.f32.mrb[0].mxu0
    %v1379 = vadd.f32 0.0, %v1378
    %v1380 = vpop.f32.mrb[0].mxu0
    %1381 = vmatprep.mubr.f32.mxu0 0.0
    %1382 = vmatmul.mubr.f32.gmra.mrb[0].mxu0 %v1304
    %v1383 = vpop.f32.mrb[0].mxu0
    %v1384 = vadd.f32 0.0, %v1383
    %v1385 = vpop.f32.mrb[0].mxu0
    %1386 = vmatprep.mubr.f32.mxu0 0.0
    %1387 = vmatmul.mubr.f32.gmra.mrb[0].mxu0 %v1307
    %v1388 = vpop.f32.mrb[0].mxu0
    %v1389 = vadd.f32 0.0, %v1388
    %v1390 = vpop.f32.mrb[0].mxu0
    %1391 = vmatprep.mubr.f32.mxu0 0.0
    %1392 = vmatmul.mubr.f32.gmra.mrb[0].mxu0 %v1310
    %v1393 = vpop.f32.mrb[0].mxu0
    %v1394 = vadd.f32 0.0, %v1393
    %v1395 = vpop.f32.mrb[0].mxu0
    %1396 = vdwg.mxu0
    %v1398 = vsel %vm498, %v398, 0
    %v1401 = vsel %vm498, %v399, 0
    %v1404 = vsel %vm498, %v400, 0
    %v1407 = vsel %vm498, %v401, 0
    %1409 = vmatprep.subr.mxu0 0.0
    %1410 = vmatpush1.msra.mxu0 %v1121
    %1411 = vmatprep.subr.mxu0 0.0
    %1412 = vmatpush1.msra.mxu0 %v1122
    %1413 = vmatprep.subr.mxu0 0.0
    %1414 = vmatpush1.msra.mxu0 0.0
    %1415 = vmatprep.subr.mxu0 0.0
    %1416 = vmatpush1.msra.mxu0 0.0
    %1417 = vmatprep.subr.mxu0 0.0
    %1418 = vmatpush1.msra.mxu0 0.0
    %1419 = vmatprep.subr.mxu0 0.0
    %1420 = vmatpush1.msra.mxu0 0.0
    %1421 = vmatprep.subr.mxu0 0.0
    %1422 = vmatpush1.msra.mxu0 0.0
    %1423 = vmatprep.subr.mxu0 0.0
    %1424 = vmatpush1.msra.mxu0 0.0
    %1425 = vmatprep.subr.mxu0 0.0
    %1426 = vmatpush1.msra.mxu0 0.0
    %1427 = vmatprep.subr.mxu0 0.0
    %1428 = vmatpush1.msra.mxu0 0.0
    %1429 = vmatprep.subr.mxu0 0.0
    %1430 = vmatpush1.msra.mxu0 0.0
    %1431 = vmatprep.subr.mxu0 0.0
    %1432 = vmatpush1.msra.mxu0 0.0
    %1433 = vmatprep.subr.mxu0 0.0
    %1434 = vmatpush1.msra.mxu0 0.0
    %1435 = vmatprep.subr.mxu0 0.0
    %1436 = vmatpush1.msra.mxu0 0.0
    %1437 = vmatprep.subr.mxu0 0.0
    %1438 = vmatpush1.msra.mxu0 0.0
    %1439 = vmatprep.subr.mxu0 0.0
    %1440 = vmatpush1.msra.mxu0 0.0
    %1441 = vmatprep.subr.mxu0 0.0
    %1442 = vmatpush1.msra.mxu0 0.0
    %1443 = vmatprep.subr.mxu0 0.0
    %1444 = vmatpush1.msra.mxu0 0.0
    %1445 = vmatprep.subr.mxu0 0.0
    %1446 = vmatpush1.msra.mxu0 0.0
    %1447 = vmatprep.subr.mxu0 0.0
    %1448 = vmatpush1.msra.mxu0 0.0
    %1449 = vmatprep.subr.mxu0 0.0
    %1450 = vmatpush1.msra.mxu0 0.0
    %1451 = vmatprep.subr.mxu0 0.0
    %1452 = vmatpush1.msra.mxu0 0.0
    %1453 = vmatprep.subr.mxu0 0.0
    %1454 = vmatpush1.msra.mxu0 0.0
    %1455 = vmatprep.subr.mxu0 0.0
    %1456 = vmatpush1.msra.mxu0 0.0
    %1457 = vmatprep.subr.mxu0 0.0
    %1458 = vmatpush1.msra.mxu0 0.0
    %1459 = vmatprep.subr.mxu0 0.0
    %1460 = vmatpush1.msra.mxu0 0.0
    %1461 = vmatprep.subr.mxu0 0.0
    %1462 = vmatpush1.msra.mxu0 0.0
    %1463 = vmatprep.subr.mxu0 0.0
    %1464 = vmatpush1.msra.mxu0 0.0
    %1465 = vmatprep.subr.mxu0 0.0
    %1466 = vmatpush1.msra.mxu0 0.0
    %1467 = vmatprep.subr.mxu0 0.0
    %1468 = vmatpush1.msra.mxu0 0.0
    %1469 = vmatprep.subr.mxu0 0.0
    %1470 = vmatpush1.msra.mxu0 0.0
    %1471 = vmatprep.subr.mxu0 0.0
    %1472 = vmatpush1.msra.mxu0 0.0
    %1473 = vmatprep.mubr.f32.mxu0 0.0
    %1474 = vmatmul.mubr.f32.gmra.mrb[0].mxu0 %v1398
    %v1475 = vpop.f32.mrb[0].mxu0
    %v1476 = vadd.f32 0.0, %v1475
    %v1477 = vpop.f32.mrb[0].mxu0
    %1478 = vmatprep.mubr.f32.mxu0 0.0
    %1479 = vmatmul.mubr.f32.gmra.mrb[0].mxu0 %v1401
    %v1480 = vpop.f32.mrb[0].mxu0
    %v1481 = vadd.f32 0.0, %v1480
    %v1482 = vpop.f32.mrb[0].mxu0
    %1483 = vmatprep.mubr.f32.mxu0 0.0
    %1484 = vmatmul.mubr.f32.gmra.mrb[0].mxu0 %v1404
    %v1485 = vpop.f32.mrb[0].mxu0
    %v1486 = vadd.f32 0.0, %v1485
    %v1487 = vpop.f32.mrb[0].mxu0
    %1488 = vmatprep.mubr.f32.mxu0 0.0
    %1489 = vmatmul.mubr.f32.gmra.mrb[0].mxu0 %v1407
    %v1490 = vpop.f32.mrb[0].mxu0
    %v1491 = vadd.f32 0.0, %v1490
    %v1492 = vpop.f32.mrb[0].mxu0
    %1493 = vdwg.mxu0
    %v1495 = vsel %vm498, %v374, 0
    %v1498 = vsel %vm498, %v375, 0
    %v1501 = vsel %vm498, %v376, 0
    %v1504 = vsel %vm498, %v377, 0
    %1506 = vmatprep.subr.mxu0 0.0
    %1507 = vmatpush1.msra.mxu0 %v1201
    %1508 = vmatprep.subr.mxu0 0.0
    %1509 = vmatpush1.msra.mxu0 %v1206
    %1510 = vmatprep.subr.mxu0 0.0
    %1511 = vmatpush1.msra.mxu0 0.0
    %1512 = vmatprep.subr.mxu0 0.0
    %1513 = vmatpush1.msra.mxu0 0.0
    %1514 = vmatprep.subr.mxu0 0.0
    %1515 = vmatpush1.msra.mxu0 0.0
    %1516 = vmatprep.subr.mxu0 0.0
    %1517 = vmatpush1.msra.mxu0 0.0
    %1518 = vmatprep.subr.mxu0 0.0
    %1519 = vmatpush1.msra.mxu0 0.0
    %1520 = vmatprep.subr.mxu0 0.0
    %1521 = vmatpush1.msra.mxu0 0.0
    %1522 = vmatprep.subr.mxu0 0.0
    %1523 = vmatpush1.msra.mxu0 0.0
    %1524 = vmatprep.subr.mxu0 0.0
    %1525 = vmatpush1.msra.mxu0 0.0
    %1526 = vmatprep.subr.mxu0 0.0
    %1527 = vmatpush1.msra.mxu0 0.0
    %1528 = vmatprep.subr.mxu0 0.0
    %1529 = vmatpush1.msra.mxu0 0.0
    %1530 = vmatprep.subr.mxu0 0.0
    %1531 = vmatpush1.msra.mxu0 0.0
    %1532 = vmatprep.subr.mxu0 0.0
    %1533 = vmatpush1.msra.mxu0 0.0
    %1534 = vmatprep.subr.mxu0 0.0
    %1535 = vmatpush1.msra.mxu0 0.0
    %1536 = vmatprep.subr.mxu0 0.0
    %1537 = vmatpush1.msra.mxu0 0.0
    %1538 = vmatprep.subr.mxu0 0.0
    %1539 = vmatpush1.msra.mxu0 0.0
    %1540 = vmatprep.subr.mxu0 0.0
    %1541 = vmatpush1.msra.mxu0 0.0
    %1542 = vmatprep.subr.mxu0 0.0
    %1543 = vmatpush1.msra.mxu0 0.0
    %1544 = vmatprep.subr.mxu0 0.0
    %1545 = vmatpush1.msra.mxu0 0.0
    %1546 = vmatprep.subr.mxu0 0.0
    %1547 = vmatpush1.msra.mxu0 0.0
    %1548 = vmatprep.subr.mxu0 0.0
    %1549 = vmatpush1.msra.mxu0 0.0
    %1550 = vmatprep.subr.mxu0 0.0
    %1551 = vmatpush1.msra.mxu0 0.0
    %1552 = vmatprep.subr.mxu0 0.0
    %1553 = vmatpush1.msra.mxu0 0.0
    %1554 = vmatprep.subr.mxu0 0.0
    %1555 = vmatpush1.msra.mxu0 0.0
    %1556 = vmatprep.subr.mxu0 0.0
    %1557 = vmatpush1.msra.mxu0 0.0
    %1558 = vmatprep.subr.mxu0 0.0
    %1559 = vmatpush1.msra.mxu0 0.0
    %1560 = vmatprep.subr.mxu0 0.0
    %1561 = vmatpush1.msra.mxu0 0.0
    %1562 = vmatprep.subr.mxu0 0.0
    %1563 = vmatpush1.msra.mxu0 0.0
    %1564 = vmatprep.subr.mxu0 0.0
    %1565 = vmatpush1.msra.mxu0 0.0
    %1566 = vmatprep.subr.mxu0 0.0
    %1567 = vmatpush1.msra.mxu0 0.0
    %1568 = vmatprep.subr.mxu0 0.0
    %1569 = vmatpush1.msra.mxu0 0.0
    %1570 = vmatprep.mubr.f32.mxu0 0.0
    %1571 = vmatmul.mubr.f32.gmra.mrb[0].mxu0 %v1495
    %v1572 = vpop.f32.mrb[0].mxu0
    %v1573 = vadd.f32 %v1379, %v1572
    %v1574 = vpop.f32.mrb[0].mxu0
    %1575 = vmatprep.mubr.f32.mxu0 0.0
    %1576 = vmatmul.mubr.f32.gmra.mrb[0].mxu0 %v1498
    %v1577 = vpop.f32.mrb[0].mxu0
    %v1578 = vadd.f32 %v1384, %v1577
    %v1579 = vpop.f32.mrb[0].mxu0
    %1580 = vmatprep.mubr.f32.mxu0 0.0
    %1581 = vmatmul.mubr.f32.gmra.mrb[0].mxu0 %v1501
    %v1582 = vpop.f32.mrb[0].mxu0
    %v1583 = vadd.f32 %v1389, %v1582
    %v1584 = vpop.f32.mrb[0].mxu0
    %1585 = vmatprep.mubr.f32.mxu0 0.0
    %1586 = vmatmul.mubr.f32.gmra.mrb[0].mxu0 %v1504
    %v1587 = vpop.f32.mrb[0].mxu0
    %v1588 = vadd.f32 %v1394, %v1587
    %v1589 = vpop.f32.mrb[0].mxu0
    %1590 = vdwg.mxu0
    %1591 = vmatprep.subr.mxu0 0.0
    %1592 = vmatpush1.msra.mxu0 %v1287
    %1593 = vmatprep.subr.mxu0 0.0
    %1594 = vmatpush1.msra.mxu0 %v1292
    %1595 = vmatprep.subr.mxu0 0.0
    %1596 = vmatpush1.msra.mxu0 0.0
    %1597 = vmatprep.subr.mxu0 0.0
    %1598 = vmatpush1.msra.mxu0 0.0
    %1599 = vmatprep.subr.mxu0 0.0
    %1600 = vmatpush1.msra.mxu0 0.0
    %1601 = vmatprep.subr.mxu0 0.0
    %1602 = vmatpush1.msra.mxu0 0.0
    %1603 = vmatprep.subr.mxu0 0.0
    %1604 = vmatpush1.msra.mxu0 0.0
    %1605 = vmatprep.subr.mxu0 0.0
    %1606 = vmatpush1.msra.mxu0 0.0
    %1607 = vmatprep.subr.mxu0 0.0
    %1608 = vmatpush1.msra.mxu0 0.0
    %1609 = vmatprep.subr.mxu0 0.0
    %1610 = vmatpush1.msra.mxu0 0.0
    %1611 = vmatprep.subr.mxu0 0.0
    %1612 = vmatpush1.msra.mxu0 0.0
    %1613 = vmatprep.subr.mxu0 0.0
    %1614 = vmatpush1.msra.mxu0 0.0
    %1615 = vmatprep.subr.mxu0 0.0
    %1616 = vmatpush1.msra.mxu0 0.0
    %1617 = vmatprep.subr.mxu0 0.0
    %1618 = vmatpush1.msra.mxu0 0.0
    %1619 = vmatprep.subr.mxu0 0.0
    %1620 = vmatpush1.msra.mxu0 0.0
    %1621 = vmatprep.subr.mxu0 0.0
    %1622 = vmatpush1.msra.mxu0 0.0
    %1623 = vmatprep.subr.mxu0 0.0
    %1624 = vmatpush1.msra.mxu0 0.0
    %1625 = vmatprep.subr.mxu0 0.0
    %1626 = vmatpush1.msra.mxu0 0.0
    %1627 = vmatprep.subr.mxu0 0.0
    %1628 = vmatpush1.msra.mxu0 0.0
    %1629 = vmatprep.subr.mxu0 0.0
    %1630 = vmatpush1.msra.mxu0 0.0
    %1631 = vmatprep.subr.mxu0 0.0
    %1632 = vmatpush1.msra.mxu0 0.0
    %1633 = vmatprep.subr.mxu0 0.0
    %1634 = vmatpush1.msra.mxu0 0.0
    %1635 = vmatprep.subr.mxu0 0.0
    %1636 = vmatpush1.msra.mxu0 0.0
    %1637 = vmatprep.subr.mxu0 0.0
    %1638 = vmatpush1.msra.mxu0 0.0
    %1639 = vmatprep.subr.mxu0 0.0
    %1640 = vmatpush1.msra.mxu0 0.0
    %1641 = vmatprep.subr.mxu0 0.0
    %1642 = vmatpush1.msra.mxu0 0.0
    %1643 = vmatprep.subr.mxu0 0.0
    %1644 = vmatpush1.msra.mxu0 0.0
    %1645 = vmatprep.subr.mxu0 0.0
    %1646 = vmatpush1.msra.mxu0 0.0
    %1647 = vmatprep.subr.mxu0 0.0
    %1648 = vmatpush1.msra.mxu0 0.0
    %1649 = vmatprep.subr.mxu0 0.0
    %1650 = vmatpush1.msra.mxu0 0.0
    %1651 = vmatprep.subr.mxu0 0.0
    %1652 = vmatpush1.msra.mxu0 0.0
    %1653 = vmatprep.subr.mxu0 0.0
    %1654 = vmatpush1.msra.mxu0 0.0
    %1655 = vmatprep.mubr.f32.mxu0 0.0
    %1656 = vmatmul.mubr.f32.gmra.mrb[0].mxu0 %v1495
    %v1657 = vpop.f32.mrb[0].mxu0
    %v1658 = vadd.f32 %v1379, %v1657
    %v1659 = vpop.f32.mrb[0].mxu0
    %1660 = vmatprep.mubr.f32.mxu0 0.0
    %1661 = vmatmul.mubr.f32.gmra.mrb[0].mxu0 %v1498
    %v1662 = vpop.f32.mrb[0].mxu0
    %v1663 = vadd.f32 %v1384, %v1662
    %v1664 = vpop.f32.mrb[0].mxu0
    %1665 = vmatprep.mubr.f32.mxu0 0.0
    %1666 = vmatmul.mubr.f32.gmra.mrb[0].mxu0 %v1501
    %v1667 = vpop.f32.mrb[0].mxu0
    %v1668 = vadd.f32 %v1389, %v1667
    %v1669 = vpop.f32.mrb[0].mxu0
    %1670 = vmatprep.mubr.f32.mxu0 0.0
    %1671 = vmatmul.mubr.f32.gmra.mrb[0].mxu0 %v1504
    %v1672 = vpop.f32.mrb[0].mxu0
    %v1673 = vadd.f32 %v1394, %v1672
    %v1674 = vpop.f32.mrb[0].mxu0
    %1675 = vdwg.mxu0
    %v1676 = vmul.f32 %v1476, %v1573
    %v1677 = vmul.f32 %v1481, %v1578
    %v1678 = vmul.f32 %v1486, %v1583
    %v1679 = vmul.f32 %v1491, %v1588
    %v1680 = vsel %vm414, %v1676, 0.0
    %1681 = vadd.xlane.f32.xlu0 %v1680
    %v1682 = vpop.xlane.xlu0 %1681
    %v1683 = vsel %vm414, %v1677, 0.0
    %1684 = vadd.xlane.f32.xlu0 %v1683
    %v1685 = vpop.xlane.xlu0 %1684
    %v1686 = vsel %vm414, %v1678, 0.0
    %1687 = vadd.xlane.f32.xlu0 %v1686
    %v1688 = vpop.xlane.xlu0 %1687
    %v1689 = vsel %vm414, %v1679, 0.0
    %1690 = vadd.xlane.f32.xlu0 %v1689
    %v1691 = vpop.xlane.xlu0 %1690
    %v1692 = vmul.f32 %v1682, %v398
    %v1693 = vmul.f32 %v1685, %v399
    %v1694 = vmul.f32 %v1688, %v400
    %v1695 = vmul.f32 %v1691, %v401
    %v1696 = vsub.f32 %v398, 1.0
    %v1697 = vsub.f32 %v399, 1.0
    %v1698 = vsub.f32 %v400, 1.0
    %v1699 = vsub.f32 %v401, 1.0
    %v1700 = vmul.f32 %v1696, 1e+30
    %v1701 = vmul.f32 %v1697, 1e+30
    %v1702 = vmul.f32 %v1698, 1e+30
    %v1703 = vmul.f32 %v1699, 1e+30
    %v1704 = vadd.f32 %v1692, %v1700
    %v1705 = vadd.f32 %v1693, %v1701
    %v1706 = vadd.f32 %v1694, %v1702
    %v1707 = vadd.f32 %v1695, %v1703
    %v1708 = vsel %vm498, %v1704, -inf
    %v1709 = vsel %vm498, %v1705, -inf
    %v1710 = vsel %vm498, %v1706, -inf
    %v1711 = vsel %vm498, %v1707, -inf
    %v1712 = vmax.f32 %v1708, %v1709
    %v1713 = vmax.f32 %v1710, %v1711
    %v1714 = vmax.f32 %v1712, %v1713
    %v1715 = vrot.slane %v1714, 4
    %v1716 = vmax.f32 %v1714, %v1715
    %v1717 = vrot.slane %v1716, 2
    %v1718 = vmax.f32 %v1716, %v1717
    %v1719 = vrot.slane %v1718, 1
    %v1720 = vmax.f32 %v1718, %v1719
    %v1721 = vmul.f32 %v398, %v1720
    %v1722 = vmul.f32 %v399, %v1720
    %v1723 = vmul.f32 %v400, %v1720
    %v1724 = vmul.f32 %v401, %v1720
    %v1725 = vsel %vm498, %v1721, 0.0
    %1726 = vadd.xlane.f32.xlu0 %v1725
    %v1727 = vpop.xlane.xlu0 %1726
    %v1728 = vsel %vm498, %v1722, 0.0
    %1729 = vadd.xlane.f32.xlu0 %v1728
    %v1730 = vpop.xlane.xlu0 %1729
    %v1731 = vsel %vm498, %v1723, 0.0
    %1732 = vadd.xlane.f32.xlu0 %v1731
    %v1733 = vpop.xlane.xlu0 %1732
    %v1734 = vsel %vm498, %v1724, 0.0
    %1735 = vadd.xlane.f32.xlu0 %v1734
    %v1736 = vpop.xlane.xlu0 %1735
    %v1737 = vsub.f32 %v1682, %v1727
    %v1738 = vsub.f32 %v1685, %v1730
    %v1739 = vsub.f32 %v1688, %v1733
    %v1740 = vsub.f32 %v1691, %v1736
    %v1741 = vmul.f32 %v1737, 1.442695
    %v1742 = vpow.pop %v1741
    %v1743 = vmul.f32 %v1738, 1.442695
    %v1744 = vpow.pop %v1743
    %v1745 = vmul.f32 %v1739, 1.442695
    %v1746 = vpow.pop %v1745
    %v1747 = vmul.f32 %v1740, 1.442695
    %v1748 = vpow.pop %v1747
    %1753 = vrot.lane.b32.xlu0 %v1676, 96
    %v1754 = vpop.permute.xlu0 %1753
    %1755 = vrot.lane.b32.xlu0 %v1677, 96
    %v1756 = vpop.permute.xlu0 %1755
    %1757 = vrot.lane.b32.xlu0 %v1678, 96
    %v1758 = vpop.permute.xlu0 %1757
    %1759 = vrot.lane.b32.xlu0 %v1679, 96
    %v1760 = vpop.permute.xlu0 %1759
    %v1765 = vsel %vm414, %v1754, 0.0
    %1766 = vadd.xlane.f32.xlu0 %v1765
    %v1767 = vpop.xlane.xlu0 %1766
    %v1768 = vsel %vm414, %v1756, 0.0
    %1769 = vadd.xlane.f32.xlu0 %v1768
    %v1770 = vpop.xlane.xlu0 %1769
    %v1771 = vsel %vm414, %v1758, 0.0
    %1772 = vadd.xlane.f32.xlu0 %v1771
    %v1773 = vpop.xlane.xlu0 %1772
    %v1774 = vsel %vm414, %v1760, 0.0
    %1775 = vadd.xlane.f32.xlu0 %v1774
    %v1776 = vpop.xlane.xlu0 %1775
    %v1777 = vmul.f32 %v1767, %v398
    %v1778 = vmul.f32 %v1770, %v399
    %v1779 = vmul.f32 %v1773, %v400
    %v1780 = vmul.f32 %v1776, %v401
    %v1781 = vadd.f32 %v1777, %v1700
    %v1782 = vadd.f32 %v1778, %v1701
    %v1783 = vadd.f32 %v1779, %v1702
    %v1784 = vadd.f32 %v1780, %v1703
    %v1785 = vsel %vm498, %v1781, -inf
    %v1786 = vsel %vm498, %v1782, -inf
    %v1787 = vsel %vm498, %v1783, -inf
    %v1788 = vsel %vm498, %v1784, -inf
    %v1789 = vmax.f32 %v1785, %v1786
    %v1790 = vmax.f32 %v1787, %v1788
    %v1791 = vmax.f32 %v1789, %v1790
    %v1792 = vrot.slane %v1791, 4
    %v1793 = vmax.f32 %v1791, %v1792
    %v1794 = vrot.slane %v1793, 2
    %v1795 = vmax.f32 %v1793, %v1794
    %v1796 = vrot.slane %v1795, 1
    %v1797 = vmax.f32 %v1795, %v1796
    %v1798 = vmul.f32 %v398, %v1797
    %v1799 = vmul.f32 %v399, %v1797
    %v1800 = vmul.f32 %v400, %v1797
    %v1801 = vmul.f32 %v401, %v1797
    %v1802 = vsel %vm498, %v1798, 0.0
    %1803 = vadd.xlane.f32.xlu0 %v1802
    %v1804 = vpop.xlane.xlu0 %1803
    %v1805 = vsel %vm498, %v1799, 0.0
    %1806 = vadd.xlane.f32.xlu0 %v1805
    %v1807 = vpop.xlane.xlu0 %1806
    %v1808 = vsel %vm498, %v1800, 0.0
    %1809 = vadd.xlane.f32.xlu0 %v1808
    %v1810 = vpop.xlane.xlu0 %1809
    %v1811 = vsel %vm498, %v1801, 0.0
    %1812 = vadd.xlane.f32.xlu0 %v1811
    %v1813 = vpop.xlane.xlu0 %1812
    %v1814 = vsub.f32 %v1767, %v1804
    %v1815 = vsub.f32 %v1770, %v1807
    %v1816 = vsub.f32 %v1773, %v1810
    %v1817 = vsub.f32 %v1776, %v1813
    %v1818 = vmul.f32 %v1814, 1.442695
    %v1819 = vpow.pop %v1818
    %v1820 = vmul.f32 %v1815, 1.442695
    %v1821 = vpow.pop %v1820
    %v1822 = vmul.f32 %v1816, 1.442695
    %v1823 = vpow.pop %v1822
    %v1824 = vmul.f32 %v1817, 1.442695
    %v1825 = vpow.pop %v1824
    %vm1826 = vcmask 7168
    %v1827 = vsel %vm1826, %v1742, %v1819
    %v1828 = vsel %vm1826, %v1744, %v1821
    %v1829 = vsel %vm1826, %v1746, %v1823
    %v1830 = vsel %vm1826, %v1748, %v1825
    %1831 = vmatprep.subr.mxu0 0.0
    %1832 = vmatpush1.msra.mxu0 %v1827
    %1833 = vmatprep.subr.mxu0 0.0
    %1834 = vmatpush1.msra.mxu0 %v1828
    %1835 = vmatprep.subr.mxu0 0.0
    %1836 = vmatpush1.msra.mxu0 %v1829
    %1837 = vmatprep.subr.mxu0 0.0
    %1838 = vmatpush1.msra.mxu0 %v1830
    %1839 = vmatprep.subr.mxu0 0.0
    %1840 = vmatpush1.msra.mxu0 0.0
    %1841 = vmatprep.subr.mxu0 0.0
    %1842 = vmatpush1.msra.mxu0 0.0
    %1843 = vmatprep.subr.mxu0 0.0
    %1844 = vmatpush1.msra.mxu0 0.0
    %1845 = vmatprep.subr.mxu0 0.0
    %1846 = vmatpush1.msra.mxu0 0.0
    %1847 = vmatprep.subr.mxu0 0.0
    %1848 = vmatpush1.msra.mxu0 0.0
    %1849 = vmatprep.subr.mxu0 0.0
    %1850 = vmatpush1.msra.mxu0 0.0
    %1851 = vmatprep.subr.mxu0 0.0
    %1852 = vmatpush1.msra.mxu0 0.0
    %1853 = vmatprep.subr.mxu0 0.0
    %1854 = vmatpush1.msra.mxu0 0.0
    %1855 = vmatprep.subr.mxu0 0.0
    %1856 = vmatpush1.msra.mxu0 0.0
    %1857 = vmatprep.subr.mxu0 0.0
    %1858 = vmatpush1.msra.mxu0 0.0
    %1859 = vmatprep.subr.mxu0 0.0
    %1860 = vmatpush1.msra.mxu0 0.0
    %1861 = vmatprep.subr.mxu0 0.0
    %1862 = vmatpush1.msra.mxu0 0.0
    %1863 = vmatprep.subr.mxu0 0.0
    %1864 = vmatpush1.msra.mxu0 0.0
    %1865 = vmatprep.subr.mxu0 0.0
    %1866 = vmatpush1.msra.mxu0 0.0
    %1867 = vmatprep.subr.mxu0 0.0
    %1868 = vmatpush1.msra.mxu0 0.0
    %1869 = vmatprep.subr.mxu0 0.0
    %1870 = vmatpush1.msra.mxu0 0.0
    %1871 = vmatprep.subr.mxu0 0.0
    %1872 = vmatpush1.msra.mxu0 0.0
    %1873 = vmatprep.subr.mxu0 0.0
    %1874 = vmatpush1.msra.mxu0 0.0
    %1875 = vmatprep.subr.mxu0 0.0
    %1876 = vmatpush1.msra.mxu0 0.0
    %1877 = vmatprep.subr.mxu0 0.0
    %1878 = vmatpush1.msra.mxu0 0.0
    %1879 = vmatprep.subr.mxu0 0.0
    %1880 = vmatpush1.msra.mxu0 0.0
    %1881 = vmatprep.subr.mxu0 0.0
    %1882 = vmatpush1.msra.mxu0 0.0
    %1883 = vmatprep.subr.mxu0 0.0
    %1884 = vmatpush1.msra.mxu0 0.0
    %1885 = vmatprep.subr.mxu0 0.0
    %1886 = vmatpush1.msra.mxu0 0.0
    %1887 = vmatprep.subr.mxu0 0.0
    %1888 = vmatpush1.msra.mxu0 0.0
    %1889 = vmatprep.subr.mxu0 0.0
    %1890 = vmatpush1.msra.mxu0 0.0
    %1891 = vmatprep.subr.mxu0 0.0
    %1892 = vmatpush1.msra.mxu0 0.0
    %1893 = vmatprep.subr.mxu0 0.0
    %1894 = vmatpush1.msra.mxu0 0.0
    %1895 = vmatprep.mubr.f32.mxu0 0.0
    %1896 = vmatmul.mubr.f32.gmra.mrb[0].mxu0 %v416
    %v1897 = vpop.f32.mrb[0].mxu0
    %v1898 = vadd.f32 0.0, %v1897
    %v1899 = vpop.f32.mrb[0].mxu0
    %1900 = vmatprep.mubr.f32.mxu0 0.0
    %1901 = vmatmul.mubr.f32.gmra.mrb[0].mxu0 %v419
    %v1902 = vpop.f32.mrb[0].mxu0
    %v1903 = vadd.f32 0.0, %v1902
    %v1904 = vpop.f32.mrb[0].mxu0
    %1905 = vdwg.mxu0
    %1906 = vmatprep.subr.mxu0 0.0
    %1907 = vmatpush1.msra.mxu0 %v1898
    %1908 = vmatprep.subr.mxu0 0.0
    %1909 = vmatpush1.msra.mxu0 %v1903
    %1910 = vmatprep.subr.mxu0 0.0
    %1911 = vmatpush1.msra.mxu0 0.0
    %1912 = vmatprep.subr.mxu0 0.0
    %1913 = vmatpush1.msra.mxu0 0.0
    %1914 = vmatprep.subr.mxu0 0.0
    %1915 = vmatpush1.msra.mxu0 0.0
    %1916 = vmatprep.subr.mxu0 0.0
    %1917 = vmatpush1.msra.mxu0 0.0
    %1918 = vmatprep.subr.mxu0 0.0
    %1919 = vmatpush1.msra.mxu0 0.0
    %1920 = vmatprep.subr.mxu0 0.0
    %1921 = vmatpush1.msra.mxu0 0.0
    %1922 = vmatprep.subr.mxu0 0.0
    %1923 = vmatpush1.msra.mxu0 0.0
    %1924 = vmatprep.subr.mxu0 0.0
    %1925 = vmatpush1.msra.mxu0 0.0
    %1926 = vmatprep.subr.mxu0 0.0
    %1927 = vmatpush1.msra.mxu0 0.0
    %1928 = vmatprep.subr.mxu0 0.0
    %1929 = vmatpush1.msra.mxu0 0.0
    %1930 = vmatprep.subr.mxu0 0.0
    %1931 = vmatpush1.msra.mxu0 0.0
    %1932 = vmatprep.subr.mxu0 0.0
    %1933 = vmatpush1.msra.mxu0 0.0
    %1934 = vmatprep.subr.mxu0 0.0
    %1935 = vmatpush1.msra.mxu0 0.0
    %1936 = vmatprep.subr.mxu0 0.0
    %1937 = vmatpush1.msra.mxu0 0.0
    %1938 = vmatprep.subr.mxu0 0.0
    %1939 = vmatpush1.msra.mxu0 0.0
    %1940 = vmatprep.subr.mxu0 0.0
    %1941 = vmatpush1.msra.mxu0 0.0
    %1942 = vmatprep.subr.mxu0 0.0
    %1943 = vmatpush1.msra.mxu0 0.0
    %1944 = vmatprep.subr.mxu0 0.0
    %1945 = vmatpush1.msra.mxu0 0.0
    %1946 = vmatprep.subr.mxu0 0.0
    %1947 = vmatpush1.msra.mxu0 0.0
    %1948 = vmatprep.subr.mxu0 0.0
    %1949 = vmatpush1.msra.mxu0 0.0
    %1950 = vmatprep.subr.mxu0 0.0
    %1951 = vmatpush1.msra.mxu0 0.0
    %1952 = vmatprep.subr.mxu0 0.0
    %1953 = vmatpush1.msra.mxu0 0.0
    %1954 = vmatprep.subr.mxu0 0.0
    %1955 = vmatpush1.msra.mxu0 0.0
    %1956 = vmatprep.subr.mxu0 0.0
    %1957 = vmatpush1.msra.mxu0 0.0
    %1958 = vmatprep.subr.mxu0 0.0
    %1959 = vmatpush1.msra.mxu0 0.0
    %1960 = vmatprep.subr.mxu0 0.0
    %1961 = vmatpush1.msra.mxu0 0.0
    %1962 = vmatprep.subr.mxu0 0.0
    %1963 = vmatpush1.msra.mxu0 0.0
    %1964 = vmatprep.subr.mxu0 0.0
    %1965 = vmatpush1.msra.mxu0 0.0
    %1966 = vmatprep.subr.mxu0 0.0
    %1967 = vmatpush1.msra.mxu0 0.0
    %1968 = vmatprep.subr.mxu0 0.0
    %1969 = vmatpush1.msra.mxu0 0.0
    %1970 = vmatprep.mubr.f32.mxu0 0.0
    %1971 = vmatmul.mubr.f32.gmra.mrb[0].mxu0 %v1398
    %v1972 = vpop.f32.mrb[0].mxu0
    %v1973 = vadd.f32 0.0, %v1972
    %v1974 = vpop.f32.mrb[0].mxu0
    %1975 = vmatprep.mubr.f32.mxu0 0.0
    %1976 = vmatmul.mubr.f32.gmra.mrb[0].mxu0 %v1401
    %v1977 = vpop.f32.mrb[0].mxu0
    %v1978 = vadd.f32 0.0, %v1977
    %v1979 = vpop.f32.mrb[0].mxu0
    %1980 = vmatprep.mubr.f32.mxu0 0.0
    %1981 = vmatmul.mubr.f32.gmra.mrb[0].mxu0 %v1404
    %v1982 = vpop.f32.mrb[0].mxu0
    %v1983 = vadd.f32 0.0, %v1982
    %v1984 = vpop.f32.mrb[0].mxu0
    %1985 = vmatprep.mubr.f32.mxu0 0.0
    %1986 = vmatmul.mubr.f32.gmra.mrb[0].mxu0 %v1407
    %v1987 = vpop.f32.mrb[0].mxu0
    %v1988 = vadd.f32 0.0, %v1987
    %v1989 = vpop.f32.mrb[0].mxu0
    %1990 = vdwg.mxu0
    %v1991 = vrcp.pop %v1973
    %v1992 = vmul.f32 %v1827, %v1991
    %v1993 = vrcp.pop %v1978
    %v1994 = vmul.f32 %v1828, %v1993
    %v1995 = vrcp.pop %v1983
    %v1996 = vmul.f32 %v1829, %v1995
    %v1997 = vrcp.pop %v1988
    %v1998 = vmul.f32 %v1830, %v1997
    %2000 = vset.pattern.permute.xlu0 0
    %2001 = vperm.xlu0 %2000, %v1992
    %v2002 = vpop.permute.xlu0 %2001
    %2005 = vset.pattern.permute.xlu0 0
    %2006 = vperm.xlu0 %2005, %v1994
    %v2007 = vpop.permute.xlu0 %2006
    %2010 = vset.pattern.permute.xlu0 0
    %2011 = vperm.xlu0 %2010, %v1996
    %v2012 = vpop.permute.xlu0 %2011
    %2015 = vset.pattern.permute.xlu0 0
    %2016 = vperm.xlu0 %2015, %v1998
    %v2017 = vpop.permute.xlu0 %2016
    %v2019 = vmul.f32 %v1658, %v2002
    %v2020 = vmul.f32 %v1663, %v2007
    %v2021 = vmul.f32 %v1668, %v2012
    %v2022 = vmul.f32 %v1673, %v2017
    %2023 = vset.pattern.permute.xlu0 1
    %2024 = vperm.xlu0 %2023, %v1992
    %v2025 = vpop.permute.xlu0 %2024
    %2027 = vset.pattern.permute.xlu0 1
    %2028 = vperm.xlu0 %2027, %v1994
    %v2029 = vpop.permute.xlu0 %2028
    %2031 = vset.pattern.permute.xlu0 1
    %2032 = vperm.xlu0 %2031, %v1996
    %v2033 = vpop.permute.xlu0 %2032
    %2035 = vset.pattern.permute.xlu0 1
    %2036 = vperm.xlu0 %2035, %v1998
    %v2037 = vpop.permute.xlu0 %2036
    %v2039 = vmul.f32 %v1658, %v2025
    %v2040 = vmul.f32 %v1663, %v2029
    %v2041 = vmul.f32 %v1668, %v2033
    %v2042 = vmul.f32 %v1673, %v2037
    %v2043 = vsel %vm414, %v2019, %v2039
    %v2044 = vsel %vm414, %v2020, %v2040
    %v2045 = vsel %vm414, %v2021, %v2041
    %v2046 = vsel %vm414, %v2022, %v2042
    %2047 = vmatprep.subr.mxu0 0.0
    %2048 = vmatpush1.msra.mxu0 %v2043
    %2049 = vmatprep.subr.mxu0 0.0
    %2050 = vmatpush1.msra.mxu0 %v2044
    %2051 = vmatprep.subr.mxu0 0.0
    %2052 = vmatpush1.msra.mxu0 %v2045
    %2053 = vmatprep.subr.mxu0 0.0
    %2054 = vmatpush1.msra.mxu0 %v2046
    %2055 = vmatprep.subr.mxu0 0.0
    %2056 = vmatpush1.msra.mxu0 0.0
    %2057 = vmatprep.subr.mxu0 0.0
    %2058 = vmatpush1.msra.mxu0 0.0
    %2059 = vmatprep.subr.mxu0 0.0
    %2060 = vmatpush1.msra.mxu0 0.0
    %2061 = vmatprep.subr.mxu0 0.0
    %2062 = vmatpush1.msra.mxu0 0.0
    %2063 = vmatprep.subr.mxu0 0.0
    %2064 = vmatpush1.msra.mxu0 0.0
    %2065 = vmatprep.subr.mxu0 0.0
    %2066 = vmatpush1.msra.mxu0 0.0
    %2067 = vmatprep.subr.mxu0 0.0
    %2068 = vmatpush1.msra.mxu0 0.0
    %2069 = vmatprep.subr.mxu0 0.0
    %2070 = vmatpush1.msra.mxu0 0.0
    %2071 = vmatprep.subr.mxu0 0.0
    %2072 = vmatpush1.msra.mxu0 0.0
    %2073 = vmatprep.subr.mxu0 0.0
    %2074 = vmatpush1.msra.mxu0 0.0
    %2075 = vmatprep.subr.mxu0 0.0
    %2076 = vmatpush1.msra.mxu0 0.0
    %2077 = vmatprep.subr.mxu0 0.0
    %2078 = vmatpush1.msra.mxu0 0.0
    %2079 = vmatprep.subr.mxu0 0.0
    %2080 = vmatpush1.msra.mxu0 0.0
    %2081 = vmatprep.subr.mxu0 0.0
    %2082 = vmatpush1.msra.mxu0 0.0
    %2083 = vmatprep.subr.mxu0 0.0
    %2084 = vmatpush1.msra.mxu0 0.0
    %2085 = vmatprep.subr.mxu0 0.0
    %2086 = vmatpush1.msra.mxu0 0.0
    %2087 = vmatprep.subr.mxu0 0.0
    %2088 = vmatpush1.msra.mxu0 0.0
    %2089 = vmatprep.subr.mxu0 0.0
    %2090 = vmatpush1.msra.mxu0 0.0
    %2091 = vmatprep.subr.mxu0 0.0
    %2092 = vmatpush1.msra.mxu0 0.0
    %2093 = vmatprep.subr.mxu0 0.0
    %2094 = vmatpush1.msra.mxu0 0.0
    %2095 = vmatprep.subr.mxu0 0.0
    %2096 = vmatpush1.msra.mxu0 0.0
    %2097 = vmatprep.subr.mxu0 0.0
    %2098 = vmatpush1.msra.mxu0 0.0
    %2099 = vmatprep.subr.mxu0 0.0
    %2100 = vmatpush1.msra.mxu0 0.0
    %2101 = vmatprep.subr.mxu0 0.0
    %2102 = vmatpush1.msra.mxu0 0.0
    %2103 = vmatprep.subr.mxu0 0.0
    %2104 = vmatpush1.msra.mxu0 0.0
    %2105 = vmatprep.subr.mxu0 0.0
    %2106 = vmatpush1.msra.mxu0 0.0
    %2107 = vmatprep.subr.mxu0 0.0
    %2108 = vmatpush1.msra.mxu0 0.0
    %2109 = vmatprep.subr.mxu0 0.0
    %2110 = vmatpush1.msra.mxu0 0.0
    %2111 = vmatprep.mubr.f32.mxu0 0.0
    %2112 = vmatmul.mubr.f32.gmra.mrb[0].mxu0 %v416
    %v2113 = vpop.f32.mrb[0].mxu0
    %v2114 = vadd.f32 0.0, %v2113
    %v2115 = vpop.f32.mrb[0].mxu0
    %2116 = vmatprep.mubr.f32.mxu0 0.0
    %2117 = vmatmul.mubr.f32.gmra.mrb[0].mxu0 %v419
    %v2118 = vpop.f32.mrb[0].mxu0
    %v2119 = vadd.f32 0.0, %v2118
    %v2120 = vpop.f32.mrb[0].mxu0
    %2121 = vdwg.mxu0
    %v2122 = vld [vmem:[#allocation25] sm:$0xff]
    %v2123 = vld [vmem:[#allocation25 + $0x8] sm:$0xff]
    %v2124 = vld [vmem:[#allocation25 + $0x10] sm:$0xff]
    %v2125 = vld [vmem:[#allocation25 + $0x18] sm:$0xff]
    %v2126 = vld [vmem:[%s45] sm:$0x1]
    %v2128 = vlaneseq
    %v2129 = vshrl.u32 %v2128, 7
    %v2130 = vsub.s32 0, %v2129
    %v2131 = vrot.slane %v2126, %v2130
    %2133 = vmatprep.subr.mxu0 0.0
    %2134 = vmatpush1.msra.mxu0 %v2122
    %2135 = vmatprep.subr.mxu0 0.0
    %2136 = vmatpush1.msra.mxu0 %v2123
    %2137 = vmatprep.subr.mxu0 0.0
    %2138 = vmatpush1.msra.mxu0 %v2124
    %2139 = vmatprep.subr.mxu0 0.0
    %2140 = vmatpush1.msra.mxu0 %v2125
    %2141 = vmatprep.subr.mxu0 0.0
    %2142 = vmatpush1.msra.mxu0 0.0
    %2143 = vmatprep.subr.mxu0 0.0
    %2144 = vmatpush1.msra.mxu0 0.0
    %2145 = vmatprep.subr.mxu0 0.0
    %2146 = vmatpush1.msra.mxu0 0.0
    %2147 = vmatprep.subr.mxu0 0.0
    %2148 = vmatpush1.msra.mxu0 0.0
    %2149 = vmatprep.subr.mxu0 0.0
    %2150 = vmatpush1.msra.mxu0 0.0
    %2151 = vmatprep.subr.mxu0 0.0
    %2152 = vmatpush1.msra.mxu0 0.0
    %2153 = vmatprep.subr.mxu0 0.0
    %2154 = vmatpush1.msra.mxu0 0.0
    %2155 = vmatprep.subr.mxu0 0.0
    %2156 = vmatpush1.msra.mxu0 0.0
    %2157 = vmatprep.subr.mxu0 0.0
    %2158 = vmatpush1.msra.mxu0 0.0
    %2159 = vmatprep.subr.mxu0 0.0
    %2160 = vmatpush1.msra.mxu0 0.0
    %2161 = vmatprep.subr.mxu0 0.0
    %2162 = vmatpush1.msra.mxu0 0.0
    %2163 = vmatprep.subr.mxu0 0.0
    %2164 = vmatpush1.msra.mxu0 0.0
    %2165 = vmatprep.subr.mxu0 0.0
    %2166 = vmatpush1.msra.mxu0 0.0
    %2167 = vmatprep.subr.mxu0 0.0
    %2168 = vmatpush1.msra.mxu0 0.0
    %2169 = vmatprep.subr.mxu0 0.0
    %2170 = vmatpush1.msra.mxu0 0.0
    %2171 = vmatprep.subr.mxu0 0.0
    %2172 = vmatpush1.msra.mxu0 0.0
    %2173 = vmatprep.subr.mxu0 0.0
    %2174 = vmatpush1.msra.mxu0 0.0
    %2175 = vmatprep.subr.mxu0 0.0
    %2176 = vmatpush1.msra.mxu0 0.0
    %2177 = vmatprep.subr.mxu0 0.0
    %2178 = vmatpush1.msra.mxu0 0.0
    %2179 = vmatprep.subr.mxu0 0.0
    %2180 = vmatpush1.msra.mxu0 0.0
    %2181 = vmatprep.subr.mxu0 0.0
    %2182 = vmatpush1.msra.mxu0 0.0
    %2183 = vmatprep.subr.mxu0 0.0
    %2184 = vmatpush1.msra.mxu0 0.0
    %2185 = vmatprep.subr.mxu0 0.0
    %2186 = vmatpush1.msra.mxu0 0.0
    %2187 = vmatprep.subr.mxu0 0.0
    %2188 = vmatpush1.msra.mxu0 0.0
    %2189 = vmatprep.subr.mxu0 0.0
    %2190 = vmatpush1.msra.mxu0 0.0
    %2191 = vmatprep.subr.mxu0 0.0
    %2192 = vmatpush1.msra.mxu0 0.0
    %2193 = vmatprep.subr.mxu0 0.0
    %2194 = vmatpush1.msra.mxu0 0.0
    %2195 = vmatprep.subr.mxu0 0.0
    %2196 = vmatpush1.msra.mxu0 0.0
    %2197 = vmatprep.mubr.f32.mxu0 0.0
    %2198 = vmatmul.mubr.f32.gmra.mrb[0].mxu0 %v1041
    %v2199 = vpop.f32.mrb[0].mxu0
    %v2200 = vadd.f32 %v2131, %v2199
    %v2201 = vpop.f32.mrb[0].mxu0
    %2202 = vmatprep.mubr.f32.mxu0 0.0
    %2203 = vmatmul.mubr.f32.gmra.mrb[0].mxu0 %v1044
    %v2204 = vpop.f32.mrb[0].mxu0
    %v2205 = vadd.f32 %v2131, %v2204
    %v2206 = vpop.f32.mrb[0].mxu0
    %2207 = vdwg.mxu0
    %v2208 = vld [vmem:[%s47] sm:$0x1]
    %v2210 = vlaneseq
    %v2211 = vshrl.u32 %v2210, 7
    %v2212 = vsub.s32 0, %v2211
    %v2213 = vrot.slane %v2208, %v2212
    %v2215 = vmul.f32 %v2114, %v2213
    %v2216 = vmul.f32 %v2119, %v2213
    %v2217 = vld [vmem:[%s49] sm:$0x1]
    %v2219 = vlaneseq
    %v2220 = vshrl.u32 %v2219, 7
    %v2221 = vsub.s32 0, %v2220
    %v2222 = vrot.slane %v2217, %v2221
    %v2224 = vmul.f32 %v2200, %v2222
    %v2225 = vmul.f32 %v2205, %v2222
    %v2226 = vadd.f32 %v2215, %v2224
    %v2227 = vadd.f32 %v2216, %v2225
    %vm2228 = vcmask 523264
    %v2229 = vsel %vm2228, %v2226, 0.0
    %2230 = vadd.xlane.f32.xlu0 %v2229
    %v2231 = vpop.xlane.xlu0 %2230
    %v2232 = vsel %vm2228, %v2227, 0.0
    %2233 = vadd.xlane.f32.xlu0 %v2232
    %v2234 = vpop.xlane.xlu0 %2233
    %v2235 = vxor.u32 %v2231, 2147483648
    %v2236 = vxor.u32 %v2234, 2147483648
    %v2237 = vmul.f32 %v2235, 1.442695
    %v2238 = vpow.pop %v2237
    %v2239 = vmul.f32 %v2236, 1.442695
    %v2240 = vpow.pop %v2239
    %v2241 = vadd.f32 %v2238, 1.0
    %v2242 = vadd.f32 %v2240, 1.0
    %v2243 = vrcp.pop %v2241
    %v2244 = vmul.f32 1.0, %v2243
    %v2245 = vrcp.pop %v2242
    %v2246 = vmul.f32 1.0, %v2245
    %v2247 = vmul.f32 %v2244, %v2200
    %v2248 = vmul.f32 %v2246, %v2205
    %v2249 = vsub.f32 1.0, %v2244
    %v2250 = vsub.f32 1.0, %v2246
    %v2251 = vmul.f32 %v2249, %v2114
    %v2252 = vmul.f32 %v2250, %v2119
    %v2253 = vadd.f32 %v2247, %v2251
    %v2254 = vadd.f32 %v2248, %v2252
    %v2255 = vld [vmem:[%s51] sm:$0xff]
    %v2256 = vld [vmem:[%s51 + $0x8] sm:$0xff]
    %v2257 = vld [vmem:[%s51 + $0x10] sm:$0xff]
    %v2258 = vld [vmem:[%s51 + $0x18] sm:$0xff]
    %v2259 = vld [vmem:[%s51 + $0x20] sm:$0xff]
    %v2260 = vld [vmem:[%s51 + $0x28] sm:$0xff]
    %v2261 = vld [vmem:[%s51 + $0x30] sm:$0xff]
    %v2262 = vld [vmem:[%s51 + $0x38] sm:$0xff]
    %v2263 = vld [vmem:[%s53] sm:$0x1]
    %v2265 = vlaneseq
    %v2266 = vshrl.u32 %v2265, 7
    %v2267 = vsub.s32 0, %v2266
    %v2268 = vrot.slane %v2263, %v2267
    %v2271 = vsel %vm2228, %v2253, 0
    %v2274 = vsel %vm2228, %v2254, 0
    %2276 = vmatprep.subr.mxu0 0.0
    %2277 = vmatpush1.msra.mxu0 %v2255
    %2278 = vmatprep.subr.mxu0 0.0
    %2279 = vmatpush1.msra.mxu0 %v2256
    %2280 = vmatprep.subr.mxu0 0.0
    %2281 = vmatpush1.msra.mxu0 %v2257
    %2282 = vmatprep.subr.mxu0 0.0
    %2283 = vmatpush1.msra.mxu0 %v2258
    %2284 = vmatprep.subr.mxu0 0.0
    %2285 = vmatpush1.msra.mxu0 %v2259
    %2286 = vmatprep.subr.mxu0 0.0
    %2287 = vmatpush1.msra.mxu0 %v2260
    %2288 = vmatprep.subr.mxu0 0.0
    %2289 = vmatpush1.msra.mxu0 %v2261
    %2290 = vmatprep.subr.mxu0 0.0
    %2291 = vmatpush1.msra.mxu0 %v2262
    %2292 = vmatprep.subr.mxu0 0.0
    %2293 = vmatpush1.msra.mxu0 0.0
    %2294 = vmatprep.subr.mxu0 0.0
    %2295 = vmatpush1.msra.mxu0 0.0
    %2296 = vmatprep.subr.mxu0 0.0
    %2297 = vmatpush1.msra.mxu0 0.0
    %2298 = vmatprep.subr.mxu0 0.0
    %2299 = vmatpush1.msra.mxu0 0.0
    %2300 = vmatprep.subr.mxu0 0.0
    %2301 = vmatpush1.msra.mxu0 0.0
    %2302 = vmatprep.subr.mxu0 0.0
    %2303 = vmatpush1.msra.mxu0 0.0
    %2304 = vmatprep.subr.mxu0 0.0
    %2305 = vmatpush1.msra.mxu0 0.0
    %2306 = vmatprep.subr.mxu0 0.0
    %2307 = vmatpush1.msra.mxu0 0.0
    %2308 = vmatprep.subr.mxu0 0.0
    %2309 = vmatpush1.msra.mxu0 0.0
    %2310 = vmatprep.subr.mxu0 0.0
    %2311 = vmatpush1.msra.mxu0 0.0
    %2312 = vmatprep.subr.mxu0 0.0
    %2313 = vmatpush1.msra.mxu0 0.0
    %2314 = vmatprep.subr.mxu0 0.0
    %2315 = vmatpush1.msra.mxu0 0.0
    %2316 = vmatprep.subr.mxu0 0.0
    %2317 = vmatpush1.msra.mxu0 0.0
    %2318 = vmatprep.subr.mxu0 0.0
    %2319 = vmatpush1.msra.mxu0 0.0
    %2320 = vmatprep.subr.mxu0 0.0
    %2321 = vmatpush1.msra.mxu0 0.0
    %2322 = vmatprep.subr.mxu0 0.0
    %2323 = vmatpush1.msra.mxu0 0.0
    %2324 = vmatprep.subr.mxu0 0.0
    %2325 = vmatpush1.msra.mxu0 0.0
    %2326 = vmatprep.subr.mxu0 0.0
    %2327 = vmatpush1.msra.mxu0 0.0
    %2328 = vmatprep.subr.mxu0 0.0
    %2329 = vmatpush1.msra.mxu0 0.0
    %2330 = vmatprep.subr.mxu0 0.0
    %2331 = vmatpush1.msra.mxu0 0.0
    %2332 = vmatprep.subr.mxu0 0.0
    %2333 = vmatpush1.msra.mxu0 0.0
    %2334 = vmatprep.subr.mxu0 0.0
    %2335 = vmatpush1.msra.mxu0 0.0
    %2336 = vmatprep.subr.mxu0 0.0
    %2337 = vmatpush1.msra.mxu0 0.0
    %2338 = vmatprep.subr.mxu0 0.0
    %2339 = vmatpush1.msra.mxu0 0.0
    %2340 = vmatprep.mubr.f32.mxu0 0.0
    %2341 = vmatmul.mubr.f32.gmra.mrb[0].mxu0 %v2271
    %v2342 = vpop.f32.mrb[0].mxu0
    %v2343 = vadd.f32 %v2268, %v2342
    %v2344 = vpop.f32.mrb[0].mxu0
    %2345 = vmatprep.mubr.f32.mxu0 0.0
    %2346 = vmatmul.mubr.f32.gmra.mrb[0].mxu0 %v2274
    %v2347 = vpop.f32.mrb[0].mxu0
    %v2348 = vadd.f32 %v2268, %v2347
    %v2349 = vpop.f32.mrb[0].mxu0
    %2350 = vdwg.mxu0
    %v2351 = vmul.f32 %v2343, 0.17677669
    %v2352 = vmul.f32 %v2348, 0.17677669
    %v2353 = vld [vmem:[%s55] sm:$0xff]
    %v2354 = vld [vmem:[%s55 + $0x8] sm:$0xff]
    %v2355 = vld [vmem:[%s55 + $0x10] sm:$0xff]
    %v2356 = vld [vmem:[%s55 + $0x18] sm:$0xff]
    %v2357 = vld [vmem:[%s55 + $0x20] sm:$0xff]
    %v2358 = vld [vmem:[%s55 + $0x28] sm:$0xff]
    %v2359 = vld [vmem:[%s55 + $0x30] sm:$0xff]
    %v2360 = vld [vmem:[%s55 + $0x38] sm:$0xff]
    %v2361 = vld [vmem:[%s57] sm:$0x1]
    %v2363 = vlaneseq
    %v2364 = vshrl.u32 %v2363, 7
    %v2365 = vsub.s32 0, %v2364
    %v2366 = vrot.slane %v2361, %v2365
    %2368 = vmatprep.subr.mxu0 0.0
    %2369 = vmatpush1.msra.mxu0 %v2353
    %2370 = vmatprep.subr.mxu0 0.0
    %2371 = vmatpush1.msra.mxu0 %v2354
    %2372 = vmatprep.subr.mxu0 0.0
    %2373 = vmatpush1.msra.mxu0 %v2355
    %2374 = vmatprep.subr.mxu0 0.0
    %2375 = vmatpush1.msra.mxu0 %v2356
    %2376 = vmatprep.subr.mxu0 0.0
    %2377 = vmatpush1.msra.mxu0 %v2357
    %2378 = vmatprep.subr.mxu0 0.0
    %2379 = vmatpush1.msra.mxu0 %v2358
    %2380 = vmatprep.subr.mxu0 0.0
    %2381 = vmatpush1.msra.mxu0 %v2359
    %2382 = vmatprep.subr.mxu0 0.0
    %2383 = vmatpush1.msra.mxu0 %v2360
    %2384 = vmatprep.subr.mxu0 0.0
    %2385 = vmatpush1.msra.mxu0 0.0
    %2386 = vmatprep.subr.mxu0 0.0
    %2387 = vmatpush1.msra.mxu0 0.0
    %2388 = vmatprep.subr.mxu0 0.0
    %2389 = vmatpush1.msra.mxu0 0.0
    %2390 = vmatprep.subr.mxu0 0.0
    %2391 = vmatpush1.msra.mxu0 0.0
    %2392 = vmatprep.subr.mxu0 0.0
    %2393 = vmatpush1.msra.mxu0 0.0
    %2394 = vmatprep.subr.mxu0 0.0
    %2395 = vmatpush1.msra.mxu0 0.0
    %2396 = vmatprep.subr.mxu0 0.0
    %2397 = vmatpush1.msra.mxu0 0.0
    %2398 = vmatprep.subr.mxu0 0.0
    %2399 = vmatpush1.msra.mxu0 0.0
    %2400 = vmatprep.subr.mxu0 0.0
    %2401 = vmatpush1.msra.mxu0 0.0
    %2402 = vmatprep.subr.mxu0 0.0
    %2403 = vmatpush1.msra.mxu0 0.0
    %2404 = vmatprep.subr.mxu0 0.0
    %2405 = vmatpush1.msra.mxu0 0.0
    %2406 = vmatprep.subr.mxu0 0.0
    %2407 = vmatpush1.msra.mxu0 0.0
    %2408 = vmatprep.subr.mxu0 0.0
    %2409 = vmatpush1.msra.mxu0 0.0
    %2410 = vmatprep.subr.mxu0 0.0
    %2411 = vmatpush1.msra.mxu0 0.0
    %2412 = vmatprep.subr.mxu0 0.0
    %2413 = vmatpush1.msra.mxu0 0.0
    %2414 = vmatprep.subr.mxu0 0.0
    %2415 = vmatpush1.msra.mxu0 0.0
    %2416 = vmatprep.subr.mxu0 0.0
    %2417 = vmatpush1.msra.mxu0 0.0
    %2418 = vmatprep.subr.mxu0 0.0
    %2419 = vmatpush1.msra.mxu0 0.0
    %2420 = vmatprep.subr.mxu0 0.0
    %2421 = vmatpush1.msra.mxu0 0.0
    %2422 = vmatprep.subr.mxu0 0.0
    %2423 = vmatpush1.msra.mxu0 0.0
    %2424 = vmatprep.subr.mxu0 0.0
    %2425 = vmatpush1.msra.mxu0 0.0
    %2426 = vmatprep.subr.mxu0 0.0
    %2427 = vmatpush1.msra.mxu0 0.0
    %2428 = vmatprep.subr.mxu0 0.0
    %2429 = vmatpush1.msra.mxu0 0.0
    %2430 = vmatprep.subr.mxu0 0.0
    %2431 = vmatpush1.msra.mxu0 0.0
    %2432 = vmatprep.mubr.f32.mxu0 0.0
    %2433 = vmatmul.mubr.f32.gmra.mrb[0].mxu0 %v2271
    %v2434 = vpop.f32.mrb[0].mxu0
    %v2435 = vadd.f32 %v2366, %v2434
    %v2436 = vpop.f32.mrb[0].mxu0
    %2437 = vmatprep.mubr.f32.mxu0 0.0
    %2438 = vmatmul.mubr.f32.gmra.mrb[0].mxu0 %v2274
    %v2439 = vpop.f32.mrb[0].mxu0
    %v2440 = vadd.f32 %v2366, %v2439
    %v2441 = vpop.f32.mrb[0].mxu0
    %2442 = vdwg.mxu0
    %v2443 = vld [vmem:[%s59] sm:$0xff]
    %v2444 = vld [vmem:[%s59 + $0x8] sm:$0xff]
    %v2445 = vld [vmem:[%s59 + $0x10] sm:$0xff]
    %v2446 = vld [vmem:[%s59 + $0x18] sm:$0xff]
    %v2447 = vld [vmem:[%s59 + $0x20] sm:$0xff]
    %v2448 = vld [vmem:[%s59 + $0x28] sm:$0xff]
    %v2449 = vld [vmem:[%s59 + $0x30] sm:$0xff]
    %v2450 = vld [vmem:[%s59 + $0x38] sm:$0xff]
    %v2451 = vld [vmem:[%s61] sm:$0x1]
    %v2453 = vlaneseq
    %v2454 = vshrl.u32 %v2453, 7
    %v2455 = vsub.s32 0, %v2454
    %v2456 = vrot.slane %v2451, %v2455
    %2458 = vmatprep.subr.mxu0 0.0
    %2459 = vmatpush1.msra.mxu0 %v2443
    %2460 = vmatprep.subr.mxu0 0.0
    %2461 = vmatpush1.msra.mxu0 %v2444
    %2462 = vmatprep.subr.mxu0 0.0
    %2463 = vmatpush1.msra.mxu0 %v2445
    %2464 = vmatprep.subr.mxu0 0.0
    %2465 = vmatpush1.msra.mxu0 %v2446
    %2466 = vmatprep.subr.mxu0 0.0
    %2467 = vmatpush1.msra.mxu0 %v2447
    %2468 = vmatprep.subr.mxu0 0.0
    %2469 = vmatpush1.msra.mxu0 %v2448
    %2470 = vmatprep.subr.mxu0 0.0
    %2471 = vmatpush1.msra.mxu0 %v2449
    %2472 = vmatprep.subr.mxu0 0.0
    %2473 = vmatpush1.msra.mxu0 %v2450
    %2474 = vmatprep.subr.mxu0 0.0
    %2475 = vmatpush1.msra.mxu0 0.0
    %2476 = vmatprep.subr.mxu0 0.0
    %2477 = vmatpush1.msra.mxu0 0.0
    %2478 = vmatprep.subr.mxu0 0.0
    %2479 = vmatpush1.msra.mxu0 0.0
    %2480 = vmatprep.subr.mxu0 0.0
    %2481 = vmatpush1.msra.mxu0 0.0
    %2482 = vmatprep.subr.mxu0 0.0
    %2483 = vmatpush1.msra.mxu0 0.0
    %2484 = vmatprep.subr.mxu0 0.0
    %2485 = vmatpush1.msra.mxu0 0.0
    %2486 = vmatprep.subr.mxu0 0.0
    %2487 = vmatpush1.msra.mxu0 0.0
    %2488 = vmatprep.subr.mxu0 0.0
    %2489 = vmatpush1.msra.mxu0 0.0
    %2490 = vmatprep.subr.mxu0 0.0
    %2491 = vmatpush1.msra.mxu0 0.0
    %2492 = vmatprep.subr.mxu0 0.0
    %2493 = vmatpush1.msra.mxu0 0.0
    %2494 = vmatprep.subr.mxu0 0.0
    %2495 = vmatpush1.msra.mxu0 0.0
    %2496 = vmatprep.subr.mxu0 0.0
    %2497 = vmatpush1.msra.mxu0 0.0
    %2498 = vmatprep.subr.mxu0 0.0
    %2499 = vmatpush1.msra.mxu0 0.0
    %2500 = vmatprep.subr.mxu0 0.0
    %2501 = vmatpush1.msra.mxu0 0.0
    %2502 = vmatprep.subr.mxu0 0.0
    %2503 = vmatpush1.msra.mxu0 0.0
    %2504 = vmatprep.subr.mxu0 0.0
    %2505 = vmatpush1.msra.mxu0 0.0
    %2506 = vmatprep.subr.mxu0 0.0
    %2507 = vmatpush1.msra.mxu0 0.0
    %2508 = vmatprep.subr.mxu0 0.0
    %2509 = vmatpush1.msra.mxu0 0.0
    %2510 = vmatprep.subr.mxu0 0.0
    %2511 = vmatpush1.msra.mxu0 0.0
    %2512 = vmatprep.subr.mxu0 0.0
    %2513 = vmatpush1.msra.mxu0 0.0
    %2514 = vmatprep.subr.mxu0 0.0
    %2515 = vmatpush1.msra.mxu0 0.0
    %2516 = vmatprep.subr.mxu0 0.0
    %2517 = vmatpush1.msra.mxu0 0.0
    %2518 = vmatprep.subr.mxu0 0.0
    %2519 = vmatpush1.msra.mxu0 0.0
    %2520 = vmatprep.subr.mxu0 0.0
    %2521 = vmatpush1.msra.mxu0 0.0
    %2522 = vmatprep.mubr.f32.mxu0 0.0
    %2523 = vmatmul.mubr.f32.gmra.mrb[0].mxu0 %v2271
    %v2524 = vpop.f32.mrb[0].mxu0
    %v2525 = vadd.f32 %v2456, %v2524
    %v2526 = vpop.f32.mrb[0].mxu0
    %2527 = vmatprep.mubr.f32.mxu0 0.0
    %2528 = vmatmul.mubr.f32.gmra.mrb[0].mxu0 %v2274
    %v2529 = vpop.f32.mrb[0].mxu0
    %v2530 = vadd.f32 %v2456, %v2529
    %v2531 = vpop.f32.mrb[0].mxu0
    %2532 = vdwg.mxu0
    %v2533 = vld [vmem:[%s63] sm:$0xff]
    %2534 = vmatprep.subr.mxu0 0.0
    %2535 = vmatpush1.msra.mxu0 %v2533
    %2536 = vmatprep.subr.mxu0 0.0
    %2537 = vmatpush1.msra.mxu0 0.0
    %2538 = vmatprep.subr.mxu0 0.0
    %2539 = vmatpush1.msra.mxu0 0.0
    %2540 = vmatprep.subr.mxu0 0.0
    %2541 = vmatpush1.msra.mxu0 0.0
    %2542 = vmatprep.subr.mxu0 0.0
    %2543 = vmatpush1.msra.mxu0 0.0
    %2544 = vmatprep.subr.mxu0 0.0
    %2545 = vmatpush1.msra.mxu0 0.0
    %2546 = vmatprep.subr.mxu0 0.0
    %2547 = vmatpush1.msra.mxu0 0.0
    %2548 = vmatprep.subr.mxu0 0.0
    %2549 = vmatpush1.msra.mxu0 0.0
    %2550 = vmatprep.subr.mxu0 0.0
    %2551 = vmatpush1.msra.mxu0 0.0
    %2552 = vmatprep.subr.mxu0 0.0
    %2553 = vmatpush1.msra.mxu0 0.0
    %2554 = vmatprep.subr.mxu0 0.0
    %2555 = vmatpush1.msra.mxu0 0.0
    %2556 = vmatprep.subr.mxu0 0.0
    %2557 = vmatpush1.msra.mxu0 0.0
    %2558 = vmatprep.subr.mxu0 0.0
    %2559 = vmatpush1.msra.mxu0 0.0
    %2560 = vmatprep.subr.mxu0 0.0
    %2561 = vmatpush1.msra.mxu0 0.0
    %2562 = vmatprep.subr.mxu0 0.0
    %2563 = vmatpush1.msra.mxu0 0.0
    %2564 = vmatprep.subr.mxu0 0.0
    %2565 = vmatpush1.msra.mxu0 0.0
    %2566 = vmatprep.subr.mxu0 0.0
    %2567 = vmatpush1.msra.mxu0 0.0
    %2568 = vmatprep.subr.mxu0 0.0
    %2569 = vmatpush1.msra.mxu0 0.0
    %2570 = vmatprep.subr.mxu0 0.0
    %2571 = vmatpush1.msra.mxu0 0.0
    %2572 = vmatprep.subr.mxu0 0.0
    %2573 = vmatpush1.msra.mxu0 0.0
    %2574 = vmatprep.subr.mxu0 0.0
    %2575 = vmatpush1.msra.mxu0 0.0
    %2576 = vmatprep.subr.mxu0 0.0
    %2577 = vmatpush1.msra.mxu0 0.0
    %2578 = vmatprep.subr.mxu0 0.0
    %2579 = vmatpush1.msra.mxu0 0.0
    %2580 = vmatprep.subr.mxu0 0.0
    %2581 = vmatpush1.msra.mxu0 0.0
    %2582 = vmatprep.subr.mxu0 0.0
    %2583 = vmatpush1.msra.mxu0 0.0
    %2584 = vmatprep.subr.mxu0 0.0
    %2585 = vmatpush1.msra.mxu0 0.0
    %2586 = vmatprep.subr.mxu0 0.0
    %2587 = vmatpush1.msra.mxu0 0.0
    %2588 = vmatprep.subr.mxu0 0.0
    %2589 = vmatpush1.msra.mxu0 0.0
    %2590 = vmatprep.subr.mxu0 0.0
    %2591 = vmatpush1.msra.mxu0 0.0
    %2592 = vmatprep.subr.mxu0 0.0
    %2593 = vmatpush1.msra.mxu0 0.0
    %2594 = vmatprep.subr.mxu0 0.0
    %2595 = vmatpush1.msra.mxu0 0.0
    %2596 = vmatprep.subr.mxu0 0.0
    %2597 = vmatpush1.msra.mxu0 0.0
    %2598 = vmatprep.mubr.f32.mxu0 0.0
    %2599 = vmatmul.mubr.f32.gmra.mrb[0].mxu0 %v1301
    %v2600 = vpop.f32.mrb[0].mxu0
    %v2601 = vadd.f32 0.0, %v2600
    %v2602 = vpop.f32.mrb[0].mxu0
    %2603 = vmatprep.mubr.f32.mxu0 0.0
    %2604 = vmatmul.mubr.f32.gmra.mrb[0].mxu0 %v1304
    %v2605 = vpop.f32.mrb[0].mxu0
    %v2606 = vadd.f32 0.0, %v2605
    %v2607 = vpop.f32.mrb[0].mxu0
    %2608 = vmatprep.mubr.f32.mxu0 0.0
    %2609 = vmatmul.mubr.f32.gmra.mrb[0].mxu0 %v1307
    %v2610 = vpop.f32.mrb[0].mxu0
    %v2611 = vadd.f32 0.0, %v2610
    %v2612 = vpop.f32.mrb[0].mxu0
    %2613 = vmatprep.mubr.f32.mxu0 0.0
    %2614 = vmatmul.mubr.f32.gmra.mrb[0].mxu0 %v1310
    %v2615 = vpop.f32.mrb[0].mxu0
    %v2616 = vadd.f32 0.0, %v2615
    %v2617 = vpop.f32.mrb[0].mxu0
    %2618 = vdwg.mxu0
    %2619 = vmatprep.subr.mxu0 0.0
    %2620 = vmatpush1.msra.mxu0 %v2351
    %2621 = vmatprep.subr.mxu0 0.0
    %2622 = vmatpush1.msra.mxu0 %v2352
    %2623 = vmatprep.subr.mxu0 0.0
    %2624 = vmatpush1.msra.mxu0 0.0
    %2625 = vmatprep.subr.mxu0 0.0
    %2626 = vmatpush1.msra.mxu0 0.0
    %2627 = vmatprep.subr.mxu0 0.0
    %2628 = vmatpush1.msra.mxu0 0.0
    %2629 = vmatprep.subr.mxu0 0.0
    %2630 = vmatpush1.msra.mxu0 0.0
    %2631 = vmatprep.subr.mxu0 0.0
    %2632 = vmatpush1.msra.mxu0 0.0
    %2633 = vmatprep.subr.mxu0 0.0
    %2634 = vmatpush1.msra.mxu0 0.0
    %2635 = vmatprep.subr.mxu0 0.0
    %2636 = vmatpush1.msra.mxu0 0.0
    %2637 = vmatprep.subr.mxu0 0.0
    %2638 = vmatpush1.msra.mxu0 0.0
    %2639 = vmatprep.subr.mxu0 0.0
    %2640 = vmatpush1.msra.mxu0 0.0
    %2641 = vmatprep.subr.mxu0 0.0
    %2642 = vmatpush1.msra.mxu0 0.0
    %2643 = vmatprep.subr.mxu0 0.0
    %2644 = vmatpush1.msra.mxu0 0.0
    %2645 = vmatprep.subr.mxu0 0.0
    %2646 = vmatpush1.msra.mxu0 0.0
    %2647 = vmatprep.subr.mxu0 0.0
    %2648 = vmatpush1.msra.mxu0 0.0
    %2649 = vmatprep.subr.mxu0 0.0
    %2650 = vmatpush1.msra.mxu0 0.0
    %2651 = vmatprep.subr.mxu0 0.0
    %2652 = vmatpush1.msra.mxu0 0.0
    %2653 = vmatprep.subr.mxu0 0.0
    %2654 = vmatpush1.msra.mxu0 0.0
    %2655 = vmatprep.subr.mxu0 0.0
    %2656 = vmatpush1.msra.mxu0 0.0
    %2657 = vmatprep.subr.mxu0 0.0
    %2658 = vmatpush1.msra.mxu0 0.0
    %2659 = vmatprep.subr.mxu0 0.0
    %2660 = vmatpush1.msra.mxu0 0.0
    %2661 = vmatprep.subr.mxu0 0.0
    %2662 = vmatpush1.msra.mxu0 0.0
    %2663 = vmatprep.subr.mxu0 0.0
    %2664 = vmatpush1.msra.mxu0 0.0
    %2665 = vmatprep.subr.mxu0 0.0
    %2666 = vmatpush1.msra.mxu0 0.0
    %2667 = vmatprep.subr.mxu0 0.0
    %2668 = vmatpush1.msra.mxu0 0.0
    %2669 = vmatprep.subr.mxu0 0.0
    %2670 = vmatpush1.msra.mxu0 0.0
    %2671 = vmatprep.subr.mxu0 0.0
    %2672 = vmatpush1.msra.mxu0 0.0
    %2673 = vmatprep.subr.mxu0 0.0
    %2674 = vmatpush1.msra.mxu0 0.0
    %2675 = vmatprep.subr.mxu0 0.0
    %2676 = vmatpush1.msra.mxu0 0.0
    %2677 = vmatprep.subr.mxu0 0.0
    %2678 = vmatpush1.msra.mxu0 0.0
    %2679 = vmatprep.subr.mxu0 0.0
    %2680 = vmatpush1.msra.mxu0 0.0
    %2681 = vmatprep.subr.mxu0 0.0
    %2682 = vmatpush1.msra.mxu0 0.0
    %2683 = vmatprep.mubr.f32.mxu0 0.0
    %2684 = vmatmul.mubr.f32.gmra.mrb[0].mxu0 %v1398
    %v2685 = vpop.f32.mrb[0].mxu0
    %v2686 = vadd.f32 0.0, %v2685
    %v2687 = vpop.f32.mrb[0].mxu0
    %2688 = vmatprep.mubr.f32.mxu0 0.0
    %2689 = vmatmul.mubr.f32.gmra.mrb[0].mxu0 %v1401
    %v2690 = vpop.f32.mrb[0].mxu0
    %v2691 = vadd.f32 0.0, %v2690
    %v2692 = vpop.f32.mrb[0].mxu0
    %2693 = vmatprep.mubr.f32.mxu0 0.0
    %2694 = vmatmul.mubr.f32.gmra.mrb[0].mxu0 %v1404
    %v2695 = vpop.f32.mrb[0].mxu0
    %v2696 = vadd.f32 0.0, %v2695
    %v2697 = vpop.f32.mrb[0].mxu0
    %2698 = vmatprep.mubr.f32.mxu0 0.0
    %2699 = vmatmul.mubr.f32.gmra.mrb[0].mxu0 %v1407
    %v2700 = vpop.f32.mrb[0].mxu0
    %v2701 = vadd.f32 0.0, %v2700
    %v2702 = vpop.f32.mrb[0].mxu0
    %2703 = vdwg.mxu0
    %2704 = vmatprep.subr.mxu0 0.0
    %2705 = vmatpush1.msra.mxu0 %v2435
    %2706 = vmatprep.subr.mxu0 0.0
    %2707 = vmatpush1.msra.mxu0 %v2440
    %2708 = vmatprep.subr.mxu0 0.0
    %2709 = vmatpush1.msra.mxu0 0.0
    %2710 = vmatprep.subr.mxu0 0.0
    %2711 = vmatpush1.msra.mxu0 0.0
    %2712 = vmatprep.subr.mxu0 0.0
    %2713 = vmatpush1.msra.mxu0 0.0
    %2714 = vmatprep.subr.mxu0 0.0
    %2715 = vmatpush1.msra.mxu0 0.0
    %2716 = vmatprep.subr.mxu0 0.0
    %2717 = vmatpush1.msra.mxu0 0.0
    %2718 = vmatprep.subr.mxu0 0.0
    %2719 = vmatpush1.msra.mxu0 0.0
    %2720 = vmatprep.subr.mxu0 0.0
    %2721 = vmatpush1.msra.mxu0 0.0
    %2722 = vmatprep.subr.mxu0 0.0
    %2723 = vmatpush1.msra.mxu0 0.0
    %2724 = vmatprep.subr.mxu0 0.0
    %2725 = vmatpush1.msra.mxu0 0.0
    %2726 = vmatprep.subr.mxu0 0.0
    %2727 = vmatpush1.msra.mxu0 0.0
    %2728 = vmatprep.subr.mxu0 0.0
    %2729 = vmatpush1.msra.mxu0 0.0
    %2730 = vmatprep.subr.mxu0 0.0
    %2731 = vmatpush1.msra.mxu0 0.0
    %2732 = vmatprep.subr.mxu0 0.0
    %2733 = vmatpush1.msra.mxu0 0.0
    %2734 = vmatprep.subr.mxu0 0.0
    %2735 = vmatpush1.msra.mxu0 0.0
    %2736 = vmatprep.subr.mxu0 0.0
    %2737 = vmatpush1.msra.mxu0 0.0
    %2738 = vmatprep.subr.mxu0 0.0
    %2739 = vmatpush1.msra.mxu0 0.0
    %2740 = vmatprep.subr.mxu0 0.0
    %2741 = vmatpush1.msra.mxu0 0.0
    %2742 = vmatprep.subr.mxu0 0.0
    %2743 = vmatpush1.msra.mxu0 0.0
    %2744 = vmatprep.subr.mxu0 0.0
    %2745 = vmatpush1.msra.mxu0 0.0
    %2746 = vmatprep.subr.mxu0 0.0
    %2747 = vmatpush1.msra.mxu0 0.0
    %2748 = vmatprep.subr.mxu0 0.0
    %2749 = vmatpush1.msra.mxu0 0.0
    %2750 = vmatprep.subr.mxu0 0.0
    %2751 = vmatpush1.msra.mxu0 0.0
    %2752 = vmatprep.subr.mxu0 0.0
    %2753 = vmatpush1.msra.mxu0 0.0
    %2754 = vmatprep.subr.mxu0 0.0
    %2755 = vmatpush1.msra.mxu0 0.0
    %2756 = vmatprep.subr.mxu0 0.0
    %2757 = vmatpush1.msra.mxu0 0.0
    %2758 = vmatprep.subr.mxu0 0.0
    %2759 = vmatpush1.msra.mxu0 0.0
    %2760 = vmatprep.subr.mxu0 0.0
    %2761 = vmatpush1.msra.mxu0 0.0
    %2762 = vmatprep.subr.mxu0 0.0
    %2763 = vmatpush1.msra.mxu0 0.0
    %2764 = vmatprep.subr.mxu0 0.0
    %2765 = vmatpush1.msra.mxu0 0.0
    %2766 = vmatprep.subr.mxu0 0.0
    %2767 = vmatpush1.msra.mxu0 0.0
    %2768 = vmatprep.mubr.f32.mxu0 0.0
    %2769 = vmatmul.mubr.f32.gmra.mrb[0].mxu0 %v1495
    %v2770 = vpop.f32.mrb[0].mxu0
    %v2771 = vadd.f32 %v2601, %v2770
    %v2772 = vpop.f32.mrb[0].mxu0
    %2773 = vmatprep.mubr.f32.mxu0 0.0
    %2774 = vmatmul.mubr.f32.gmra.mrb[0].mxu0 %v1498
    %v2775 = vpop.f32.mrb[0].mxu0
    %v2776 = vadd.f32 %v2606, %v2775
    %v2777 = vpop.f32.mrb[0].mxu0
    %2778 = vmatprep.mubr.f32.mxu0 0.0
    %2779 = vmatmul.mubr.f32.gmra.mrb[0].mxu0 %v1501
    %v2780 = vpop.f32.mrb[0].mxu0
    %v2781 = vadd.f32 %v2611, %v2780
    %v2782 = vpop.f32.mrb[0].mxu0
    %2783 = vmatprep.mubr.f32.mxu0 0.0
    %2784 = vmatmul.mubr.f32.gmra.mrb[0].mxu0 %v1504
    %v2785 = vpop.f32.mrb[0].mxu0
    %v2786 = vadd.f32 %v2616, %v2785
    %v2787 = vpop.f32.mrb[0].mxu0
    %2788 = vdwg.mxu0
    %2789 = vmatprep.subr.mxu0 0.0
    %2790 = vmatpush1.msra.mxu0 %v2525
    %2791 = vmatprep.subr.mxu0 0.0
    %2792 = vmatpush1.msra.mxu0 %v2530
    %2793 = vmatprep.subr.mxu0 0.0
    %2794 = vmatpush1.msra.mxu0 0.0
    %2795 = vmatprep.subr.mxu0 0.0
    %2796 = vmatpush1.msra.mxu0 0.0
    %2797 = vmatprep.subr.mxu0 0.0
    %2798 = vmatpush1.msra.mxu0 0.0
    %2799 = vmatprep.subr.mxu0 0.0
    %2800 = vmatpush1.msra.mxu0 0.0
    %2801 = vmatprep.subr.mxu0 0.0
    %2802 = vmatpush1.msra.mxu0 0.0
    %2803 = vmatprep.subr.mxu0 0.0
    %2804 = vmatpush1.msra.mxu0 0.0
    %2805 = vmatprep.subr.mxu0 0.0
    %2806 = vmatpush1.msra.mxu0 0.0
    %2807 = vmatprep.subr.mxu0 0.0
    %2808 = vmatpush1.msra.mxu0 0.0
    %2809 = vmatprep.subr.mxu0 0.0
    %2810 = vmatpush1.msra.mxu0 0.0
    %2811 = vmatprep.subr.mxu0 0.0
    %2812 = vmatpush1.msra.mxu0 0.0
    %2813 = vmatprep.subr.mxu0 0.0
    %2814 = vmatpush1.msra.mxu0 0.0
    %2815 = vmatprep.subr.mxu0 0.0
    %2816 = vmatpush1.msra.mxu0 0.0
    %2817 = vmatprep.subr.mxu0 0.0
    %2818 = vmatpush1.msra.mxu0 0.0
    %2819 = vmatprep.subr.mxu0 0.0
    %2820 = vmatpush1.msra.mxu0 0.0
    %2821 = vmatprep.subr.mxu0 0.0
    %2822 = vmatpush1.msra.mxu0 0.0
    %2823 = vmatprep.subr.mxu0 0.0
    %2824 = vmatpush1.msra.mxu0 0.0
    %2825 = vmatprep.subr.mxu0 0.0
    %2826 = vmatpush1.msra.mxu0 0.0
    %2827 = vmatprep.subr.mxu0 0.0
    %2828 = vmatpush1.msra.mxu0 0.0
    %2829 = vmatprep.subr.mxu0 0.0
    %2830 = vmatpush1.msra.mxu0 0.0
    %2831 = vmatprep.subr.mxu0 0.0
    %2832 = vmatpush1.msra.mxu0 0.0
    %2833 = vmatprep.subr.mxu0 0.0
    %2834 = vmatpush1.msra.mxu0 0.0
    %2835 = vmatprep.subr.mxu0 0.0
    %2836 = vmatpush1.msra.mxu0 0.0
    %2837 = vmatprep.subr.mxu0 0.0
    %2838 = vmatpush1.msra.mxu0 0.0
    %2839 = vmatprep.subr.mxu0 0.0
    %2840 = vmatpush1.msra.mxu0 0.0
    %2841 = vmatprep.subr.mxu0 0.0
    %2842 = vmatpush1.msra.mxu0 0.0
    %2843 = vmatprep.subr.mxu0 0.0
    %2844 = vmatpush1.msra.mxu0 0.0
    %2845 = vmatprep.subr.mxu0 0.0
    %2846 = vmatpush1.msra.mxu0 0.0
    %2847 = vmatprep.subr.mxu0 0.0
    %2848 = vmatpush1.msra.mxu0 0.0
    %2849 = vmatprep.subr.mxu0 0.0
    %2850 = vmatpush1.msra.mxu0 0.0
    %2851 = vmatprep.subr.mxu0 0.0
    %2852 = vmatpush1.msra.mxu0 0.0
    %2853 = vmatprep.mubr.f32.mxu0 0.0
    %2854 = vmatmul.mubr.f32.gmra.mrb[0].mxu0 %v1495
    %v2855 = vpop.f32.mrb[0].mxu0
    %v2856 = vadd.f32 %v2601, %v2855
    %v2857 = vpop.f32.mrb[0].mxu0
    %2858 = vmatprep.mubr.f32.mxu0 0.0
    %2859 = vmatmul.mubr.f32.gmra.mrb[0].mxu0 %v1498
    %v2860 = vpop.f32.mrb[0].mxu0
    %v2861 = vadd.f32 %v2606, %v2860
    %v2862 = vpop.f32.mrb[0].mxu0
    %2863 = vmatprep.mubr.f32.mxu0 0.0
    %2864 = vmatmul.mubr.f32.gmra.mrb[0].mxu0 %v1501
    %v2865 = vpop.f32.mrb[0].mxu0
    %v2866 = vadd.f32 %v2611, %v2865
    %v2867 = vpop.f32.mrb[0].mxu0
    %2868 = vmatprep.mubr.f32.mxu0 0.0
    %2869 = vmatmul.mubr.f32.gmra.mrb[0].mxu0 %v1504
    %v2870 = vpop.f32.mrb[0].mxu0
    %v2871 = vadd.f32 %v2616, %v2870
    %v2872 = vpop.f32.mrb[0].mxu0
    %2873 = vdwg.mxu0
    %v2874 = vmul.f32 %v2686, %v2771
    %v2875 = vmul.f32 %v2691, %v2776
    %v2876 = vmul.f32 %v2696, %v2781
    %v2877 = vmul.f32 %v2701, %v2786
    %v2878 = vsel %vm414, %v2874, 0.0
    %2879 = vadd.xlane.f32.xlu0 %v2878
    %v2880 = vpop.xlane.xlu0 %2879
    %v2881 = vsel %vm414, %v2875, 0.0
    %2882 = vadd.xlane.f32.xlu0 %v2881
    %v2883 = vpop.xlane.xlu0 %2882
    %v2884 = vsel %vm414, %v2876, 0.0
    %2885 = vadd.xlane.f32.xlu0 %v2884
    %v2886 = vpop.xlane.xlu0 %2885
    %v2887 = vsel %vm414, %v2877, 0.0
    %2888 = vadd.xlane.f32.xlu0 %v2887
    %v2889 = vpop.xlane.xlu0 %2888
    %v2890 = vmul.f32 %v2880, %v398
    %v2891 = vmul.f32 %v2883, %v399
    %v2892 = vmul.f32 %v2886, %v400
    %v2893 = vmul.f32 %v2889, %v401
    %v2894 = vadd.f32 %v2890, %v1700
    %v2895 = vadd.f32 %v2891, %v1701
    %v2896 = vadd.f32 %v2892, %v1702
    %v2897 = vadd.f32 %v2893, %v1703
    %v2898 = vsel %vm498, %v2894, -inf
    %v2899 = vsel %vm498, %v2895, -inf
    %v2900 = vsel %vm498, %v2896, -inf
    %v2901 = vsel %vm498, %v2897, -inf
    %v2902 = vmax.f32 %v2898, %v2899
    %v2903 = vmax.f32 %v2900, %v2901
    %v2904 = vmax.f32 %v2902, %v2903
    %v2905 = vrot.slane %v2904, 4
    %v2906 = vmax.f32 %v2904, %v2905
    %v2907 = vrot.slane %v2906, 2
    %v2908 = vmax.f32 %v2906, %v2907
    %v2909 = vrot.slane %v2908, 1
    %v2910 = vmax.f32 %v2908, %v2909
    %v2911 = vmul.f32 %v398, %v2910
    %v2912 = vmul.f32 %v399, %v2910
    %v2913 = vmul.f32 %v400, %v2910
    %v2914 = vmul.f32 %v401, %v2910
    %v2915 = vsel %vm498, %v2911, 0.0
    %2916 = vadd.xlane.f32.xlu0 %v2915
    %v2917 = vpop.xlane.xlu0 %2916
    %v2918 = vsel %vm498, %v2912, 0.0
    %2919 = vadd.xlane.f32.xlu0 %v2918
    %v2920 = vpop.xlane.xlu0 %2919
    %v2921 = vsel %vm498, %v2913, 0.0
    %2922 = vadd.xlane.f32.xlu0 %v2921
    %v2923 = vpop.xlane.xlu0 %2922
    %v2924 = vsel %vm498, %v2914, 0.0
    %2925 = vadd.xlane.f32.xlu0 %v2924
    %v2926 = vpop.xlane.xlu0 %2925
    %v2927 = vsub.f32 %v2880, %v2917
    %v2928 = vsub.f32 %v2883, %v2920
    %v2929 = vsub.f32 %v2886, %v2923
    %v2930 = vsub.f32 %v2889, %v2926
    %v2931 = vmul.f32 %v2927, 1.442695
    %v2932 = vpow.pop %v2931
    %v2933 = vmul.f32 %v2928, 1.442695
    %v2934 = vpow.pop %v2933
    %v2935 = vmul.f32 %v2929, 1.442695
    %v2936 = vpow.pop %v2935
    %v2937 = vmul.f32 %v2930, 1.442695
    %v2938 = vpow.pop %v2937
    %2943 = vrot.lane.b32.xlu0 %v2874, 96
    %v2944 = vpop.permute.xlu0 %2943
    %2945 = vrot.lane.b32.xlu0 %v2875, 96
    %v2946 = vpop.permute.xlu0 %2945
    %2947 = vrot.lane.b32.xlu0 %v2876, 96
    %v2948 = vpop.permute.xlu0 %2947
    %2949 = vrot.lane.b32.xlu0 %v2877, 96
    %v2950 = vpop.permute.xlu0 %2949
    %v2955 = vsel %vm414, %v2944, 0.0
    %2956 = vadd.xlane.f32.xlu0 %v2955
    %v2957 = vpop.xlane.xlu0 %2956
    %v2958 = vsel %vm414, %v2946, 0.0
    %2959 = vadd.xlane.f32.xlu0 %v2958
    %v2960 = vpop.xlane.xlu0 %2959
    %v2961 = vsel %vm414, %v2948, 0.0
    %2962 = vadd.xlane.f32.xlu0 %v2961
    %v2963 = vpop.xlane.xlu0 %2962
    %v2964 = vsel %vm414, %v2950, 0.0
    %2965 = vadd.xlane.f32.xlu0 %v2964
    %v2966 = vpop.xlane.xlu0 %2965
    %v2967 = vmul.f32 %v2957, %v398
    %v2968 = vmul.f32 %v2960, %v399
    %v2969 = vmul.f32 %v2963, %v400
    %v2970 = vmul.f32 %v2966, %v401
    %v2971 = vadd.f32 %v2967, %v1700
    %v2972 = vadd.f32 %v2968, %v1701
    %v2973 = vadd.f32 %v2969, %v1702
    %v2974 = vadd.f32 %v2970, %v1703
    %v2975 = vsel %vm498, %v2971, -inf
    %v2976 = vsel %vm498, %v2972, -inf
    %v2977 = vsel %vm498, %v2973, -inf
    %v2978 = vsel %vm498, %v2974, -inf
    %v2979 = vmax.f32 %v2975, %v2976
    %v2980 = vmax.f32 %v2977, %v2978
    %v2981 = vmax.f32 %v2979, %v2980
    %v2982 = vrot.slane %v2981, 4
    %v2983 = vmax.f32 %v2981, %v2982
    %v2984 = vrot.slane %v2983, 2
    %v2985 = vmax.f32 %v2983, %v2984
    %v2986 = vrot.slane %v2985, 1
    %v2987 = vmax.f32 %v2985, %v2986
    %v2988 = vmul.f32 %v398, %v2987
    %v2989 = vmul.f32 %v399, %v2987
    %v2990 = vmul.f32 %v400, %v2987
    %v2991 = vmul.f32 %v401, %v2987
    %v2992 = vsel %vm498, %v2988, 0.0
    %2993 = vadd.xlane.f32.xlu0 %v2992
    %v2994 = vpop.xlane.xlu0 %2993
    %v2995 = vsel %vm498, %v2989, 0.0
    %2996 = vadd.xlane.f32.xlu0 %v2995
    %v2997 = vpop.xlane.xlu0 %2996
    %v2998 = vsel %vm498, %v2990, 0.0
    %2999 = vadd.xlane.f32.xlu0 %v2998
    %v3000 = vpop.xlane.xlu0 %2999
    %v3001 = vsel %vm498, %v2991, 0.0
    %3002 = vadd.xlane.f32.xlu0 %v3001
    %v3003 = vpop.xlane.xlu0 %3002
    %v3004 = vsub.f32 %v2957, %v2994
    %v3005 = vsub.f32 %v2960, %v2997
    %v3006 = vsub.f32 %v2963, %v3000
    %v3007 = vsub.f32 %v2966, %v3003
    %v3008 = vmul.f32 %v3004, 1.442695
    %v3009 = vpow.pop %v3008
    %v3010 = vmul.f32 %v3005, 1.442695
    %v3011 = vpow.pop %v3010
    %v3012 = vmul.f32 %v3006, 1.442695
    %v3013 = vpow.pop %v3012
    %v3014 = vmul.f32 %v3007, 1.442695
    %v3015 = vpow.pop %v3014
    %v3016 = vsel %vm1826, %v2932, %v3009
    %v3017 = vsel %vm1826, %v2934, %v3011
    %v3018 = vsel %vm1826, %v2936, %v3013
    %v3019 = vsel %vm1826, %v2938, %v3015
    %3020 = vmatprep.subr.mxu0 0.0
    %3021 = vmatpush1.msra.mxu0 %v3016
    %3022 = vmatprep.subr.mxu0 0.0
    %3023 = vmatpush1.msra.mxu0 %v3017
    %3024 = vmatprep.subr.mxu0 0.0
    %3025 = vmatpush1.msra.mxu0 %v3018
    %3026 = vmatprep.subr.mxu0 0.0
    %3027 = vmatpush1.msra.mxu0 %v3019
    %3028 = vmatprep.subr.mxu0 0.0
    %3029 = vmatpush1.msra.mxu0 0.0
    %3030 = vmatprep.subr.mxu0 0.0
    %3031 = vmatpush1.msra.mxu0 0.0
    %3032 = vmatprep.subr.mxu0 0.0
    %3033 = vmatpush1.msra.mxu0 0.0
    %3034 = vmatprep.subr.mxu0 0.0
    %3035 = vmatpush1.msra.mxu0 0.0
    %3036 = vmatprep.subr.mxu0 0.0
    %3037 = vmatpush1.msra.mxu0 0.0
    %3038 = vmatprep.subr.mxu0 0.0
    %3039 = vmatpush1.msra.mxu0 0.0
    %3040 = vmatprep.subr.mxu0 0.0
    %3041 = vmatpush1.msra.mxu0 0.0
    %3042 = vmatprep.subr.mxu0 0.0
    %3043 = vmatpush1.msra.mxu0 0.0
    %3044 = vmatprep.subr.mxu0 0.0
    %3045 = vmatpush1.msra.mxu0 0.0
    %3046 = vmatprep.subr.mxu0 0.0
    %3047 = vmatpush1.msra.mxu0 0.0
    %3048 = vmatprep.subr.mxu0 0.0
    %3049 = vmatpush1.msra.mxu0 0.0
    %3050 = vmatprep.subr.mxu0 0.0
    %3051 = vmatpush1.msra.mxu0 0.0
    %3052 = vmatprep.subr.mxu0 0.0
    %3053 = vmatpush1.msra.mxu0 0.0
    %3054 = vmatprep.subr.mxu0 0.0
    %3055 = vmatpush1.msra.mxu0 0.0
    %3056 = vmatprep.subr.mxu0 0.0
    %3057 = vmatpush1.msra.mxu0 0.0
    %3058 = vmatprep.subr.mxu0 0.0
    %3059 = vmatpush1.msra.mxu0 0.0
    %3060 = vmatprep.subr.mxu0 0.0
    %3061 = vmatpush1.msra.mxu0 0.0
    %3062 = vmatprep.subr.mxu0 0.0
    %3063 = vmatpush1.msra.mxu0 0.0
    %3064 = vmatprep.subr.mxu0 0.0
    %3065 = vmatpush1.msra.mxu0 0.0
    %3066 = vmatprep.subr.mxu0 0.0
    %3067 = vmatpush1.msra.mxu0 0.0
    %3068 = vmatprep.subr.mxu0 0.0
    %3069 = vmatpush1.msra.mxu0 0.0
    %3070 = vmatprep.subr.mxu0 0.0
    %3071 = vmatpush1.msra.mxu0 0.0
    %3072 = vmatprep.subr.mxu0 0.0
    %3073 = vmatpush1.msra.mxu0 0.0
    %3074 = vmatprep.subr.mxu0 0.0
    %3075 = vmatpush1.msra.mxu0 0.0
    %3076 = vmatprep.subr.mxu0 0.0
    %3077 = vmatpush1.msra.mxu0 0.0
    %3078 = vmatprep.subr.mxu0 0.0
    %3079 = vmatpush1.msra.mxu0 0.0
    %3080 = vmatprep.subr.mxu0 0.0
    %3081 = vmatpush1.msra.mxu0 0.0
    %3082 = vmatprep.subr.mxu0 0.0
    %3083 = vmatpush1.msra.mxu0 0.0
    %3084 = vmatprep.mubr.f32.mxu0 0.0
    %3085 = vmatmul.mubr.f32.gmra.mrb[0].mxu0 %v416
    %v3086 = vpop.f32.mrb[0].mxu0
    %v3087 = vadd.f32 0.0, %v3086
    %v3088 = vpop.f32.mrb[0].mxu0
    %3089 = vmatprep.mubr.f32.mxu0 0.0
    %3090 = vmatmul.mubr.f32.gmra.mrb[0].mxu0 %v419
    %v3091 = vpop.f32.mrb[0].mxu0
    %v3092 = vadd.f32 0.0, %v3091
    %v3093 = vpop.f32.mrb[0].mxu0
    %3094 = vdwg.mxu0
    %3095 = vmatprep.subr.mxu0 0.0
    %3096 = vmatpush1.msra.mxu0 %v3087
    %3097 = vmatprep.subr.mxu0 0.0
    %3098 = vmatpush1.msra.mxu0 %v3092
    %3099 = vmatprep.subr.mxu0 0.0
    %3100 = vmatpush1.msra.mxu0 0.0
    %3101 = vmatprep.subr.mxu0 0.0
    %3102 = vmatpush1.msra.mxu0 0.0
    %3103 = vmatprep.subr.mxu0 0.0
    %3104 = vmatpush1.msra.mxu0 0.0
    %3105 = vmatprep.subr.mxu0 0.0
    %3106 = vmatpush1.msra.mxu0 0.0
    %3107 = vmatprep.subr.mxu0 0.0
    %3108 = vmatpush1.msra.mxu0 0.0
    %3109 = vmatprep.subr.mxu0 0.0
    %3110 = vmatpush1.msra.mxu0 0.0
    %3111 = vmatprep.subr.mxu0 0.0
    %3112 = vmatpush1.msra.mxu0 0.0
    %3113 = vmatprep.subr.mxu0 0.0
    %3114 = vmatpush1.msra.mxu0 0.0
    %3115 = vmatprep.subr.mxu0 0.0
    %3116 = vmatpush1.msra.mxu0 0.0
    %3117 = vmatprep.subr.mxu0 0.0
    %3118 = vmatpush1.msra.mxu0 0.0
    %3119 = vmatprep.subr.mxu0 0.0
    %3120 = vmatpush1.msra.mxu0 0.0
    %3121 = vmatprep.subr.mxu0 0.0
    %3122 = vmatpush1.msra.mxu0 0.0
    %3123 = vmatprep.subr.mxu0 0.0
    %3124 = vmatpush1.msra.mxu0 0.0
    %3125 = vmatprep.subr.mxu0 0.0
    %3126 = vmatpush1.msra.mxu0 0.0
    %3127 = vmatprep.subr.mxu0 0.0
    %3128 = vmatpush1.msra.mxu0 0.0
    %3129 = vmatprep.subr.mxu0 0.0
    %3130 = vmatpush1.msra.mxu0 0.0
    %3131 = vmatprep.subr.mxu0 0.0
    %3132 = vmatpush1.msra.mxu0 0.0
    %3133 = vmatprep.subr.mxu0 0.0
    %3134 = vmatpush1.msra.mxu0 0.0
    %3135 = vmatprep.subr.mxu0 0.0
    %3136 = vmatpush1.msra.mxu0 0.0
    %3137 = vmatprep.subr.mxu0 0.0
    %3138 = vmatpush1.msra.mxu0 0.0
    %3139 = vmatprep.subr.mxu0 0.0
    %3140 = vmatpush1.msra.mxu0 0.0
    %3141 = vmatprep.subr.mxu0 0.0
    %3142 = vmatpush1.msra.mxu0 0.0
    %3143 = vmatprep.subr.mxu0 0.0
    %3144 = vmatpush1.msra.mxu0 0.0
    %3145 = vmatprep.subr.mxu0 0.0
    %3146 = vmatpush1.msra.mxu0 0.0
    %3147 = vmatprep.subr.mxu0 0.0
    %3148 = vmatpush1.msra.mxu0 0.0
    %3149 = vmatprep.subr.mxu0 0.0
    %3150 = vmatpush1.msra.mxu0 0.0
    %3151 = vmatprep.subr.mxu0 0.0
    %3152 = vmatpush1.msra.mxu0 0.0
    %3153 = vmatprep.subr.mxu0 0.0
    %3154 = vmatpush1.msra.mxu0 0.0
    %3155 = vmatprep.subr.mxu0 0.0
    %3156 = vmatpush1.msra.mxu0 0.0
    %3157 = vmatprep.subr.mxu0 0.0
    %3158 = vmatpush1.msra.mxu0 0.0
    %3159 = vmatprep.mubr.f32.mxu0 0.0
    %3160 = vmatmul.mubr.f32.gmra.mrb[0].mxu0 %v1398
    %v3161 = vpop.f32.mrb[0].mxu0
    %v3162 = vadd.f32 0.0, %v3161
    %v3163 = vpop.f32.mrb[0].mxu0
    %3164 = vmatprep.mubr.f32.mxu0 0.0
    %3165 = vmatmul.mubr.f32.gmra.mrb[0].mxu0 %v1401
    %v3166 = vpop.f32.mrb[0].mxu0
    %v3167 = vadd.f32 0.0, %v3166
    %v3168 = vpop.f32.mrb[0].mxu0
    %3169 = vmatprep.mubr.f32.mxu0 0.0
    %3170 = vmatmul.mubr.f32.gmra.mrb[0].mxu0 %v1404
    %v3171 = vpop.f32.mrb[0].mxu0
    %v3172 = vadd.f32 0.0, %v3171
    %v3173 = vpop.f32.mrb[0].mxu0
    %3174 = vmatprep.mubr.f32.mxu0 0.0
    %3175 = vmatmul.mubr.f32.gmra.mrb[0].mxu0 %v1407
    %v3176 = vpop.f32.mrb[0].mxu0
    %v3177 = vadd.f32 0.0, %v3176
    %v3178 = vpop.f32.mrb[0].mxu0
    %3179 = vdwg.mxu0
    %v3180 = vrcp.pop %v3162
    %v3181 = vmul.f32 %v3016, %v3180
    %v3182 = vrcp.pop %v3167
    %v3183 = vmul.f32 %v3017, %v3182
    %v3184 = vrcp.pop %v3172
    %v3185 = vmul.f32 %v3018, %v3184
    %v3186 = vrcp.pop %v3177
    %v3187 = vmul.f32 %v3019, %v3186
    %3189 = vset.pattern.permute.xlu0 0
    %3190 = vperm.xlu0 %3189, %v3181
    %v3191 = vpop.permute.xlu0 %3190
    %3194 = vset.pattern.permute.xlu0 0
    %3195 = vperm.xlu0 %3194, %v3183
    %v3196 = vpop.permute.xlu0 %3195
    %3199 = vset.pattern.permute.xlu0 0
    %3200 = vperm.xlu0 %3199, %v3185
    %v3201 = vpop.permute.xlu0 %3200
    %3204 = vset.pattern.permute.xlu0 0
    %3205 = vperm.xlu0 %3204, %v3187
    %v3206 = vpop.permute.xlu0 %3205
    %v3208 = vmul.f32 %v2856, %v3191
    %v3209 = vmul.f32 %v2861, %v3196
    %v3210 = vmul.f32 %v2866, %v3201
    %v3211 = vmul.f32 %v2871, %v3206
    %3212 = vset.pattern.permute.xlu0 1
    %3213 = vperm.xlu0 %3212, %v3181
    %v3214 = vpop.permute.xlu0 %3213
    %3216 = vset.pattern.permute.xlu0 1
    %3217 = vperm.xlu0 %3216, %v3183
    %v3218 = vpop.permute.xlu0 %3217
    %3220 = vset.pattern.permute.xlu0 1
    %3221 = vperm.xlu0 %3220, %v3185
    %v3222 = vpop.permute.xlu0 %3221
    %3224 = vset.pattern.permute.xlu0 1
    %3225 = vperm.xlu0 %3224, %v3187
    %v3226 = vpop.permute.xlu0 %3225
    %v3228 = vmul.f32 %v2856, %v3214
    %v3229 = vmul.f32 %v2861, %v3218
    %v3230 = vmul.f32 %v2866, %v3222
    %v3231 = vmul.f32 %v2871, %v3226
    %v3232 = vsel %vm414, %v3208, %v3228
    %v3233 = vsel %vm414, %v3209, %v3229
    %v3234 = vsel %vm414, %v3210, %v3230
    %v3235 = vsel %vm414, %v3211, %v3231
    %3236 = vmatprep.subr.mxu0 0.0
    %3237 = vmatpush1.msra.mxu0 %v3232
    %3238 = vmatprep.subr.mxu0 0.0
    %3239 = vmatpush1.msra.mxu0 %v3233
    %3240 = vmatprep.subr.mxu0 0.0
    %3241 = vmatpush1.msra.mxu0 %v3234
    %3242 = vmatprep.subr.mxu0 0.0
    %3243 = vmatpush1.msra.mxu0 %v3235
    %3244 = vmatprep.subr.mxu0 0.0
    %3245 = vmatpush1.msra.mxu0 0.0
    %3246 = vmatprep.subr.mxu0 0.0
    %3247 = vmatpush1.msra.mxu0 0.0
    %3248 = vmatprep.subr.mxu0 0.0
    %3249 = vmatpush1.msra.mxu0 0.0
    %3250 = vmatprep.subr.mxu0 0.0
    %3251 = vmatpush1.msra.mxu0 0.0
    %3252 = vmatprep.subr.mxu0 0.0
    %3253 = vmatpush1.msra.mxu0 0.0
    %3254 = vmatprep.subr.mxu0 0.0
    %3255 = vmatpush1.msra.mxu0 0.0
    %3256 = vmatprep.subr.mxu0 0.0
    %3257 = vmatpush1.msra.mxu0 0.0
    %3258 = vmatprep.subr.mxu0 0.0
    %3259 = vmatpush1.msra.mxu0 0.0
    %3260 = vmatprep.subr.mxu0 0.0
    %3261 = vmatpush1.msra.mxu0 0.0
    %3262 = vmatprep.subr.mxu0 0.0
    %3263 = vmatpush1.msra.mxu0 0.0
    %3264 = vmatprep.subr.mxu0 0.0
    %3265 = vmatpush1.msra.mxu0 0.0
    %3266 = vmatprep.subr.mxu0 0.0
    %3267 = vmatpush1.msra.mxu0 0.0
    %3268 = vmatprep.subr.mxu0 0.0
    %3269 = vmatpush1.msra.mxu0 0.0
    %3270 = vmatprep.subr.mxu0 0.0
    %3271 = vmatpush1.msra.mxu0 0.0
    %3272 = vmatprep.subr.mxu0 0.0
    %3273 = vmatpush1.msra.mxu0 0.0
    %3274 = vmatprep.subr.mxu0 0.0
    %3275 = vmatpush1.msra.mxu0 0.0
    %3276 = vmatprep.subr.mxu0 0.0
    %3277 = vmatpush1.msra.mxu0 0.0
    %3278 = vmatprep.subr.mxu0 0.0
    %3279 = vmatpush1.msra.mxu0 0.0
    %3280 = vmatprep.subr.mxu0 0.0
    %3281 = vmatpush1.msra.mxu0 0.0
    %3282 = vmatprep.subr.mxu0 0.0
    %3283 = vmatpush1.msra.mxu0 0.0
    %3284 = vmatprep.subr.mxu0 0.0
    %3285 = vmatpush1.msra.mxu0 0.0
    %3286 = vmatprep.subr.mxu0 0.0
    %3287 = vmatpush1.msra.mxu0 0.0
    %3288 = vmatprep.subr.mxu0 0.0
    %3289 = vmatpush1.msra.mxu0 0.0
    %3290 = vmatprep.subr.mxu0 0.0
    %3291 = vmatpush1.msra.mxu0 0.0
    %3292 = vmatprep.subr.mxu0 0.0
    %3293 = vmatpush1.msra.mxu0 0.0
    %3294 = vmatprep.subr.mxu0 0.0
    %3295 = vmatpush1.msra.mxu0 0.0
    %3296 = vmatprep.subr.mxu0 0.0
    %3297 = vmatpush1.msra.mxu0 0.0
    %3298 = vmatprep.subr.mxu0 0.0
    %3299 = vmatpush1.msra.mxu0 0.0
    %3300 = vmatprep.mubr.f32.mxu0 0.0
    %3301 = vmatmul.mubr.f32.gmra.mrb[0].mxu0 %v416
    %v3302 = vpop.f32.mrb[0].mxu0
    %v3303 = vadd.f32 0.0, %v3302
    %v3304 = vpop.f32.mrb[0].mxu0
    %3305 = vmatprep.mubr.f32.mxu0 0.0
    %3306 = vmatmul.mubr.f32.gmra.mrb[0].mxu0 %v419
    %v3307 = vpop.f32.mrb[0].mxu0
    %v3308 = vadd.f32 0.0, %v3307
    %v3309 = vpop.f32.mrb[0].mxu0
    %3310 = vdwg.mxu0
    %v3311 = vld [vmem:[%s65] sm:$0xff]
    %v3312 = vld [vmem:[%s65 + $0x8] sm:$0xff]
    %v3313 = vld [vmem:[%s65 + $0x10] sm:$0xff]
    %v3314 = vld [vmem:[%s65 + $0x18] sm:$0xff]
    %v3315 = vld [vmem:[%s65 + $0x20] sm:$0xff]
    %v3316 = vld [vmem:[%s65 + $0x28] sm:$0xff]
    %v3317 = vld [vmem:[%s65 + $0x30] sm:$0xff]
    %v3318 = vld [vmem:[%s65 + $0x38] sm:$0xff]
    %v3319 = vld [vmem:[%s67] sm:$0x1]
    %v3321 = vlaneseq
    %v3322 = vshrl.u32 %v3321, 7
    %v3323 = vsub.s32 0, %v3322
    %v3324 = vrot.slane %v3319, %v3323
    %3326 = vmatprep.subr.mxu0 0.0
    %3327 = vmatpush1.msra.mxu0 %v3311
    %3328 = vmatprep.subr.mxu0 0.0
    %3329 = vmatpush1.msra.mxu0 %v3312
    %3330 = vmatprep.subr.mxu0 0.0
    %3331 = vmatpush1.msra.mxu0 %v3313
    %3332 = vmatprep.subr.mxu0 0.0
    %3333 = vmatpush1.msra.mxu0 %v3314
    %3334 = vmatprep.subr.mxu0 0.0
    %3335 = vmatpush1.msra.mxu0 %v3315
    %3336 = vmatprep.subr.mxu0 0.0
    %3337 = vmatpush1.msra.mxu0 %v3316
    %3338 = vmatprep.subr.mxu0 0.0
    %3339 = vmatpush1.msra.mxu0 %v3317
    %3340 = vmatprep.subr.mxu0 0.0
    %3341 = vmatpush1.msra.mxu0 %v3318
    %3342 = vmatprep.subr.mxu0 0.0
    %3343 = vmatpush1.msra.mxu0 0.0
    %3344 = vmatprep.subr.mxu0 0.0
    %3345 = vmatpush1.msra.mxu0 0.0
    %3346 = vmatprep.subr.mxu0 0.0
    %3347 = vmatpush1.msra.mxu0 0.0
    %3348 = vmatprep.subr.mxu0 0.0
    %3349 = vmatpush1.msra.mxu0 0.0
    %3350 = vmatprep.subr.mxu0 0.0
    %3351 = vmatpush1.msra.mxu0 0.0
    %3352 = vmatprep.subr.mxu0 0.0
    %3353 = vmatpush1.msra.mxu0 0.0
    %3354 = vmatprep.subr.mxu0 0.0
    %3355 = vmatpush1.msra.mxu0 0.0
    %3356 = vmatprep.subr.mxu0 0.0
    %3357 = vmatpush1.msra.mxu0 0.0
    %3358 = vmatprep.subr.mxu0 0.0
    %3359 = vmatpush1.msra.mxu0 0.0
    %3360 = vmatprep.subr.mxu0 0.0
    %3361 = vmatpush1.msra.mxu0 0.0
    %3362 = vmatprep.subr.mxu0 0.0
    %3363 = vmatpush1.msra.mxu0 0.0
    %3364 = vmatprep.subr.mxu0 0.0
    %3365 = vmatpush1.msra.mxu0 0.0
    %3366 = vmatprep.subr.mxu0 0.0
    %3367 = vmatpush1.msra.mxu0 0.0
    %3368 = vmatprep.subr.mxu0 0.0
    %3369 = vmatpush1.msra.mxu0 0.0
    %3370 = vmatprep.subr.mxu0 0.0
    %3371 = vmatpush1.msra.mxu0 0.0
    %3372 = vmatprep.subr.mxu0 0.0
    %3373 = vmatpush1.msra.mxu0 0.0
    %3374 = vmatprep.subr.mxu0 0.0
    %3375 = vmatpush1.msra.mxu0 0.0
    %3376 = vmatprep.subr.mxu0 0.0
    %3377 = vmatpush1.msra.mxu0 0.0
    %3378 = vmatprep.subr.mxu0 0.0
    %3379 = vmatpush1.msra.mxu0 0.0
    %3380 = vmatprep.subr.mxu0 0.0
    %3381 = vmatpush1.msra.mxu0 0.0
    %3382 = vmatprep.subr.mxu0 0.0
    %3383 = vmatpush1.msra.mxu0 0.0
    %3384 = vmatprep.subr.mxu0 0.0
    %3385 = vmatpush1.msra.mxu0 0.0
    %3386 = vmatprep.subr.mxu0 0.0
    %3387 = vmatpush1.msra.mxu0 0.0
    %3388 = vmatprep.subr.mxu0 0.0
    %3389 = vmatpush1.msra.mxu0 0.0
    %3390 = vmatprep.mubr.f32.mxu0 0.0
    %3391 = vmatmul.mubr.f32.gmra.mrb[0].mxu0 %v2271
    %v3392 = vpop.f32.mrb[0].mxu0
    %v3393 = vadd.f32 %v3324, %v3392
    %v3394 = vpop.f32.mrb[0].mxu0
    %3395 = vmatprep.mubr.f32.mxu0 0.0
    %3396 = vmatmul.mubr.f32.gmra.mrb[0].mxu0 %v2274
    %v3397 = vpop.f32.mrb[0].mxu0
    %v3398 = vadd.f32 %v3324, %v3397
    %v3399 = vpop.f32.mrb[0].mxu0
    %3400 = vdwg.mxu0
    %v3401 = vld [vmem:[%s69] sm:$0x1]
    %v3403 = vlaneseq
    %v3404 = vshrl.u32 %v3403, 7
    %v3405 = vsub.s32 0, %v3404
    %v3406 = vrot.slane %v3401, %v3405
    %v3408 = vmul.f32 %v3303, %v3406
    %v3409 = vmul.f32 %v3308, %v3406
    %v3410 = vld [vmem:[%s71] sm:$0x1]
    %v3412 = vlaneseq
    %v3413 = vshrl.u32 %v3412, 7
    %v3414 = vsub.s32 0, %v3413
    %v3415 = vrot.slane %v3410, %v3414
    %v3417 = vmul.f32 %v3393, %v3415
    %v3418 = vmul.f32 %v3398, %v3415
    %v3419 = vadd.f32 %v3408, %v3417
    %v3420 = vadd.f32 %v3409, %v3418
    %v3421 = vsel %vm2228, %v3419, 0.0
    %3422 = vadd.xlane.f32.xlu0 %v3421
    %v3423 = vpop.xlane.xlu0 %3422
    %v3424 = vsel %vm2228, %v3420, 0.0
    %3425 = vadd.xlane.f32.xlu0 %v3424
    %v3426 = vpop.xlane.xlu0 %3425
    %v3427 = vxor.u32 %v3423, 2147483648
    %v3428 = vxor.u32 %v3426, 2147483648
    %v3429 = vmul.f32 %v3427, 1.442695
    %v3430 = vpow.pop %v3429
    %v3431 = vmul.f32 %v3428, 1.442695
    %v3432 = vpow.pop %v3431
    %v3433 = vadd.f32 %v3430, 1.0
    %v3434 = vadd.f32 %v3432, 1.0
    %v3435 = vrcp.pop %v3433
    %v3436 = vmul.f32 1.0, %v3435
    %v3437 = vrcp.pop %v3434
    %v3438 = vmul.f32 1.0, %v3437
    %v3439 = vmul.f32 %v3436, %v3393
    %v3440 = vmul.f32 %v3438, %v3398
    %v3441 = vsub.f32 1.0, %v3436
    %v3442 = vsub.f32 1.0, %v3438
    %v3443 = vmul.f32 %v3441, %v3303
    %v3444 = vmul.f32 %v3442, %v3308
    %v3445 = vadd.f32 %v3439, %v3443
    %v3446 = vadd.f32 %v3440, %v3444
    %v3447 = vld [vmem:[#allocation5] sm:$0x1]
    %v3448 = vlaneseq
    %v3449 = vshrl.u32 %v3448, 7
    %v3450 = vsub.s32 0, %v3449
    %v3451 = vrot.slane %v3447, %v3450
    %vm3452 = vcmp.eq.s32.totalorder %v403, %v3451
    %v3453 = vsel %vm3452, 1.0, 0.0
    %vm3454 = vcmask 123904
    %v3455 = vsel %vm3454, %v3453, 0.0
    %3456 = vadd.xlane.f32.xlu0 %v3455
    %v3457 = vpop.xlane.xlu0 %3456
    %v3458 = vmax.f32 %v3457, 1.0
    %v3459 = vrcp.pop %v3458
    %v3460 = vmul.f32 %v3453, %v3459
    %v3462 = vsel %vm498, %v3460, 0
    %3464 = vmatprep.subr.mxu0 0.0
    %3465 = vmatpush1.msra.mxu0 %v3445
    %3466 = vmatprep.subr.mxu0 0.0
    %3467 = vmatpush1.msra.mxu0 %v3446
    %3468 = vmatprep.subr.mxu0 0.0
    %3469 = vmatpush1.msra.mxu0 0.0
    %3470 = vmatprep.subr.mxu0 0.0
    %3471 = vmatpush1.msra.mxu0 0.0
    %3472 = vmatprep.subr.mxu0 0.0
    %3473 = vmatpush1.msra.mxu0 0.0
    %3474 = vmatprep.subr.mxu0 0.0
    %3475 = vmatpush1.msra.mxu0 0.0
    %3476 = vmatprep.subr.mxu0 0.0
    %3477 = vmatpush1.msra.mxu0 0.0
    %3478 = vmatprep.subr.mxu0 0.0
    %3479 = vmatpush1.msra.mxu0 0.0
    %3480 = vmatprep.subr.mxu0 0.0
    %3481 = vmatpush1.msra.mxu0 0.0
    %3482 = vmatprep.subr.mxu0 0.0
    %3483 = vmatpush1.msra.mxu0 0.0
    %3484 = vmatprep.subr.mxu0 0.0
    %3485 = vmatpush1.msra.mxu0 0.0
    %3486 = vmatprep.subr.mxu0 0.0
    %3487 = vmatpush1.msra.mxu0 0.0
    %3488 = vmatprep.subr.mxu0 0.0
    %3489 = vmatpush1.msra.mxu0 0.0
    %3490 = vmatprep.subr.mxu0 0.0
    %3491 = vmatpush1.msra.mxu0 0.0
    %3492 = vmatprep.subr.mxu0 0.0
    %3493 = vmatpush1.msra.mxu0 0.0
    %3494 = vmatprep.subr.mxu0 0.0
    %3495 = vmatpush1.msra.mxu0 0.0
    %3496 = vmatprep.subr.mxu0 0.0
    %3497 = vmatpush1.msra.mxu0 0.0
    %3498 = vmatprep.subr.mxu0 0.0
    %3499 = vmatpush1.msra.mxu0 0.0
    %3500 = vmatprep.subr.mxu0 0.0
    %3501 = vmatpush1.msra.mxu0 0.0
    %3502 = vmatprep.subr.mxu0 0.0
    %3503 = vmatpush1.msra.mxu0 0.0
    %3504 = vmatprep.subr.mxu0 0.0
    %3505 = vmatpush1.msra.mxu0 0.0
    %3506 = vmatprep.subr.mxu0 0.0
    %3507 = vmatpush1.msra.mxu0 0.0
    %3508 = vmatprep.subr.mxu0 0.0
    %3509 = vmatpush1.msra.mxu0 0.0
    %3510 = vmatprep.subr.mxu0 0.0
    %3511 = vmatpush1.msra.mxu0 0.0
    %3512 = vmatprep.subr.mxu0 0.0
    %3513 = vmatpush1.msra.mxu0 0.0
    %3514 = vmatprep.subr.mxu0 0.0
    %3515 = vmatpush1.msra.mxu0 0.0
    %3516 = vmatprep.subr.mxu0 0.0
    %3517 = vmatpush1.msra.mxu0 0.0
    %3518 = vmatprep.subr.mxu0 0.0
    %3519 = vmatpush1.msra.mxu0 0.0
    %3520 = vmatprep.subr.mxu0 0.0
    %3521 = vmatpush1.msra.mxu0 0.0
    %3522 = vmatprep.subr.mxu0 0.0
    %3523 = vmatpush1.msra.mxu0 0.0
    %3524 = vmatprep.subr.mxu0 0.0
    %3525 = vmatpush1.msra.mxu0 0.0
    %3526 = vmatprep.subr.mxu0 0.0
    %3527 = vmatpush1.msra.mxu0 0.0
    %3528 = vmatprep.mubr.f32.mxu0 0.0
    %3529 = vmatmul.mubr.f32.gmra.mrb[0].mxu0 %v3462
    %v3530 = vpop.f32.mrb[0].mxu0
    %v3531 = vadd.f32 0.0, %v3530
    %v3532 = vpop.f32.mrb[0].mxu0
    %3533 = vdwg.mxu0
    %v3534 = vld [vmem:[%s73] sm:$0xff]
    %v3535 = vld [vmem:[%s73 + $0x8] sm:$0xff]
    %v3536 = vld [vmem:[%s73 + $0x10] sm:$0xff]
    %v3537 = vld [vmem:[%s73 + $0x18] sm:$0xff]
    %v3538 = vld [vmem:[%s73 + $0x20] sm:$0xff]
    %v3539 = vld [vmem:[%s73 + $0x28] sm:$0xff]
    %v3540 = vld [vmem:[%s73 + $0x30] sm:$0xff]
    %v3541 = vld [vmem:[%s73 + $0x38] sm:$0xff]
    %v3542 = vld [vmem:[%s75] sm:$0x1]
    %v3544 = vlaneseq
    %v3545 = vshrl.u32 %v3544, 7
    %v3546 = vsub.s32 0, %v3545
    %v3547 = vrot.slane %v3542, %v3546
    %v3550 = vsel %vm2228, %v3531, 0
    %3552 = vmatprep.subr.mxu0 0.0
    %3553 = vmatpush1.msra.mxu0 %v3534
    %3554 = vmatprep.subr.mxu0 0.0
    %3555 = vmatpush1.msra.mxu0 %v3535
    %3556 = vmatprep.subr.mxu0 0.0
    %3557 = vmatpush1.msra.mxu0 %v3536
    %3558 = vmatprep.subr.mxu0 0.0
    %3559 = vmatpush1.msra.mxu0 %v3537
    %3560 = vmatprep.subr.mxu0 0.0
    %3561 = vmatpush1.msra.mxu0 %v3538
    %3562 = vmatprep.subr.mxu0 0.0
    %3563 = vmatpush1.msra.mxu0 %v3539
    %3564 = vmatprep.subr.mxu0 0.0
    %3565 = vmatpush1.msra.mxu0 %v3540
    %3566 = vmatprep.subr.mxu0 0.0
    %3567 = vmatpush1.msra.mxu0 %v3541
    %3568 = vmatprep.subr.mxu0 0.0
    %3569 = vmatpush1.msra.mxu0 0.0
    %3570 = vmatprep.subr.mxu0 0.0
    %3571 = vmatpush1.msra.mxu0 0.0
    %3572 = vmatprep.subr.mxu0 0.0
    %3573 = vmatpush1.msra.mxu0 0.0
    %3574 = vmatprep.subr.mxu0 0.0
    %3575 = vmatpush1.msra.mxu0 0.0
    %3576 = vmatprep.subr.mxu0 0.0
    %3577 = vmatpush1.msra.mxu0 0.0
    %3578 = vmatprep.subr.mxu0 0.0
    %3579 = vmatpush1.msra.mxu0 0.0
    %3580 = vmatprep.subr.mxu0 0.0
    %3581 = vmatpush1.msra.mxu0 0.0
    %3582 = vmatprep.subr.mxu0 0.0
    %3583 = vmatpush1.msra.mxu0 0.0
    %3584 = vmatprep.subr.mxu0 0.0
    %3585 = vmatpush1.msra.mxu0 0.0
    %3586 = vmatprep.subr.mxu0 0.0
    %3587 = vmatpush1.msra.mxu0 0.0
    %3588 = vmatprep.subr.mxu0 0.0
    %3589 = vmatpush1.msra.mxu0 0.0
    %3590 = vmatprep.subr.mxu0 0.0
    %3591 = vmatpush1.msra.mxu0 0.0
    %3592 = vmatprep.subr.mxu0 0.0
    %3593 = vmatpush1.msra.mxu0 0.0
    %3594 = vmatprep.subr.mxu0 0.0
    %3595 = vmatpush1.msra.mxu0 0.0
    %3596 = vmatprep.subr.mxu0 0.0
    %3597 = vmatpush1.msra.mxu0 0.0
    %3598 = vmatprep.subr.mxu0 0.0
    %3599 = vmatpush1.msra.mxu0 0.0
    %3600 = vmatprep.subr.mxu0 0.0
    %3601 = vmatpush1.msra.mxu0 0.0
    %3602 = vmatprep.subr.mxu0 0.0
    %3603 = vmatpush1.msra.mxu0 0.0
    %3604 = vmatprep.subr.mxu0 0.0
    %3605 = vmatpush1.msra.mxu0 0.0
    %3606 = vmatprep.subr.mxu0 0.0
    %3607 = vmatpush1.msra.mxu0 0.0
    %3608 = vmatprep.subr.mxu0 0.0
    %3609 = vmatpush1.msra.mxu0 0.0
    %3610 = vmatprep.subr.mxu0 0.0
    %3611 = vmatpush1.msra.mxu0 0.0
    %3612 = vmatprep.subr.mxu0 0.0
    %3613 = vmatpush1.msra.mxu0 0.0
    %3614 = vmatprep.subr.mxu0 0.0
    %3615 = vmatpush1.msra.mxu0 0.0
    %3616 = vmatprep.mubr.f32.mxu0 0.0
    %3617 = vmatmul.mubr.f32.gmra.mrb[0].mxu0 %v3550
    %v3618 = vpop.f32.mrb[0].mxu0
    %v3619 = vadd.f32 %v3547, %v3618
    %v3620 = vpop.f32.mrb[0].mxu0
    %3621 = vdwg.mxu0
    %v3622 = vmax.f32 %v3619, 0.0
    %v3623 = vld [vmem:[%s77] sm:$0xff]
    %v3624 = vld [vmem:[%s77 + $0x8] sm:$0xff]
    %v3625 = vld [vmem:[%s77 + $0x10] sm:$0xff]
    %v3626 = vld [vmem:[%s77 + $0x18] sm:$0xff]
    %v3627 = vld [vmem:[%s79] sm:$0x1]
    %v3629 = vlaneseq
    %v3630 = vshrl.u32 %v3629, 7
    %v3631 = vsub.s32 0, %v3630
    %v3632 = vrot.slane %v3627, %v3631
    %v3635 = vsel %vm414, %v3622, 0
    %3637 = vmatprep.subr.mxu0 0.0
    %3638 = vmatpush1.msra.mxu0 %v3623
    %3639 = vmatprep.subr.mxu0 0.0
    %3640 = vmatpush1.msra.mxu0 %v3624
    %3641 = vmatprep.subr.mxu0 0.0
    %3642 = vmatpush1.msra.mxu0 %v3625
    %3643 = vmatprep.subr.mxu0 0.0
    %3644 = vmatpush1.msra.mxu0 %v3626
    %3645 = vmatprep.subr.mxu0 0.0
    %3646 = vmatpush1.msra.mxu0 0.0
    %3647 = vmatprep.subr.mxu0 0.0
    %3648 = vmatpush1.msra.mxu0 0.0
    %3649 = vmatprep.subr.mxu0 0.0
    %3650 = vmatpush1.msra.mxu0 0.0
    %3651 = vmatprep.subr.mxu0 0.0
    %3652 = vmatpush1.msra.mxu0 0.0
    %3653 = vmatprep.subr.mxu0 0.0
    %3654 = vmatpush1.msra.mxu0 0.0
    %3655 = vmatprep.subr.mxu0 0.0
    %3656 = vmatpush1.msra.mxu0 0.0
    %3657 = vmatprep.subr.mxu0 0.0
    %3658 = vmatpush1.msra.mxu0 0.0
    %3659 = vmatprep.subr.mxu0 0.0
    %3660 = vmatpush1.msra.mxu0 0.0
    %3661 = vmatprep.subr.mxu0 0.0
    %3662 = vmatpush1.msra.mxu0 0.0
    %3663 = vmatprep.subr.mxu0 0.0
    %3664 = vmatpush1.msra.mxu0 0.0
    %3665 = vmatprep.subr.mxu0 0.0
    %3666 = vmatpush1.msra.mxu0 0.0
    %3667 = vmatprep.subr.mxu0 0.0
    %3668 = vmatpush1.msra.mxu0 0.0
    %3669 = vmatprep.subr.mxu0 0.0
    %3670 = vmatpush1.msra.mxu0 0.0
    %3671 = vmatprep.subr.mxu0 0.0
    %3672 = vmatpush1.msra.mxu0 0.0
    %3673 = vmatprep.subr.mxu0 0.0
    %3674 = vmatpush1.msra.mxu0 0.0
    %3675 = vmatprep.subr.mxu0 0.0
    %3676 = vmatpush1.msra.mxu0 0.0
    %3677 = vmatprep.subr.mxu0 0.0
    %3678 = vmatpush1.msra.mxu0 0.0
    %3679 = vmatprep.subr.mxu0 0.0
    %3680 = vmatpush1.msra.mxu0 0.0
    %3681 = vmatprep.subr.mxu0 0.0
    %3682 = vmatpush1.msra.mxu0 0.0
    %3683 = vmatprep.subr.mxu0 0.0
    %3684 = vmatpush1.msra.mxu0 0.0
    %3685 = vmatprep.subr.mxu0 0.0
    %3686 = vmatpush1.msra.mxu0 0.0
    %3687 = vmatprep.subr.mxu0 0.0
    %3688 = vmatpush1.msra.mxu0 0.0
    %3689 = vmatprep.subr.mxu0 0.0
    %3690 = vmatpush1.msra.mxu0 0.0
    %3691 = vmatprep.subr.mxu0 0.0
    %3692 = vmatpush1.msra.mxu0 0.0
    %3693 = vmatprep.subr.mxu0 0.0
    %3694 = vmatpush1.msra.mxu0 0.0
    %3695 = vmatprep.subr.mxu0 0.0
    %3696 = vmatpush1.msra.mxu0 0.0
    %3697 = vmatprep.subr.mxu0 0.0
    %3698 = vmatpush1.msra.mxu0 0.0
    %3699 = vmatprep.subr.mxu0 0.0
    %3700 = vmatpush1.msra.mxu0 0.0
    %3701 = vmatprep.mubr.f32.mxu0 0.0
    %3702 = vmatmul.mubr.f32.gmra.mrb[0].mxu0 %v3635
    %v3703 = vpop.f32.mrb[0].mxu0
    %v3704 = vadd.f32 %v3632, %v3703
    %v3705 = vpop.f32.mrb[0].mxu0
    %3706 = vdwg.mxu0
    %vm3707 = vcmask 25600
    %3708 = vst.msk [vmem:[#allocation26] sm:$0x3] %vm3707, %v3704
    // Predicated region
    $region222: #{tpu_custom_call.1} parent=1 // pred_check
      _
    $region223: #{tpu_custom_call.1} parent=1 // pred_check_branch
      %3710 = sbr.rel (0) target = $region225
    $region224: #{tpu_custom_call.1} parent=1 // pred_region
      %s3712 = ssub.s32 32, 32
      %3713 = vsyncadd [#allocation4], %s3712
      %s3715 = sshll.u32 [#allocation26], 4
      %s3716 = int_to_ptr.vmem [resolvable:$true] %s3715
      %3718 = dma.vmem_to_hbm [thread:$0]  %s3716, 32, %s81, [#allocation4]
    $region225: #{tpu_custom_call.1} parent=1 // pred_fallthru
      _
    // Predicated region
    $region226: #{tpu_custom_call.1} parent=1 // pred_check
      _
    $region227: #{tpu_custom_call.1} parent=1 // pred_check_branch
      %3720 = sbr.rel (0) target = $region229
    $region228: #{tpu_custom_call.1} parent=1 // pred_region
      %3721 = dma.done [#allocation4], 32
    $region229: #{tpu_custom_call.1} parent=1 // pred_fallthru
      _
    %3722 = vsyncpa [#allocation3], 1
    %3723 = vsyncpa [#allocation6], 1
    %3724 = vsyncpa [#allocation9], 1
    %3725 = vsyncpa [#allocation12], 1
    %3726 = vsyncpa [#allocation15], 1
    %3727 = vsyncpa [#allocation18], 1
    %3728 = vsyncpa [#allocation21], 1
    %3729 = vsyncpa [#allocation24], 1
    %3730 = vsyncpa [#allocation4], 1

</llo_original>
